<compile_context>
chip_gen: v7x
topology: tpu7x:2x2x1
jax: 0.10.0
libtpu: 0.0.40
codegen_flags: <defaults>
</compile_context>

<pallas_src>
import jax
import jax.numpy as jnp
from jax.experimental import pallas as pl
from jax.experimental.pallas import tpu as pltpu

KSIZES = (2, 3, 4, 5)   # conv kernel heights, matching `kernels = [2, 3, 4, 5]`


def textcnn_kernel(x_ref, wconv_ref, bconv_ref, wl_ref, bl_ref, out_ref, feat_ref):
    """One batch tile of the TextCNN head.

    x_ref:     (TB*S_pad, D)     bf16  zero-padded (kmax-1 rows each side), batch-major
    wconv_ref: (D, sum(k)*C)     bf16  all conv taps stacked along output channels
    bconv_ref: (4, C)            f32   conv biases, one row per kernel size
    wl_ref:    (4*C, Lp)         bf16  label linear weight (lane-padded to Lp)
    bl_ref:    (1, Lp)           f32   label linear bias (lane-padded)
    out_ref:   (TB, Lp)          f32   logits (lane-padded)
    feat_ref:  (TB, 4*C)         bf16  VMEM scratch: concat of pooled branch features
    """
    tb, lp = out_ref.shape
    rows, _ = x_ref.shape
    s_pad = rows // tb
    kmax = max(KSIZES)
    s = s_pad - 2 * (kmax - 1)          # true (sliced) sequence length
    c = bconv_ref.shape[1]

    col0 = 0
    for ki, k in enumerate(KSIZES):      # static Python loop (fully unrolled)
        # Per-branch MXU matmul against a column slab of the packed conv weight.
        # Only a (tb*s_pad, k*C) f32 intermediate is live at a time.
        zk = jnp.dot(x_ref[...], wconv_ref[:, col0:col0 + k * c],
                     preferred_element_type=jnp.float32)
        zk = zk.reshape(tb, s_pad, k * c)    # layout-free: s_pad % 8 == 0
        col0 += k * c

        t_k = s + k - 1                  # PyTorch conv output length with padding (k-1)
        off0 = kmax - k                  # shared (kmax-1) padding vs. per-k (k-1) padding
        acc = None
        for dk in range(k):
            # lane slice at a 128-aligned channel offset; sublane shift along time
            tap = zk[:, off0 + dk: off0 + dk + t_k, dk * c:(dk + 1) * c]  # (TB, T_k, C)
            acc = tap if acc is None else acc + tap
        # Bias-add + ReLU hoisted after the max-pool (exact: max commutes with a
        # per-channel constant, ReLU is monotone) -> work shrinks to (TB, C).
        pooled = jnp.maximum(jnp.max(acc, axis=1) + bconv_ref[ki, :], 0.0)  # (TB, C) f32
        feat_ref[:, ki * c:(ki + 1) * c] = pooled.astype(feat_ref.dtype)

    # concat(pooled_2..5) @ W_line as ONE fused (TB, 4C) @ (4C, Lp) matmul.
    out_ref[...] = (jnp.dot(feat_ref[...], wl_ref[...],
                            preferred_element_type=jnp.float32) + bl_ref[...])


def textcnn_pallas(x, params, *, batch_tile=16):
    """x: (B, S, D) f32 BERT sequence output already sliced to result[:, 1:-1, :].

    Returns logits (B, num_labels).
    """
    B, S, D = x.shape
    kmax = max(KSIZES)
    nb = sum(KSIZES)
    c = params[f"conv{KSIZES[0]}_w"].shape[0]
    L = params["line_w"].shape[0]
    Lp = 128 * pl.cdiv(L, 128)                    # lane-dense output (unmasked stores)
    s_pad = S + 2 * (kmax - 1)
    assert s_pad % 8 == 0, "pick S so the shared-padded length is sublane aligned"

    # --- batch tile: must divide B; prefer >= 2 grid steps so v7x's 2 TCs both work ---
    tb = min(batch_tile, B)
    while tb > 1 and B % tb != 0:
        tb -= 1
    if B // tb < 2:
        for cand in range(tb // 2, 0, -1):
            if B % cand == 0:
                tb = cand
                break
    assert B % tb == 0

    # ---- one-time parameter repacking (layout plumbing, outside the kernel) ----
    # Conv weights: PyTorch (C, 1, k, D) -> per-tap (D, C), stacked along output
    # channels so each branch is a single (D, k*C) bf16 matmul operand slab.
    blocks, biases = [], []
    for k in KSIZES:
        w = params[f"conv{k}_w"]                              # (C, 1, k, D)
        w_kdc = jnp.transpose(w[:, 0], (1, 2, 0))             # (k, D, C)
        blocks += [w_kdc[dk] for dk in range(k)]
        biases.append(params[f"conv{k}_b"])                   # (C,)
    wconv = jnp.concatenate(blocks, axis=1).astype(jnp.bfloat16)    # (D, sum(k)*C)
    bconv = jnp.stack(biases, axis=0).astype(jnp.float32)           # (4, C)

    # Label linear: PyTorch (L, 4C) -> (4C, Lp) with zero lane padding; bias -> (1, Lp).
    wl = jnp.zeros((4 * c, Lp), jnp.float32).at[:, :L].set(params["line_w"].T)
    wl = wl.astype(jnp.bfloat16)
    bl = jnp.zeros((1, Lp), jnp.float32).at[:, :L].set(params["line_b"][None, :])

    # Cast to bf16 FIRST, then pad/reshape (halves the pre-kernel HBM traffic).
    x_pad = jnp.pad(x.astype(jnp.bfloat16), ((0, 0), (kmax - 1, kmax - 1), (0, 0)))
    x_flat = x_pad.reshape(B * s_pad, D)

    # ---- VMEM budget: x tile x2 (double-buffered) + single-buffered weights +
    #      largest per-branch f32 intermediate + tap headroom + out x2 + feat scratch ----
    bytes_x = 2 * tb * s_pad * D * 2
    bytes_w = (wconv.size + wl.size) * 2 + (bconv.size + bl.size) * 4
    bytes_z = tb * s_pad * kmax * c * 4
    bytes_taps = 2 * tb * (S + kmax - 1) * c * 4
    bytes_out = 2 * tb * Lp * 4
    bytes_feat = tb * 4 * c * 2
    derived = int(1.5 * (bytes_x + bytes_w + bytes_z + bytes_taps + bytes_out
                         + bytes_feat)) + (4 << 20)
    try:
        vmem_cap = pltpu.get_tpu_info().vmem_capacity_bytes   # 64 MiB v7x, 128 MiB else
    except Exception:
        vmem_cap = 64 << 20
    vmem_limit = max(32 << 20, min(derived, int(vmem_cap * 0.9), 100 << 20))

    cost = pl.CostEstimate(
        flops=2 * B * s_pad * D * nb * c + 2 * B * 4 * c * Lp,
        transcendentals=0,
        bytes_accessed=(x_flat.size * 2 + wconv.size * 2 + wl.size * 2
                        + bconv.size * 4 + bl.size * 4 + B * Lp * 4),
    )

    resident = pl.Buffered(1)   # constant index maps -> no second (dead) weight buffer
    out = pl.pallas_call(
        textcnn_kernel,
        out_shape=jax.ShapeDtypeStruct((B, Lp), jnp.float32),
        grid=(B // tb,),
        in_specs=[
            pl.BlockSpec((tb * s_pad, D), lambda b: (b, 0)),
            pl.BlockSpec((D, nb * c), lambda b: (0, 0), pipeline_mode=resident),
            pl.BlockSpec((len(KSIZES), c), lambda b: (0, 0), pipeline_mode=resident),
            pl.BlockSpec((4 * c, Lp), lambda b: (0, 0), pipeline_mode=resident),
            pl.BlockSpec((1, Lp), lambda b: (0, 0), pipeline_mode=resident),
        ],
        out_specs=pl.BlockSpec((tb, Lp), lambda b: (b, 0)),
        scratch_shapes=[pltpu.VMEM((tb, 4 * c), jnp.bfloat16)],
        compiler_params=pltpu.CompilerParams(
            dimension_semantics=("parallel",),                # megacore batch split
            vmem_limit_bytes=vmem_limit),
        cost_estimate=cost,
    )(x_flat, wconv, bconv, wl, bl)
    return out[:, :L]


def textcnn_reference(x, params):
    """Pure-JAX f32 reference mirroring the PyTorch forward (for validation)."""
    B, S, D = x.shape
    pooled_all = []
    for k in KSIZES:
        w = params[f"conv{k}_w"]                              # (C, 1, k, D)
        b = params[f"conv{k}_b"]                              # (C,)
        xp = jnp.pad(x, ((0, 0), (k - 1, k - 1), (0, 0)))
        T = S + k - 1
        vals = []
        for t in range(T):
            win = xp[:, t:t + k, :]                           # (B, k, D)
            vals.append(jnp.einsum("bkd,ckd->bc", win, w[:, 0]) + b)
        y = jnp.maximum(jnp.stack(vals, axis=-1), 0.0)        # (B, C, T)
        pooled_all.append(jnp.max(y, axis=-1))                # (B, C) == max_pool1d
    feat = jnp.concatenate(pooled_all, axis=1)                # (B, 4C)
    return feat @ params["line_w"].T + params["line_b"]       # (B, L)


def make_params(key, vocab, seg_vocab, d, c, l):
    ks = jax.random.split(key, 4 + 2 * len(KSIZES))
    s = 0.1
    p = {
        # stand-in "BERT" embeddings (glue, not part of the kernel)
        "tok_emb": jax.random.normal(ks[0], (vocab, d), jnp.float32) * s,
        "seg_emb": jax.random.normal(ks[1], (seg_vocab, d), jnp.float32) * s,
        # self.line = Linear(4*C, L), PyTorch layout (out, in)
        "line_w": jax.random.normal(ks[2], (l, 4 * c), jnp.float32) * s,
        "line_b": jax.random.normal(ks[3], (l,), jnp.float32) * s,
    }
    for i, k in enumerate(KSIZES):
        # nn.Conv2d(1, C, (k, d)) weights in PyTorch layout (C, 1, k, d)
        p[f"conv{k}_w"] = jax.random.normal(ks[4 + 2 * i], (c, 1, k, d), jnp.float32) * s
        p[f"conv{k}_b"] = jax.random.normal(ks[5 + 2 * i], (c,), jnp.float32) * s
    return p


if __name__ == "__main__":
    # Small, lane/sublane-aligned demo shapes consistent with the module
    # (production defaults are D=768, C=768 per conv, L=26; scaled down here).
    B, S_TOTAL, D, C, L = 16, 18, 128, 128, 26
    VOCAB, SEG_VOCAB = 100, 2

    key = jax.random.PRNGKey(0)
    k_ids, k_params = jax.random.split(key)

    input_ids = jax.random.randint(k_ids, (B, S_TOTAL), 0, VOCAB)
    segment_ids = jnp.zeros((B, S_TOTAL), jnp.int32)
    input_mask = jnp.ones((B, S_TOTAL), jnp.int32)

    params = make_params(k_params, VOCAB, SEG_VOCAB, D, C, L)

    # ---- glue (plain JAX): stand-in BERT, then result[:, 1:-1, :] ----
    # TODO(synk): full BERT encoder not reimplemented; deterministic embedding stand-in.
    result = params["tok_emb"][input_ids] + params["seg_emb"][segment_ids]
    result = result * input_mask[..., None].astype(jnp.float32)    # (B, S_TOTAL, D)
    x = result[:, 1:-1, :]                                         # (B, S, D), S = S_TOTAL - 2

    # ---- Pallas kernel: 4 convs + ReLU + max-pool + concat + label linear ----
    logits = textcnn_pallas(x, params)
    logits = jax.block_until_ready(logits)

    ref = textcnn_reference(x, params)
    assert logits.shape == (B, L)
    err = jnp.max(jnp.abs(logits - ref))
    # bf16 matmul operands with f32 accumulation -> loosened tolerance vs f32 reference.
    assert jnp.allclose(logits, ref, atol=5e-2, rtol=5e-2), f"max abs err {err}"

    print("KERNEL_OK")
</pallas_src>

<mosaic_0001>
module attributes {stable_mosaic.version = 11 : i64} {
  func.func @textcnn_kernel(%arg0: i32, %arg1: memref<192x128xbf16, #tpu.memory_space<vmem>>, %arg2: memref<128x1792xbf16, #tpu.memory_space<vmem>>, %arg3: memref<4x128xf32, #tpu.memory_space<vmem>>, %arg4: memref<512x128xbf16, #tpu.memory_space<vmem>>, %arg5: memref<1x128xf32, #tpu.memory_space<vmem>>, %arg6: memref<8x128xf32, #tpu.memory_space<vmem>>, %arg7: memref<8x512xbf16, #tpu.memory_space<vmem>>) attributes {dimension_semantics = [#tpu.dimension_semantics<parallel>], iteration_bounds = array<i64: 2>, scalar_prefetch = 0 : i64, scratch_operands = 1 : i64, tpu.core_type = #tpu.core_type<tc>, window_params = [{transform_indices = @transform_0, window_bounds = array<i64: 192, 128>}, {pipeline_mode = #tpu.pipeline_mode<synchronous>, transform_indices = @transform_1, window_bounds = array<i64: 128, 1792>}, {pipeline_mode = #tpu.pipeline_mode<synchronous>, transform_indices = @transform_2, window_bounds = array<i64: 4, 128>}, {pipeline_mode = #tpu.pipeline_mode<synchronous>, transform_indices = @transform_3, window_bounds = array<i64: 512, 128>}, {pipeline_mode = #tpu.pipeline_mode<synchronous>, transform_indices = @transform_4, window_bounds = array<i64: 1, 128>}, {transform_indices = @transform_5, window_bounds = array<i64: 8, 128>}]} {
    %c0 = arith.constant 0 : index
    %c0_0 = arith.constant 0 : index
    %0 = vector.load %arg1[%c0, %c0_0] : memref<192x128xbf16, #tpu.memory_space<vmem>>, vector<192x128xbf16>
    %c0_1 = arith.constant 0 : index
    %c0_2 = arith.constant 0 : index
    %1 = vector.load %arg2[%c0_1, %c0_2] : memref<128x1792xbf16, #tpu.memory_space<vmem>>, vector<128x256xbf16>
    %cst = arith.constant dense<0.000000e+00> : vector<192x256xf32>
    %2 = tpu.matmul %0, %1, %cst {dimension_numbers = #tpu.dot_dimension_numbers<[1], [0], [0], [1], [0, 0, 1, 1], [], []>} : vector<192x128xbf16>, vector<128x256xbf16>, vector<192x256xf32> -> vector<192x256xf32>
    %3 = vector.shape_cast %2 : vector<192x256xf32> to vector<8x24x256xf32>
    %4 = vector.extract_strided_slice %3 {offsets = [0, 3, 0], sizes = [8, 17, 128], strides = [1, 1, 1]} : vector<8x24x256xf32> to vector<8x17x128xf32>
    %5 = vector.extract_strided_slice %3 {offsets = [0, 4, 128], sizes = [8, 17, 128], strides = [1, 1, 1]} : vector<8x24x256xf32> to vector<8x17x128xf32>
    %6 = arith.addf %4, %5 : vector<8x17x128xf32>
    %cst_3 = arith.constant dense<0xFF800000> : vector<8x128xf32>
    %7 = vector.multi_reduction <maximumf>, %6, %cst_3 [1] : vector<8x17x128xf32> to vector<8x128xf32>
    %c0_4 = arith.constant 0 : index
    %c0_5 = arith.constant 0 : index
    %8 = vector.load %arg3[%c0_4, %c0_5] : memref<4x128xf32, #tpu.memory_space<vmem>>, vector<1x128xf32>
    %9 = vector.shape_cast %8 : vector<1x128xf32> to vector<128xf32>
    %10 = vector.shape_cast %9 : vector<128xf32> to vector<1x128xf32>
    %11 = vector.broadcast %10 : vector<1x128xf32> to vector<8x128xf32>
    %12 = arith.addf %7, %11 : vector<8x128xf32>
    %cst_6 = arith.constant 0.000000e+00 : f32
    %13 = vector.broadcast %cst_6 : f32 to vector<8x128xf32>
    %14 = arith.maximumf %12, %13 : vector<8x128xf32>
    %15 = arith.truncf %14 : vector<8x128xf32> to vector<8x128xbf16>
    %c0_7 = arith.constant 0 : index
    %c0_8 = arith.constant 0 : index
    %16 = vector.load %arg7[%c0_7, %c0_8] : memref<8x512xbf16, #tpu.memory_space<vmem>>, vector<8x128xbf16>
    tpu.vector_store %arg7[%c0_7, %c0_8], %15 {strides = array<i32>} : memref<8x512xbf16, #tpu.memory_space<vmem>>, vector<8x128xbf16>,
    %c0_9 = arith.constant 0 : index
    %c0_10 = arith.constant 0 : index
    %17 = vector.load %arg1[%c0_9, %c0_10] : memref<192x128xbf16, #tpu.memory_space<vmem>>, vector<192x128xbf16>
    %c0_11 = arith.constant 0 : index
    %c256 = arith.constant 256 : index
    %18 = vector.load %arg2[%c0_11, %c256] : memref<128x1792xbf16, #tpu.memory_space<vmem>>, vector<128x384xbf16>
    %cst_12 = arith.constant dense<0.000000e+00> : vector<192x384xf32>
    %19 = tpu.matmul %17, %18, %cst_12 {dimension_numbers = #tpu.dot_dimension_numbers<[1], [0], [0], [1], [0, 0, 1, 1], [], []>} : vector<192x128xbf16>, vector<128x384xbf16>, vector<192x384xf32> -> vector<192x384xf32>
    %20 = vector.shape_cast %19 : vector<192x384xf32> to vector<8x24x384xf32>
    %21 = vector.extract_strided_slice %20 {offsets = [0, 2, 0], sizes = [8, 18, 128], strides = [1, 1, 1]} : vector<8x24x384xf32> to vector<8x18x128xf32>
    %22 = vector.extract_strided_slice %20 {offsets = [0, 3, 128], sizes = [8, 18, 128], strides = [1, 1, 1]} : vector<8x24x384xf32> to vector<8x18x128xf32>
    %23 = arith.addf %21, %22 : vector<8x18x128xf32>
    %24 = vector.extract_strided_slice %20 {offsets = [0, 4, 256], sizes = [8, 18, 128], strides = [1, 1, 1]} : vector<8x24x384xf32> to vector<8x18x128xf32>
    %25 = arith.addf %23, %24 : vector<8x18x128xf32>
    %cst_13 = arith.constant dense<0xFF800000> : vector<8x128xf32>
    %26 = vector.multi_reduction <maximumf>, %25, %cst_13 [1] : vector<8x18x128xf32> to vector<8x128xf32>
    %c1 = arith.constant 1 : index
    %c0_14 = arith.constant 0 : index
    %27 = vector.load %arg3[%c1, %c0_14] : memref<4x128xf32, #tpu.memory_space<vmem>>, vector<1x128xf32>
    %28 = vector.shape_cast %27 : vector<1x128xf32> to vector<128xf32>
    %29 = vector.shape_cast %28 : vector<128xf32> to vector<1x128xf32>
    %30 = vector.broadcast %29 : vector<1x128xf32> to vector<8x128xf32>
    %31 = arith.addf %26, %30 : vector<8x128xf32>
    %cst_15 = arith.constant 0.000000e+00 : f32
    %32 = vector.broadcast %cst_15 : f32 to vector<8x128xf32>
    %33 = arith.maximumf %31, %32 : vector<8x128xf32>
    %34 = arith.truncf %33 : vector<8x128xf32> to vector<8x128xbf16>
    %c0_16 = arith.constant 0 : index
    %c128 = arith.constant 128 : index
    %35 = vector.load %arg7[%c0_16, %c128] : memref<8x512xbf16, #tpu.memory_space<vmem>>, vector<8x128xbf16>
    tpu.vector_store %arg7[%c0_16, %c128], %34 {strides = array<i32>} : memref<8x512xbf16, #tpu.memory_space<vmem>>, vector<8x128xbf16>,
    %c0_17 = arith.constant 0 : index
    %c0_18 = arith.constant 0 : index
    %36 = vector.load %arg1[%c0_17, %c0_18] : memref<192x128xbf16, #tpu.memory_space<vmem>>, vector<192x128xbf16>
    %c0_19 = arith.constant 0 : index
    %c640 = arith.constant 640 : index
    %37 = vector.load %arg2[%c0_19, %c640] : memref<128x1792xbf16, #tpu.memory_space<vmem>>, vector<128x512xbf16>
    %cst_20 = arith.constant dense<0.000000e+00> : vector<192x512xf32>
    %38 = tpu.matmul %36, %37, %cst_20 {dimension_numbers = #tpu.dot_dimension_numbers<[1], [0], [0], [1], [0, 0, 1, 1], [], []>} : vector<192x128xbf16>, vector<128x512xbf16>, vector<192x512xf32> -> vector<192x512xf32>
    %39 = vector.shape_cast %38 : vector<192x512xf32> to vector<8x24x512xf32>
    %40 = vector.extract_strided_slice %39 {offsets = [0, 1, 0], sizes = [8, 19, 128], strides = [1, 1, 1]} : vector<8x24x512xf32> to vector<8x19x128xf32>
    %41 = vector.extract_strided_slice %39 {offsets = [0, 2, 128], sizes = [8, 19, 128], strides = [1, 1, 1]} : vector<8x24x512xf32> to vector<8x19x128xf32>
    %42 = arith.addf %40, %41 : vector<8x19x128xf32>
    %43 = vector.extract_strided_slice %39 {offsets = [0, 3, 256], sizes = [8, 19, 128], strides = [1, 1, 1]} : vector<8x24x512xf32> to vector<8x19x128xf32>
    %44 = arith.addf %42, %43 : vector<8x19x128xf32>
    %45 = vector.extract_strided_slice %39 {offsets = [0, 4, 384], sizes = [8, 19, 128], strides = [1, 1, 1]} : vector<8x24x512xf32> to vector<8x19x128xf32>
    %46 = arith.addf %44, %45 : vector<8x19x128xf32>
    %cst_21 = arith.constant dense<0xFF800000> : vector<8x128xf32>
    %47 = vector.multi_reduction <maximumf>, %46, %cst_21 [1] : vector<8x19x128xf32> to vector<8x128xf32>
    %c2 = arith.constant 2 : index
    %c0_22 = arith.constant 0 : index
    %48 = vector.load %arg3[%c2, %c0_22] : memref<4x128xf32, #tpu.memory_space<vmem>>, vector<1x128xf32>
    %49 = vector.shape_cast %48 : vector<1x128xf32> to vector<128xf32>
    %50 = vector.shape_cast %49 : vector<128xf32> to vector<1x128xf32>
    %51 = vector.broadcast %50 : vector<1x128xf32> to vector<8x128xf32>
    %52 = arith.addf %47, %51 : vector<8x128xf32>
    %cst_23 = arith.constant 0.000000e+00 : f32
    %53 = vector.broadcast %cst_23 : f32 to vector<8x128xf32>
    %54 = arith.maximumf %52, %53 : vector<8x128xf32>
    %55 = arith.truncf %54 : vector<8x128xf32> to vector<8x128xbf16>
    %c0_24 = arith.constant 0 : index
    %c256_25 = arith.constant 256 : index
    %56 = vector.load %arg7[%c0_24, %c256_25] : memref<8x512xbf16, #tpu.memory_space<vmem>>, vector<8x128xbf16>
    tpu.vector_store %arg7[%c0_24, %c256_25], %55 {strides = array<i32>} : memref<8x512xbf16, #tpu.memory_space<vmem>>, vector<8x128xbf16>,
    %c0_26 = arith.constant 0 : index
    %c0_27 = arith.constant 0 : index
    %57 = vector.load %arg1[%c0_26, %c0_27] : memref<192x128xbf16, #tpu.memory_space<vmem>>, vector<192x128xbf16>
    %c0_28 = arith.constant 0 : index
    %c1152 = arith.constant 1152 : index
    %58 = vector.load %arg2[%c0_28, %c1152] : memref<128x1792xbf16, #tpu.memory_space<vmem>>, vector<128x640xbf16>
    %cst_29 = arith.constant dense<0.000000e+00> : vector<192x640xf32>
    %59 = tpu.matmul %57, %58, %cst_29 {dimension_numbers = #tpu.dot_dimension_numbers<[1], [0], [0], [1], [0, 0, 1, 1], [], []>} : vector<192x128xbf16>, vector<128x640xbf16>, vector<192x640xf32> -> vector<192x640xf32>
    %60 = vector.shape_cast %59 : vector<192x640xf32> to vector<8x24x640xf32>
    %61 = vector.extract_strided_slice %60 {offsets = [0, 0, 0], sizes = [8, 20, 128], strides = [1, 1, 1]} : vector<8x24x640xf32> to vector<8x20x128xf32>
    %62 = vector.extract_strided_slice %60 {offsets = [0, 1, 128], sizes = [8, 20, 128], strides = [1, 1, 1]} : vector<8x24x640xf32> to vector<8x20x128xf32>
    %63 = arith.addf %61, %62 : vector<8x20x128xf32>
    %64 = vector.extract_strided_slice %60 {offsets = [0, 2, 256], sizes = [8, 20, 128], strides = [1, 1, 1]} : vector<8x24x640xf32> to vector<8x20x128xf32>
    %65 = arith.addf %63, %64 : vector<8x20x128xf32>
    %66 = vector.extract_strided_slice %60 {offsets = [0, 3, 384], sizes = [8, 20, 128], strides = [1, 1, 1]} : vector<8x24x640xf32> to vector<8x20x128xf32>
    %67 = arith.addf %65, %66 : vector<8x20x128xf32>
    %68 = vector.extract_strided_slice %60 {offsets = [0, 4, 512], sizes = [8, 20, 128], strides = [1, 1, 1]} : vector<8x24x640xf32> to vector<8x20x128xf32>
    %69 = arith.addf %67, %68 : vector<8x20x128xf32>
    %cst_30 = arith.constant dense<0xFF800000> : vector<8x128xf32>
    %70 = vector.multi_reduction <maximumf>, %69, %cst_30 [1] : vector<8x20x128xf32> to vector<8x128xf32>
    %c3 = arith.constant 3 : index
    %c0_31 = arith.constant 0 : index
    %71 = vector.load %arg3[%c3, %c0_31] : memref<4x128xf32, #tpu.memory_space<vmem>>, vector<1x128xf32>
    %72 = vector.shape_cast %71 : vector<1x128xf32> to vector<128xf32>
    %73 = vector.shape_cast %72 : vector<128xf32> to vector<1x128xf32>
    %74 = vector.broadcast %73 : vector<1x128xf32> to vector<8x128xf32>
    %75 = arith.addf %70, %74 : vector<8x128xf32>
    %cst_32 = arith.constant 0.000000e+00 : f32
    %76 = vector.broadcast %cst_32 : f32 to vector<8x128xf32>
    %77 = arith.maximumf %75, %76 : vector<8x128xf32>
    %78 = arith.truncf %77 : vector<8x128xf32> to vector<8x128xbf16>
    %c0_33 = arith.constant 0 : index
    %c384 = arith.constant 384 : index
    %79 = vector.load %arg7[%c0_33, %c384] : memref<8x512xbf16, #tpu.memory_space<vmem>>, vector<8x128xbf16>
    tpu.vector_store %arg7[%c0_33, %c384], %78 {strides = array<i32>} : memref<8x512xbf16, #tpu.memory_space<vmem>>, vector<8x128xbf16>,
    %c0_34 = arith.constant 0 : index
    %c0_35 = arith.constant 0 : index
    %80 = vector.load %arg7[%c0_34, %c0_35] : memref<8x512xbf16, #tpu.memory_space<vmem>>, vector<8x512xbf16>
    %c0_36 = arith.constant 0 : index
    %c0_37 = arith.constant 0 : index
    %81 = vector.load %arg4[%c0_36, %c0_37] : memref<512x128xbf16, #tpu.memory_space<vmem>>, vector<512x128xbf16>
    %cst_38 = arith.constant dense<0.000000e+00> : vector<8x128xf32>
    %82 = tpu.matmul %80, %81, %cst_38 {dimension_numbers = #tpu.dot_dimension_numbers<[1], [0], [0], [1], [0, 0, 1, 1], [], []>} : vector<8x512xbf16>, vector<512x128xbf16>, vector<8x128xf32> -> vector<8x128xf32>
    %c0_39 = arith.constant 0 : index
    %c0_40 = arith.constant 0 : index
    %83 = vector.load %arg5[%c0_39, %c0_40] : memref<1x128xf32, #tpu.memory_space<vmem>>, vector<1x128xf32>
    %84 = vector.broadcast %83 : vector<1x128xf32> to vector<8x128xf32>
    %85 = arith.addf %82, %84 : vector<8x128xf32>
    %c0_41 = arith.constant 0 : index
    %c0_42 = arith.constant 0 : index
    %86 = vector.load %arg6[%c0_41, %c0_42] : memref<8x128xf32, #tpu.memory_space<vmem>>, vector<8x128xf32>
    tpu.vector_store %arg6[%c0_41, %c0_42], %85 {strides = array<i32>} : memref<8x128xf32, #tpu.memory_space<vmem>>, vector<8x128xf32>,
    return
  }
  func.func @transform_0(%arg0: i32) -> (i32, i32) {
    %c0_i32 = arith.constant 0 : i32
    %c0_i32_0 = arith.constant 0 : i32
    return %arg0, %c0_i32 : i32, i32
  }
  func.func @transform_1(%arg0: i32) -> (i32, i32) {
    %c0_i32 = arith.constant 0 : i32
    %c0_i32_0 = arith.constant 0 : i32
    %c0_i32_1 = arith.constant 0 : i32
    return %c0_i32, %c0_i32_0 : i32, i32
  }
  func.func @transform_2(%arg0: i32) -> (i32, i32) {
    %c0_i32 = arith.constant 0 : i32
    %c0_i32_0 = arith.constant 0 : i32
    %c0_i32_1 = arith.constant 0 : i32
    return %c0_i32, %c0_i32_0 : i32, i32
  }
  func.func @transform_3(%arg0: i32) -> (i32, i32) {
    %c0_i32 = arith.constant 0 : i32
    %c0_i32_0 = arith.constant 0 : i32
    %c0_i32_1 = arith.constant 0 : i32
    return %c0_i32, %c0_i32_0 : i32, i32
  }
  func.func @transform_4(%arg0: i32) -> (i32, i32) {
    %c0_i32 = arith.constant 0 : i32
    %c0_i32_0 = arith.constant 0 : i32
    %c0_i32_1 = arith.constant 0 : i32
    return %c0_i32, %c0_i32_0 : i32, i32
  }
  func.func @transform_5(%arg0: i32) -> (i32, i32) {
    %c0_i32 = arith.constant 0 : i32
    %c0_i32_0 = arith.constant 0 : i32
    return %arg0, %c0_i32 : i32, i32
  }
}

</mosaic_0001>

<llo_original>
// kernel: tpu_custom_call.1
$region0: #{tpu_custom_call.1}
  #allocation0 [shape = 'u32[]', space=smem, size = 0x4, offset = 0x4, fixed_abs, tag = 'smem constant byte address 0x4 - core index']
  #allocation1 [shape = 'u32[144,128]{1,0:T(1,128)}', space=vmem, size = 0x12000, scoped, tag = 'internal scratch']
  #allocation2 [shape = 'bf16[8,512]{1,0:T(8,128)(2,1)}', space=vmem, size = 0x2000, scoped, tag = 'scratch operand']
  %s0 = inlined_call_operand.hbm [shape: bf16[384,128], index: 0, kind: input, shape index: {}]
  %s1 = inlined_call_operand.hbm [shape: bf16[128,1792], index: 1, kind: input, shape index: {}]
  %s2 = inlined_call_operand.vmem [shape: f32[4,128], index: 2, kind: input, shape index: {}]
  %s3 = inlined_call_operand.hbm [shape: bf16[512,128], index: 3, kind: input, shape index: {}]
  %s4 = inlined_call_operand.vmem [shape: f32[1,128], index: 4, kind: input, shape index: {}]
  %s5 = inlined_call_operand.hbm [shape: f32[16,128], index: 5, kind: output, shape index: {}]
  %s6 = sld [smem:[#allocation0]]
  $region65: #{tpu_custom_call.1} parent=0
    _
  %s8 = ssub.s32 1, %s6
  %s9 = scalar_select 0, %s8, %s6
  $region1: #{tpu_custom_call.1} parent=0
    #allocation3 [shape = 'u8[98304]{0}', space=vmem, size = 0x18000, scoped, tag = 'input window, operand 0']
    #allocation4 [shape = 's32[2]{0}', space=sflag, size = 0x8, scoped, tag = 'scoped memory for tpu_custom_call.1']
    #allocation5 [shape = 's32[2]{0}', space=sflag, size = 0x8, scoped, tag = 'scoped memory for tpu_custom_call.1']
    #allocation6 [shape = 'u8[458752]{0}', space=vmem, size = 0x70000, scoped, tag = 'input window, operand 1, single buffered']
    #allocation7 [shape = 's32[1]{0}', space=sflag, size = 0x4, scoped, tag = 'scoped memory for tpu_custom_call.1']
    #allocation8 [shape = 'u8[131072]{0}', space=vmem, size = 0x20000, scoped, tag = 'input window, operand 3, single buffered']
    #allocation9 [shape = 'u8[8192]{0}', space=vmem, size = 0x2000, scoped, tag = 'output window, operand 0']
    %10 = vsyncpa [#allocation4], 0
    %s11 = scalar_lea.sflag [#allocation4], 1
    %12 = vsyncpa %s11, 0
    %13 = vsyncpa [#allocation7], 0
    %14 = vsyncpa [#allocation5], 0
    %s15 = scalar_lea.sflag [#allocation5], 1
    %16 = vsyncpa %s15, 0
    loop: start=0, step=1, limit=4
    $region2: #{tpu_custom_call.1} parent=1 // loop_pre_header
      _
    $region3: #{tpu_custom_call.1} parent=1 // loop_header
      %s18 = sphi 0, %s22
      %p19 = scmp.ge.s32.totalorder %s18, 4
      %s28 = sphi 0, %s30
      %s31 = sphi 0, %s28
      %s32 = sphi 0, %s31
      %s48 = sphi 0, %s32
      %s52 = sphi 0, %s52
      %s54 = sphi 0, %s52
      %s55 = sphi 0, %s54
      %s69 = sphi 0, %s55
      %s73 = sphi 0, %s73
      %s75 = sphi 0, %s73
      %s76 = sphi 0, %s75
      %s90 = sphi 0, %s76
      %s94 = sphi 0, %s94
      %s96 = sphi 0, %s94
      %s97 = sphi 0, %s96
      %s111 = sphi 0, %s97
      %s115 = sphi 0, %s115
      %s117 = sphi 0, %s115
      %s118 = sphi 0, %s117
      %s132 = sphi 0, %s118
      %s138 = sphi 0, %s140
      %s141 = sphi 0, %s138
      %s142 = sphi 0, %s141
      %s158 = sphi 0, %s142
    $region4: #{tpu_custom_call.1} parent=1 // loop_header_branch
      %21 = sbr.rel (%p19) target = $region8
    $region5: #{tpu_custom_call.1} parent=1 // loop_body
      %s23 = ssub.s32 %s18, 1
      %s24 = ssub.s32 %s18, 2
      %s25 = sadd.s32 %s18, 1
      %s26 = ssub.s32 %s18, %s25
      %p27 = scmp.eq.s32.totalorder %s26, 0
      %s29 = sadd.s32 %s28, 1
      %s30 = scalar_select %p27, %s28, %s29
      %p33 = pneg %p27
      %p34 = scmp.eq.s32.totalorder %s18, 1
      %p35 = por %p33, %p34
      %p36 = scmp.ne.s32.totalorder %s28, %s31
      %p37 = scmp.eq.s32.totalorder %s18, 0
      %p38 = por %p36, %p37
      %p39 = scmp.ne.s32.totalorder %s28, %s31
      %p40 = scmp.eq.s32.totalorder %s23, 1
      %p41 = por %p39, %p40
      %p42 = scmp.ne.s32.totalorder %s31, %s32
      %p43 = scmp.eq.s32.totalorder %s23, 0
      %p44 = por %p42, %p43
      %p45 = scmp.ne.s32.totalorder %s31, %s32
      %p46 = scmp.eq.s32.totalorder %s24, 1
      %p47 = por %p45, %p46
      %p49 = scmp.ne.s32.totalorder %s32, %s48
      %p50 = scmp.eq.s32.totalorder %s24, 0
      %p51 = por %p49, %p50
      %s53 = sadd.s32 %s52, 1
      %p56 = scmp.eq.s32.totalorder %s18, 1
      %p57 = scmp.ne.s32.totalorder %s52, %s54
      %p58 = scmp.eq.s32.totalorder %s18, 0
      %p59 = por %p57, %p58
      %p60 = scmp.ne.s32.totalorder %s52, %s54
      %p61 = scmp.eq.s32.totalorder %s23, 1
      %p62 = por %p60, %p61
      %p63 = scmp.ne.s32.totalorder %s54, %s55
      %p64 = scmp.eq.s32.totalorder %s23, 0
      %p65 = por %p63, %p64
      %p66 = scmp.ne.s32.totalorder %s54, %s55
      %p67 = scmp.eq.s32.totalorder %s24, 1
      %p68 = por %p66, %p67
      %p70 = scmp.ne.s32.totalorder %s55, %s69
      %p71 = scmp.eq.s32.totalorder %s24, 0
      %p72 = por %p70, %p71
      %s74 = sadd.s32 %s73, 1
      %p77 = scmp.eq.s32.totalorder %s18, 1
      %p78 = scmp.ne.s32.totalorder %s73, %s75
      %p79 = scmp.eq.s32.totalorder %s18, 0
      %p80 = por %p78, %p79
      %p81 = scmp.ne.s32.totalorder %s73, %s75
      %p82 = scmp.eq.s32.totalorder %s23, 1
      %p83 = por %p81, %p82
      %p84 = scmp.ne.s32.totalorder %s75, %s76
      %p85 = scmp.eq.s32.totalorder %s23, 0
      %p86 = por %p84, %p85
      %p87 = scmp.ne.s32.totalorder %s75, %s76
      %p88 = scmp.eq.s32.totalorder %s24, 1
      %p89 = por %p87, %p88
      %p91 = scmp.ne.s32.totalorder %s76, %s90
      %p92 = scmp.eq.s32.totalorder %s24, 0
      %p93 = por %p91, %p92
      %s95 = sadd.s32 %s94, 1
      %p98 = scmp.eq.s32.totalorder %s18, 1
      %p99 = scmp.ne.s32.totalorder %s94, %s96
      %p100 = scmp.eq.s32.totalorder %s18, 0
      %p101 = por %p99, %p100
      %p102 = scmp.ne.s32.totalorder %s94, %s96
      %p103 = scmp.eq.s32.totalorder %s23, 1
      %p104 = por %p102, %p103
      %p105 = scmp.ne.s32.totalorder %s96, %s97
      %p106 = scmp.eq.s32.totalorder %s23, 0
      %p107 = por %p105, %p106
      %p108 = scmp.ne.s32.totalorder %s96, %s97
      %p109 = scmp.eq.s32.totalorder %s24, 1
      %p110 = por %p108, %p109
      %p112 = scmp.ne.s32.totalorder %s97, %s111
      %p113 = scmp.eq.s32.totalorder %s24, 0
      %p114 = por %p112, %p113
      %s116 = sadd.s32 %s115, 1
      %p119 = scmp.eq.s32.totalorder %s18, 1
      %p120 = scmp.ne.s32.totalorder %s115, %s117
      %p121 = scmp.eq.s32.totalorder %s18, 0
      %p122 = por %p120, %p121
      %p123 = scmp.ne.s32.totalorder %s115, %s117
      %p124 = scmp.eq.s32.totalorder %s23, 1
      %p125 = por %p123, %p124
      %p126 = scmp.ne.s32.totalorder %s117, %s118
      %p127 = scmp.eq.s32.totalorder %s23, 0
      %p128 = por %p126, %p127
      %p129 = scmp.ne.s32.totalorder %s117, %s118
      %p130 = scmp.eq.s32.totalorder %s24, 1
      %p131 = por %p129, %p130
      %p133 = scmp.ne.s32.totalorder %s118, %s132
      %p134 = scmp.eq.s32.totalorder %s24, 0
      %p135 = por %p133, %p134
      %s136 = ssub.s32 %s18, %s25
      %p137 = scmp.eq.s32.totalorder %s136, 0
      %s139 = sadd.s32 %s138, 1
      %s140 = scalar_select %p137, %s138, %s139
      %p143 = pneg %p137
      %p144 = scmp.eq.s32.totalorder %s18, 1
      %p145 = por %p143, %p144
      %p146 = scmp.ne.s32.totalorder %s138, %s141
      %p147 = scmp.eq.s32.totalorder %s18, 0
      %p148 = por %p146, %p147
      %p149 = scmp.ne.s32.totalorder %s138, %s141
      %p150 = scmp.eq.s32.totalorder %s23, 1
      %p151 = por %p149, %p150
      %p152 = scmp.ne.s32.totalorder %s141, %s142
      %p153 = scmp.eq.s32.totalorder %s23, 0
      %p154 = por %p152, %p153
      %p155 = scmp.ne.s32.totalorder %s141, %s142
      %p156 = scmp.eq.s32.totalorder %s24, 1
      %p157 = por %p155, %p156
      %p159 = scmp.ne.s32.totalorder %s142, %s158
      %p160 = scmp.eq.s32.totalorder %s24, 0
      %p161 = por %p159, %p160
      %p162 = scmp.le.s32.totalorder 1, %s18
      %p163 = scmp.lt.s32.totalorder %s18, 3
      %p164 = pnand %p162, %p163
      %p165 = pneg %p164
      // Predicated region
      $region9: #{tpu_custom_call.1} parent=5 // pred_check
        _
      $region10: #{tpu_custom_call.1} parent=5 // pred_check_branch
        %167 = sbr.rel (%p164) target = $region12
      $region11: #{tpu_custom_call.1} parent=5 // pred_region
        %s168 = ssub.s32 %s18, 1
        // Predicated region
        $region13: #{tpu_custom_call.1} parent=11 // pred_check
          %p169 = pneg %p65
        $region14: #{tpu_custom_call.1} parent=11 // pred_check_branch
          %171 = sbr.rel (%p169) target = $region16
        $region15: #{tpu_custom_call.1} parent=11 // pred_region
          %s173 = ssub.s32 14336, 14336
          %174 = vsyncadd [#allocation7], %s173
          %s175 = sshll.u32 [#allocation6], 4
          %s176 = int_to_ptr.vmem [resolvable:$true] %s175
          %181 = dma.hbm_to_vmem [thread:$0]  %s1, 14336, %s176, [#allocation7], 896, 896, 56
        $region16: #{tpu_custom_call.1} parent=11 // pred_fallthru
          _
        // Predicated region
        $region17: #{tpu_custom_call.1} parent=11 // pred_check
          %p182 = pneg %p86
        $region18: #{tpu_custom_call.1} parent=11 // pred_check_branch
          %184 = sbr.rel (%p182) target = $region20
        $region19: #{tpu_custom_call.1} parent=11 // pred_region
          _
        $region20: #{tpu_custom_call.1} parent=11 // pred_fallthru
          _
        // Predicated region
        $region21: #{tpu_custom_call.1} parent=11 // pred_check
          %p185 = pneg %p107
        $region22: #{tpu_custom_call.1} parent=11 // pred_check_branch
          %187 = sbr.rel (%p185) target = $region24
        $region23: #{tpu_custom_call.1} parent=11 // pred_region
          %s189 = ssub.s32 4096, 4096
          %190 = vsyncadd [#allocation7], %s189
          %s191 = sshll.u32 [#allocation8], 4
          %s192 = int_to_ptr.vmem [resolvable:$true] %s191
          %197 = dma.hbm_to_vmem [thread:$0]  %s3, 4096, %s192, [#allocation7], 64, 64, 4
        $region24: #{tpu_custom_call.1} parent=11 // pred_fallthru
          _
        // Predicated region
        $region25: #{tpu_custom_call.1} parent=11 // pred_check
          %p198 = pneg %p128
        $region26: #{tpu_custom_call.1} parent=11 // pred_check_branch
          %200 = sbr.rel (%p198) target = $region28
        $region27: #{tpu_custom_call.1} parent=11 // pred_region
          _
        $region28: #{tpu_custom_call.1} parent=11 // pred_fallthru
          _
      $region12: #{tpu_custom_call.1} parent=5 // pred_fallthru
        _
      %p201 = scmp.lt.s32.totalorder %s18, 2
      // Predicated region
      $region29: #{tpu_custom_call.1} parent=5 // pred_check
        %p202 = pneg %p201
      $region30: #{tpu_custom_call.1} parent=5 // pred_check_branch
        %204 = sbr.rel (%p202) target = $region32
      $region31: #{tpu_custom_call.1} parent=5 // pred_region
        // Predicated region
        $region33: #{tpu_custom_call.1} parent=31 // pred_check
          %p205 = pneg %p38
        $region34: #{tpu_custom_call.1} parent=31 // pred_check_branch
          %207 = sbr.rel (%p205) target = $region36
        $region35: #{tpu_custom_call.1} parent=31 // pred_region
          %s208 = sand.u32 %s28, 1
          %s209 = scalar_lea.sflag [#allocation4], %s208
          %s210 = sand.u32 %s28, 1
          %s211 = smul.addr %s210, 96
          %s212 = scalar_lea.vmem [#allocation3], %s211
          %s213 = smul.u32 24, %s18
          %s215 = ssub.s32 1536, 1536
          %216 = vsyncadd %s209, %s215
          %s217 = smul.addr %s213, 64
          %s218 = scalar_lea.hbm %s0, %s217
          %s219 = sshll.u32 %s212, 4
          %s220 = int_to_ptr.vmem [resolvable:$true] %s219
          %225 = dma.hbm_to_vmem [thread:$0]  %s218, 1536, %s220, %s209, 64, 64, 4
        $region36: #{tpu_custom_call.1} parent=31 // pred_fallthru
          _
      $region32: #{tpu_custom_call.1} parent=5 // pred_fallthru
        _
      %p226 = scmp.le.s32.totalorder 1, %s18
      %p227 = scmp.lt.s32.totalorder %s18, 3
      %p228 = pnand %p226, %p227
      %p229 = pneg %p228
      // Predicated region
      $region37: #{tpu_custom_call.1} parent=5 // pred_check
        _
      $region38: #{tpu_custom_call.1} parent=5 // pred_check_branch
        %231 = sbr.rel (%p228) target = $region40
      $region39: #{tpu_custom_call.1} parent=5 // pred_region
        %s232 = ssub.s32 %s18, 1
        %s233 = sand.u32 %s31, 1
        %s234 = scalar_lea.sflag [#allocation4], %s233
        %s235 = sand.u32 %s31, 1
        %s236 = smul.addr %s235, 96
        %s237 = scalar_lea.vmem [#allocation3], %s236
        // Predicated region
        $region41: #{tpu_custom_call.1} parent=39 // pred_check
          %p238 = pneg %p44
        $region42: #{tpu_custom_call.1} parent=39 // pred_check_branch
          %240 = sbr.rel (%p238) target = $region44
        $region43: #{tpu_custom_call.1} parent=39 // pred_region
          %241 = dma.done %s234, 1536
        $region44: #{tpu_custom_call.1} parent=39 // pred_fallthru
          _
        // Predicated region
        $region45: #{tpu_custom_call.1} parent=39 // pred_check
          %p242 = pneg %p65
        $region46: #{tpu_custom_call.1} parent=39 // pred_check_branch
          %244 = sbr.rel (%p242) target = $region48
        $region47: #{tpu_custom_call.1} parent=39 // pred_region
          %245 = dma.done [#allocation7], 14336
        $region48: #{tpu_custom_call.1} parent=39 // pred_fallthru
          _
        // Predicated region
        $region49: #{tpu_custom_call.1} parent=39 // pred_check
          %p246 = pneg %p107
        $region50: #{tpu_custom_call.1} parent=39 // pred_check_branch
          %248 = sbr.rel (%p246) target = $region52
        $region51: #{tpu_custom_call.1} parent=39 // pred_region
          %249 = dma.done [#allocation7], 4096
        $region52: #{tpu_custom_call.1} parent=39 // pred_fallthru
          _
        %s250 = sand.u32 %s31, 1
        %s251 = scalar_lea.sflag [#allocation4], %s250
        %s252 = sand.u32 %s31, 1
        %s253 = smul.addr %s252, 96
        %s254 = scalar_lea.vmem [#allocation3], %s253
        %p255 = pneg %p44
        %p256 = pneg %p41
        %p257 = pneg %p65
        %p258 = pneg %p62
        %p259 = pneg %p86
        %p260 = pneg %p83
        %p261 = pneg %p107
        %p262 = pneg %p104
        %p263 = pneg %p128
        %p264 = pneg %p125
        %p265 = pneg %p154
        %p266 = pneg %p151
        %s267 = sand.u32 %s141, 1
        %s268 = scalar_lea.sflag [#allocation5], %s267
        %s269 = sand.u32 %s141, 1
        %s270 = smul.addr %s269, 8
        %s271 = scalar_lea.vmem [#allocation9], %s270
        %s272 = smul.u32 24, %s23
        %v274 = vld [vmem:[%s237] sm:$0xf]
        %v275 = vld [vmem:[%s237 + $0x4] sm:$0xf]
        %v276 = vld [vmem:[%s237 + $0x8] sm:$0xf]
        %v277 = vld [vmem:[%s237 + $0xc] sm:$0xf]
        %v278 = vld [vmem:[%s237 + $0x10] sm:$0xf]
        %v279 = vld [vmem:[%s237 + $0x14] sm:$0xf]
        %v280 = vld [vmem:[%s237 + $0x18] sm:$0xf]
        %v281 = vld [vmem:[%s237 + $0x1c] sm:$0xf]
        %v282 = vld [vmem:[%s237 + $0x20] sm:$0xf]
        %v283 = vld [vmem:[%s237 + $0x24] sm:$0xf]
        %v284 = vld [vmem:[%s237 + $0x28] sm:$0xf]
        %v285 = vld [vmem:[%s237 + $0x2c] sm:$0xf]
        %v286 = vld [vmem:[%s237 + $0x30] sm:$0xf]
        %v287 = vld [vmem:[%s237 + $0x34] sm:$0xf]
        %v288 = vld [vmem:[%s237 + $0x38] sm:$0xf]
        %v289 = vld [vmem:[%s237 + $0x3c] sm:$0xf]
        %v290 = vld [vmem:[%s237 + $0x40] sm:$0xf]
        %v291 = vld [vmem:[%s237 + $0x44] sm:$0xf]
        %v292 = vld [vmem:[%s237 + $0x48] sm:$0xf]
        %v293 = vld [vmem:[%s237 + $0x4c] sm:$0xf]
        %v294 = vld [vmem:[%s237 + $0x50] sm:$0xf]
        %v295 = vld [vmem:[%s237 + $0x54] sm:$0xf]
        %v296 = vld [vmem:[%s237 + $0x58] sm:$0xf]
        %v297 = vld [vmem:[%s237 + $0x5c] sm:$0xf]
        %v298 = vld [vmem:[#allocation6] sm:$0xff]
        %v299 = vld [vmem:[#allocation6 + $0x38] sm:$0xff]
        %v300 = vld [vmem:[#allocation6 + $0x70] sm:$0xff]
        %v301 = vld [vmem:[#allocation6 + $0xa8] sm:$0xff]
        %v302 = vld [vmem:[#allocation6 + $0xe0] sm:$0xff]
        %v303 = vld [vmem:[#allocation6 + $0x118] sm:$0xff]
        %v304 = vld [vmem:[#allocation6 + $0x150] sm:$0xff]
        %v305 = vld [vmem:[#allocation6 + $0x188] sm:$0xff]
        %v306 = vld [vmem:[#allocation6 + $0x1c0] sm:$0xff]
        %v307 = vld [vmem:[#allocation6 + $0x1f8] sm:$0xff]
        %v308 = vld [vmem:[#allocation6 + $0x230] sm:$0xff]
        %v309 = vld [vmem:[#allocation6 + $0x268] sm:$0xff]
        %v310 = vld [vmem:[#allocation6 + $0x2a0] sm:$0xff]
        %v311 = vld [vmem:[#allocation6 + $0x2d8] sm:$0xff]
        %v312 = vld [vmem:[#allocation6 + $0x310] sm:$0xff]
        %v313 = vld [vmem:[#allocation6 + $0x348] sm:$0xff]
        %v338 = vunpack.c.l.b16 %v274
        %v339 = vunpack.c.l.b16 %v275
        %v340 = vunpack.c.l.b16 %v276
        %v341 = vunpack.c.l.b16 %v277
        %v342 = vunpack.c.l.b16 %v278
        %v343 = vunpack.c.l.b16 %v279
        %v344 = vunpack.c.l.b16 %v280
        %v345 = vunpack.c.l.b16 %v281
        %v346 = vunpack.c.l.b16 %v282
        %v347 = vunpack.c.l.b16 %v283
        %v348 = vunpack.c.l.b16 %v284
        %v349 = vunpack.c.l.b16 %v285
        %v350 = vunpack.c.l.b16 %v286
        %v351 = vunpack.c.l.b16 %v287
        %v352 = vunpack.c.l.b16 %v288
        %v353 = vunpack.c.l.b16 %v289
        %v354 = vunpack.c.l.b16 %v290
        %v355 = vunpack.c.l.b16 %v291
        %v356 = vunpack.c.l.b16 %v292
        %v357 = vunpack.c.l.b16 %v293
        %v358 = vunpack.c.l.b16 %v294
        %v359 = vunpack.c.l.b16 %v295
        %v360 = vunpack.c.l.b16 %v296
        %v361 = vunpack.c.l.b16 %v297
        %v362 = vpack.c.b16 %v339, %v338
        %v363 = vpack.c.b16 %v341, %v340
        %v364 = vpack.c.b16 %v343, %v342
        %v365 = vpack.c.b16 %v345, %v344
        %v366 = vpack.c.b16 %v347, %v346
        %v367 = vpack.c.b16 %v349, %v348
        %v368 = vpack.c.b16 %v351, %v350
        %v369 = vpack.c.b16 %v353, %v352
        %v370 = vpack.c.b16 %v355, %v354
        %v371 = vpack.c.b16 %v357, %v356
        %v372 = vpack.c.b16 %v359, %v358
        %v373 = vpack.c.b16 %v361, %v360
        %v402 = vunpack.c.l.b16 %v298
        %v403 = vunpack.c.h.b16 %v298
        %v404 = vunpack.c.l.b16 %v299
        %v405 = vunpack.c.h.b16 %v299
        %v406 = vunpack.c.l.b16 %v300
        %v407 = vunpack.c.h.b16 %v300
        %v408 = vunpack.c.l.b16 %v301
        %v409 = vunpack.c.h.b16 %v301
        %v410 = vunpack.c.l.b16 %v302
        %v411 = vunpack.c.h.b16 %v302
        %v412 = vunpack.c.l.b16 %v303
        %v413 = vunpack.c.h.b16 %v303
        %v414 = vunpack.c.l.b16 %v304
        %v415 = vunpack.c.h.b16 %v304
        %v416 = vunpack.c.l.b16 %v305
        %v417 = vunpack.c.h.b16 %v305
        %v418 = vunpack.c.l.b16 %v306
        %v419 = vunpack.c.h.b16 %v306
        %v420 = vunpack.c.l.b16 %v307
        %v421 = vunpack.c.h.b16 %v307
        %v422 = vunpack.c.l.b16 %v308
        %v423 = vunpack.c.h.b16 %v308
        %v424 = vunpack.c.l.b16 %v309
        %v425 = vunpack.c.h.b16 %v309
        %v426 = vunpack.c.l.b16 %v310
        %v427 = vunpack.c.h.b16 %v310
        %v428 = vunpack.c.l.b16 %v311
        %v429 = vunpack.c.h.b16 %v311
        %v430 = vunpack.c.l.b16 %v312
        %v431 = vunpack.c.h.b16 %v312
        %v432 = vunpack.c.l.b16 %v313
        %v433 = vunpack.c.h.b16 %v313
        %v434 = vpack.c.b16 %v404, %v402
        %v435 = vpack.c.b16 %v405, %v403
        %v436 = vpack.c.b16 %v408, %v406
        %v437 = vpack.c.b16 %v409, %v407
        %v438 = vpack.c.b16 %v412, %v410
        %v439 = vpack.c.b16 %v413, %v411
        %v440 = vpack.c.b16 %v416, %v414
        %v441 = vpack.c.b16 %v417, %v415
        %v442 = vpack.c.b16 %v420, %v418
        %v443 = vpack.c.b16 %v421, %v419
        %v444 = vpack.c.b16 %v424, %v422
        %v445 = vpack.c.b16 %v425, %v423
        %v446 = vpack.c.b16 %v428, %v426
        %v447 = vpack.c.b16 %v429, %v427
        %v448 = vpack.c.b16 %v432, %v430
        %v449 = vpack.c.b16 %v433, %v431
        %466 = vmatprep.subr.bf16.mxu0 %v435
        %467 = vmatpush1.bf16.msra.mxu0 %v434
        %468 = vmatprep.subr.bf16.mxu0 %v437
        %469 = vmatpush1.bf16.msra.mxu0 %v436
        %470 = vmatprep.subr.bf16.mxu0 %v439
        %471 = vmatpush1.bf16.msra.mxu0 %v438
        %472 = vmatprep.subr.bf16.mxu0 %v441
        %473 = vmatpush1.bf16.msra.mxu0 %v440
        %474 = vmatprep.subr.bf16.mxu0 %v443
        %475 = vmatpush1.bf16.msra.mxu0 %v442
        %476 = vmatprep.subr.bf16.mxu0 %v445
        %477 = vmatpush1.bf16.msra.mxu0 %v444
        %478 = vmatprep.subr.bf16.mxu0 %v447
        %479 = vmatpush1.bf16.msra.mxu0 %v446
        %480 = vmatprep.subr.bf16.mxu0 %v449
        %481 = vmatpush1.bf16.msra.mxu0 %v448
        %482 = vmatprep.subr.bf16.mxu0 0
        %483 = vmatpush1.bf16.msra.mxu0 0
        %484 = vmatprep.subr.bf16.mxu0 0
        %485 = vmatpush1.bf16.msra.mxu0 0
        %486 = vmatprep.subr.bf16.mxu0 0
        %487 = vmatpush1.bf16.msra.mxu0 0
        %488 = vmatprep.subr.bf16.mxu0 0
        %489 = vmatpush1.bf16.msra.mxu0 0
        %490 = vmatprep.subr.bf16.mxu0 0
        %491 = vmatpush1.bf16.msra.mxu0 0
        %492 = vmatprep.subr.bf16.mxu0 0
        %493 = vmatpush1.bf16.msra.mxu0 0
        %494 = vmatprep.subr.bf16.mxu0 0
        %495 = vmatpush1.bf16.msra.mxu0 0
        %496 = vmatprep.subr.bf16.mxu0 0
        %497 = vmatpush1.bf16.msra.mxu0 0
        %498 = vmatprep.mubr.bf16.mxu0 0
        %499 = vmatmul.mubr.bf16.gmra.mrb[0].mxu0 %v362
        %v500 = vpop.f32.mrb[0].mxu0
        %v501 = vadd.f32 0.0, %v500
        %v502 = vpop.f32.mrb[0].mxu0
        %v503 = vadd.f32 0.0, %v502
        %v504 = vpop.f32.mrb[0].mxu0
        %v505 = vadd.f32 0.0, %v504
        %v506 = vpop.f32.mrb[0].mxu0
        %v507 = vadd.f32 0.0, %v506
        %508 = vmatprep.mubr.bf16.mxu0 0
        %509 = vmatmul.mubr.bf16.gmra.mrb[0].mxu0 %v363
        %v510 = vpop.f32.mrb[0].mxu0
        %v511 = vadd.f32 0.0, %v510
        %v512 = vpop.f32.mrb[0].mxu0
        %v513 = vadd.f32 0.0, %v512
        %v514 = vpop.f32.mrb[0].mxu0
        %v515 = vadd.f32 0.0, %v514
        %v516 = vpop.f32.mrb[0].mxu0
        %v517 = vadd.f32 0.0, %v516
        %518 = vmatprep.mubr.bf16.mxu0 0
        %519 = vmatmul.mubr.bf16.gmra.mrb[0].mxu0 %v364
        %v520 = vpop.f32.mrb[0].mxu0
        %v521 = vadd.f32 0.0, %v520
        %v522 = vpop.f32.mrb[0].mxu0
        %v523 = vadd.f32 0.0, %v522
        %v524 = vpop.f32.mrb[0].mxu0
        %v525 = vadd.f32 0.0, %v524
        %v526 = vpop.f32.mrb[0].mxu0
        %v527 = vadd.f32 0.0, %v526
        %528 = vmatprep.mubr.bf16.mxu0 0
        %529 = vmatmul.mubr.bf16.gmra.mrb[0].mxu0 %v365
        %v530 = vpop.f32.mrb[0].mxu0
        %v531 = vadd.f32 0.0, %v530
        %v532 = vpop.f32.mrb[0].mxu0
        %v533 = vadd.f32 0.0, %v532
        %v534 = vpop.f32.mrb[0].mxu0
        %v535 = vadd.f32 0.0, %v534
        %v536 = vpop.f32.mrb[0].mxu0
        %v537 = vadd.f32 0.0, %v536
        %538 = vmatprep.mubr.bf16.mxu0 0
        %539 = vmatmul.mubr.bf16.gmra.mrb[0].mxu0 %v366
        %v540 = vpop.f32.mrb[0].mxu0
        %v541 = vadd.f32 0.0, %v540
        %v542 = vpop.f32.mrb[0].mxu0
        %v543 = vadd.f32 0.0, %v542
        %v544 = vpop.f32.mrb[0].mxu0
        %v545 = vadd.f32 0.0, %v544
        %v546 = vpop.f32.mrb[0].mxu0
        %v547 = vadd.f32 0.0, %v546
        %548 = vmatprep.mubr.bf16.mxu0 0
        %549 = vmatmul.mubr.bf16.gmra.mrb[0].mxu0 %v367
        %v550 = vpop.f32.mrb[0].mxu0
        %v551 = vadd.f32 0.0, %v550
        %v552 = vpop.f32.mrb[0].mxu0
        %v553 = vadd.f32 0.0, %v552
        %v554 = vpop.f32.mrb[0].mxu0
        %v555 = vadd.f32 0.0, %v554
        %v556 = vpop.f32.mrb[0].mxu0
        %v557 = vadd.f32 0.0, %v556
        %558 = vmatprep.mubr.bf16.mxu0 0
        %559 = vmatmul.mubr.bf16.gmra.mrb[0].mxu0 %v368
        %v560 = vpop.f32.mrb[0].mxu0
        %v561 = vadd.f32 0.0, %v560
        %v562 = vpop.f32.mrb[0].mxu0
        %v563 = vadd.f32 0.0, %v562
        %v564 = vpop.f32.mrb[0].mxu0
        %v565 = vadd.f32 0.0, %v564
        %v566 = vpop.f32.mrb[0].mxu0
        %v567 = vadd.f32 0.0, %v566
        %568 = vmatprep.mubr.bf16.mxu0 0
        %569 = vmatmul.mubr.bf16.gmra.mrb[0].mxu0 %v369
        %v570 = vpop.f32.mrb[0].mxu0
        %v571 = vadd.f32 0.0, %v570
        %v572 = vpop.f32.mrb[0].mxu0
        %v573 = vadd.f32 0.0, %v572
        %v574 = vpop.f32.mrb[0].mxu0
        %v575 = vadd.f32 0.0, %v574
        %v576 = vpop.f32.mrb[0].mxu0
        %v577 = vadd.f32 0.0, %v576
        %578 = vmatprep.mubr.bf16.mxu0 0
        %579 = vmatmul.mubr.bf16.gmra.mrb[0].mxu0 %v370
        %v580 = vpop.f32.mrb[0].mxu0
        %v581 = vadd.f32 0.0, %v580
        %v582 = vpop.f32.mrb[0].mxu0
        %v583 = vadd.f32 0.0, %v582
        %v584 = vpop.f32.mrb[0].mxu0
        %v585 = vadd.f32 0.0, %v584
        %v586 = vpop.f32.mrb[0].mxu0
        %v587 = vadd.f32 0.0, %v586
        %588 = vmatprep.mubr.bf16.mxu0 0
        %589 = vmatmul.mubr.bf16.gmra.mrb[0].mxu0 %v371
        %v590 = vpop.f32.mrb[0].mxu0
        %v591 = vadd.f32 0.0, %v590
        %v592 = vpop.f32.mrb[0].mxu0
        %v593 = vadd.f32 0.0, %v592
        %v594 = vpop.f32.mrb[0].mxu0
        %v595 = vadd.f32 0.0, %v594
        %v596 = vpop.f32.mrb[0].mxu0
        %v597 = vadd.f32 0.0, %v596
        %598 = vmatprep.mubr.bf16.mxu0 0
        %599 = vmatmul.mubr.bf16.gmra.mrb[0].mxu0 %v372
        %v600 = vpop.f32.mrb[0].mxu0
        %v601 = vadd.f32 0.0, %v600
        %v602 = vpop.f32.mrb[0].mxu0
        %v603 = vadd.f32 0.0, %v602
        %v604 = vpop.f32.mrb[0].mxu0
        %v605 = vadd.f32 0.0, %v604
        %v606 = vpop.f32.mrb[0].mxu0
        %v607 = vadd.f32 0.0, %v606
        %608 = vmatprep.mubr.bf16.mxu0 0
        %609 = vmatmul.mubr.bf16.gmra.mrb[0].mxu0 %v373
        %v610 = vpop.f32.mrb[0].mxu0
        %v611 = vadd.f32 0.0, %v610
        %v612 = vpop.f32.mrb[0].mxu0
        %v613 = vadd.f32 0.0, %v612
        %v614 = vpop.f32.mrb[0].mxu0
        %v615 = vadd.f32 0.0, %v614
        %v616 = vpop.f32.mrb[0].mxu0
        %v617 = vadd.f32 0.0, %v616
        %618 = vdwg.mxu0
        %vm643 = vcmask 1046528
        %v644 = vrot.slane %v503, 1
        %v645 = vrot.slane %v507, 1
        %v646 = vsel %vm643, %v644, %v645
        %v647 = vrot.slane %v513, 1
        %v648 = vsel %vm643, %v645, %v647
        %v649 = vrot.slane %v517, 1
        %v650 = vrot.slane %v523, 1
        %v651 = vsel %vm643, %v649, %v650
        %v652 = vrot.slane %v527, 1
        %v653 = vsel %vm643, %v650, %v652
        %v654 = vrot.slane %v533, 1
        %v655 = vrot.slane %v537, 1
        %v656 = vsel %vm643, %v654, %v655
        %v657 = vrot.slane %v543, 1
        %v658 = vsel %vm643, %v655, %v657
        %v659 = vrot.slane %v547, 1
        %v660 = vrot.slane %v553, 1
        %v661 = vsel %vm643, %v659, %v660
        %v662 = vrot.slane %v557, 1
        %v663 = vsel %vm643, %v660, %v662
        %v664 = vrot.slane %v563, 1
        %v665 = vrot.slane %v567, 1
        %v666 = vsel %vm643, %v664, %v665
        %v667 = vrot.slane %v573, 1
        %v668 = vsel %vm643, %v665, %v667
        %v669 = vrot.slane %v577, 1
        %v670 = vrot.slane %v583, 1
        %v671 = vsel %vm643, %v669, %v670
        %v672 = vrot.slane %v587, 1
        %v673 = vsel %vm643, %v670, %v672
        %v674 = vrot.slane %v593, 1
        %v675 = vrot.slane %v597, 1
        %v676 = vsel %vm643, %v674, %v675
        %v677 = vrot.slane %v603, 1
        %v678 = vsel %vm643, %v675, %v677
        %v679 = vrot.slane %v607, 1
        %v680 = vrot.slane %v613, 1
        %v681 = vsel %vm643, %v679, %v680
        %v682 = vrot.slane %v617, 1
        %v683 = vsel %vm643, %v680, %v682
        %v708 = vadd.f32 %v501, %v646
        %v709 = vadd.f32 %v505, %v648
        %v710 = vadd.f32 %v511, %v647
        %v711 = vadd.f32 %v515, %v651
        %v712 = vadd.f32 %v521, %v653
        %v713 = vadd.f32 %v525, %v652
        %v714 = vadd.f32 %v531, %v656
        %v715 = vadd.f32 %v535, %v658
        %v716 = vadd.f32 %v541, %v657
        %v717 = vadd.f32 %v545, %v661
        %v718 = vadd.f32 %v551, %v663
        %v719 = vadd.f32 %v555, %v662
        %v720 = vadd.f32 %v561, %v666
        %v721 = vadd.f32 %v565, %v668
        %v722 = vadd.f32 %v571, %v667
        %v723 = vadd.f32 %v575, %v671
        %v724 = vadd.f32 %v581, %v673
        %v725 = vadd.f32 %v585, %v672
        %v726 = vadd.f32 %v591, %v676
        %v727 = vadd.f32 %v595, %v678
        %v728 = vadd.f32 %v601, %v677
        %v729 = vadd.f32 %v605, %v681
        %v730 = vadd.f32 %v611, %v683
        %v731 = vadd.f32 %v615, %v682
        %vm732 = vcmask 1047555
        %v733 = vsel %vm732, %v708, -inf
        %v734 = vmax.f32 %v733, %v709
        %vm735 = vcmask 1043456
        %v736 = vsel %vm735, %v710, -inf
        %v737 = vmax.f32 %v734, %v736
        %v738 = vrot.slane %v737, 4
        %v739 = vmax.f32 %v737, %v738
        %v740 = vrot.slane %v739, 2
        %v741 = vmax.f32 %v739, %v740
        %v742 = vrot.slane %v741, 1
        %v743 = vmax.f32 %v741, %v742
        %v744 = vsel %vm732, %v711, -inf
        %v745 = vmax.f32 %v744, %v712
        %v746 = vsel %vm735, %v713, -inf
        %v747 = vmax.f32 %v745, %v746
        %v748 = vrot.slane %v747, 4
        %v749 = vmax.f32 %v747, %v748
        %v750 = vrot.slane %v749, 2
        %v751 = vmax.f32 %v749, %v750
        %v752 = vrot.slane %v751, 1
        %v753 = vmax.f32 %v751, %v752
        %v754 = vsel %vm732, %v714, -inf
        %v755 = vmax.f32 %v754, %v715
        %v756 = vsel %vm735, %v716, -inf
        %v757 = vmax.f32 %v755, %v756
        %v758 = vrot.slane %v757, 4
        %v759 = vmax.f32 %v757, %v758
        %v760 = vrot.slane %v759, 2
        %v761 = vmax.f32 %v759, %v760
        %v762 = vrot.slane %v761, 1
        %v763 = vmax.f32 %v761, %v762
        %v764 = vsel %vm732, %v717, -inf
        %v765 = vmax.f32 %v764, %v718
        %v766 = vsel %vm735, %v719, -inf
        %v767 = vmax.f32 %v765, %v766
        %v768 = vrot.slane %v767, 4
        %v769 = vmax.f32 %v767, %v768
        %v770 = vrot.slane %v769, 2
        %v771 = vmax.f32 %v769, %v770
        %v772 = vrot.slane %v771, 1
        %v773 = vmax.f32 %v771, %v772
        %v774 = vsel %vm732, %v720, -inf
        %v775 = vmax.f32 %v774, %v721
        %v776 = vsel %vm735, %v722, -inf
        %v777 = vmax.f32 %v775, %v776
        %v778 = vrot.slane %v777, 4
        %v779 = vmax.f32 %v777, %v778
        %v780 = vrot.slane %v779, 2
        %v781 = vmax.f32 %v779, %v780
        %v782 = vrot.slane %v781, 1
        %v783 = vmax.f32 %v781, %v782
        %v784 = vsel %vm732, %v723, -inf
        %v785 = vmax.f32 %v784, %v724
        %v786 = vsel %vm735, %v725, -inf
        %v787 = vmax.f32 %v785, %v786
        %v788 = vrot.slane %v787, 4
        %v789 = vmax.f32 %v787, %v788
        %v790 = vrot.slane %v789, 2
        %v791 = vmax.f32 %v789, %v790
        %v792 = vrot.slane %v791, 1
        %v793 = vmax.f32 %v791, %v792
        %v794 = vsel %vm732, %v726, -inf
        %v795 = vmax.f32 %v794, %v727
        %v796 = vsel %vm735, %v728, -inf
        %v797 = vmax.f32 %v795, %v796
        %v798 = vrot.slane %v797, 4
        %v799 = vmax.f32 %v797, %v798
        %v800 = vrot.slane %v799, 2
        %v801 = vmax.f32 %v799, %v800
        %v802 = vrot.slane %v801, 1
        %v803 = vmax.f32 %v801, %v802
        %v804 = vsel %vm732, %v729, -inf
        %v805 = vmax.f32 %v804, %v730
        %v806 = vsel %vm735, %v731, -inf
        %v807 = vmax.f32 %v805, %v806
        %v808 = vrot.slane %v807, 4
        %v809 = vmax.f32 %v807, %v808
        %v810 = vrot.slane %v809, 2
        %v811 = vmax.f32 %v809, %v810
        %v812 = vrot.slane %v811, 1
        %v813 = vmax.f32 %v811, %v812
        %v814 = vld [vmem:[%s2] sm:$0x1]
        %v815 = vlaneseq
        %v816 = vshrl.u32 %v815, 7
        %v817 = vsub.s32 0, %v816
        %v818 = vrot.slane %v814, %v817
        %v819 = vadd.f32 %v743, %v818
        %v820 = vadd.f32 %v753, %v818
        %v821 = vadd.f32 %v763, %v818
        %v822 = vadd.f32 %v773, %v818
        %v823 = vadd.f32 %v783, %v818
        %v824 = vadd.f32 %v793, %v818
        %v825 = vadd.f32 %v803, %v818
        %v826 = vadd.f32 %v813, %v818
        %v827 = vmax.f32 %v819, 0.0
        %v828 = vmax.f32 %v820, 0.0
        %v829 = vmax.f32 %v821, 0.0
        %v830 = vmax.f32 %v822, 0.0
        %v831 = vmax.f32 %v823, 0.0
        %v832 = vmax.f32 %v824, 0.0
        %v833 = vmax.f32 %v825, 0.0
        %v834 = vmax.f32 %v826, 0.0
        %v835 = vpack.c.bf16 %v827, %v827
        %v836 = vpack.c.bf16 %v828, %v828
        %v837 = vpack.c.bf16 %v829, %v829
        %v838 = vpack.c.bf16 %v830, %v830
        %v839 = vpack.c.bf16 %v831, %v831
        %v840 = vpack.c.bf16 %v832, %v832
        %v841 = vpack.c.bf16 %v833, %v833
        %v842 = vpack.c.bf16 %v834, %v834
        %v851 = vunpack.c.l.b16 %v835
        %v852 = vunpack.c.l.b16 %v836
        %v853 = vunpack.c.l.b16 %v837
        %v854 = vunpack.c.l.b16 %v838
        %v855 = vunpack.c.l.b16 %v839
        %v856 = vunpack.c.l.b16 %v840
        %v857 = vunpack.c.l.b16 %v841
        %v858 = vunpack.c.l.b16 %v842
        %v859 = vpack.c.b16 %v851, %v851
        %v860 = vpack.c.b16 %v852, %v852
        %v861 = vpack.c.b16 %v853, %v853
        %v862 = vpack.c.b16 %v854, %v854
        %v863 = vpack.c.b16 %v855, %v855
        %v864 = vpack.c.b16 %v856, %v856
        %v865 = vpack.c.b16 %v857, %v857
        %v866 = vpack.c.b16 %v858, %v858
        %v867 = vunpack.c.l.b16 %v859
        %v868 = vunpack.c.l.b16 %v860
        %v869 = vunpack.c.l.b16 %v861
        %v870 = vunpack.c.l.b16 %v862
        %v871 = vunpack.c.l.b16 %v863
        %v872 = vunpack.c.l.b16 %v864
        %v873 = vunpack.c.l.b16 %v865
        %v874 = vunpack.c.l.b16 %v866
        %v875 = vrot.slane %v868, 7
        %vm876 = vcmask 1041409
        %v877 = vsel %vm876, %v875, %v867
        %v878 = vrot.slane %v869, 6
        %vm879 = vcmask 1042434
        %v880 = vsel %vm879, %v878, %v877
        %v881 = vrot.slane %v870, 5
        %vm882 = vcmask 1043459
        %v883 = vsel %vm882, %v881, %v880
        %v884 = vrot.slane %v871, 4
        %vm885 = vcmask 1044484
        %v886 = vsel %vm885, %v884, %v883
        %v887 = vrot.slane %v872, 3
        %vm888 = vcmask 1045509
        %v889 = vsel %vm888, %v887, %v886
        %v890 = vrot.slane %v873, 2
        %vm891 = vcmask 1046534
        %v892 = vsel %vm891, %v890, %v889
        %v893 = vrot.slane %v874, 1
        %vm894 = vcmask 1047559
        %v895 = vsel %vm894, %v893, %v892
        %v896 = vpack.c.b16 %v895, %v895
        %898 = vst [vmem:[#allocation2] sm:$0xf] %v896
        %v899 = vld [vmem:[%s237] sm:$0xf]
        %v900 = vld [vmem:[%s237 + $0x4] sm:$0xf]
        %v901 = vld [vmem:[%s237 + $0x8] sm:$0xf]
        %v902 = vld [vmem:[%s237 + $0xc] sm:$0xf]
        %v903 = vld [vmem:[%s237 + $0x10] sm:$0xf]
        %v904 = vld [vmem:[%s237 + $0x14] sm:$0xf]
        %v905 = vld [vmem:[%s237 + $0x18] sm:$0xf]
        %v906 = vld [vmem:[%s237 + $0x1c] sm:$0xf]
        %v907 = vld [vmem:[%s237 + $0x20] sm:$0xf]
        %v908 = vld [vmem:[%s237 + $0x24] sm:$0xf]
        %v909 = vld [vmem:[%s237 + $0x28] sm:$0xf]
        %v910 = vld [vmem:[%s237 + $0x2c] sm:$0xf]
        %v911 = vld [vmem:[%s237 + $0x30] sm:$0xf]
        %v912 = vld [vmem:[%s237 + $0x34] sm:$0xf]
        %v913 = vld [vmem:[%s237 + $0x38] sm:$0xf]
        %v914 = vld [vmem:[%s237 + $0x3c] sm:$0xf]
        %v915 = vld [vmem:[%s237 + $0x40] sm:$0xf]
        %v916 = vld [vmem:[%s237 + $0x44] sm:$0xf]
        %v917 = vld [vmem:[%s237 + $0x48] sm:$0xf]
        %v918 = vld [vmem:[%s237 + $0x4c] sm:$0xf]
        %v919 = vld [vmem:[%s237 + $0x50] sm:$0xf]
        %v920 = vld [vmem:[%s237 + $0x54] sm:$0xf]
        %v921 = vld [vmem:[%s237 + $0x58] sm:$0xf]
        %v922 = vld [vmem:[%s237 + $0x5c] sm:$0xf]
        %v923 = vld [vmem:[#allocation6 + $0x8] sm:$0xff]
        %v924 = vld [vmem:[#allocation6 + $0x10] sm:$0xf]
        %v925 = vld [vmem:[#allocation6 + $0x40] sm:$0xff]
        %v926 = vld [vmem:[#allocation6 + $0x48] sm:$0xf]
        %v927 = vld [vmem:[#allocation6 + $0x78] sm:$0xff]
        %v928 = vld [vmem:[#allocation6 + $0x80] sm:$0xf]
        %v929 = vld [vmem:[#allocation6 + $0xb0] sm:$0xff]
        %v930 = vld [vmem:[#allocation6 + $0xb8] sm:$0xf]
        %v931 = vld [vmem:[#allocation6 + $0xe8] sm:$0xff]
        %v932 = vld [vmem:[#allocation6 + $0xf0] sm:$0xf]
        %v933 = vld [vmem:[#allocation6 + $0x120] sm:$0xff]
        %v934 = vld [vmem:[#allocation6 + $0x128] sm:$0xf]
        %v935 = vld [vmem:[#allocation6 + $0x158] sm:$0xff]
        %v936 = vld [vmem:[#allocation6 + $0x160] sm:$0xf]
        %v937 = vld [vmem:[#allocation6 + $0x190] sm:$0xff]
        %v938 = vld [vmem:[#allocation6 + $0x198] sm:$0xf]
        %v939 = vld [vmem:[#allocation6 + $0x1c8] sm:$0xff]
        %v940 = vld [vmem:[#allocation6 + $0x1d0] sm:$0xf]
        %v941 = vld [vmem:[#allocation6 + $0x200] sm:$0xff]
        %v942 = vld [vmem:[#allocation6 + $0x208] sm:$0xf]
        %v943 = vld [vmem:[#allocation6 + $0x238] sm:$0xff]
        %v944 = vld [vmem:[#allocation6 + $0x240] sm:$0xf]
        %v945 = vld [vmem:[#allocation6 + $0x270] sm:$0xff]
        %v946 = vld [vmem:[#allocation6 + $0x278] sm:$0xf]
        %v947 = vld [vmem:[#allocation6 + $0x2a8] sm:$0xff]
        %v948 = vld [vmem:[#allocation6 + $0x2b0] sm:$0xf]
        %v949 = vld [vmem:[#allocation6 + $0x2e0] sm:$0xff]
        %v950 = vld [vmem:[#allocation6 + $0x2e8] sm:$0xf]
        %v951 = vld [vmem:[#allocation6 + $0x318] sm:$0xff]
        %v952 = vld [vmem:[#allocation6 + $0x320] sm:$0xf]
        %v953 = vld [vmem:[#allocation6 + $0x350] sm:$0xff]
        %v954 = vld [vmem:[#allocation6 + $0x358] sm:$0xf]
        %v979 = vunpack.c.l.b16 %v899
        %v980 = vunpack.c.l.b16 %v900
        %v981 = vunpack.c.l.b16 %v901
        %v982 = vunpack.c.l.b16 %v902
        %v983 = vunpack.c.l.b16 %v903
        %v984 = vunpack.c.l.b16 %v904
        %v985 = vunpack.c.l.b16 %v905
        %v986 = vunpack.c.l.b16 %v906
        %v987 = vunpack.c.l.b16 %v907
        %v988 = vunpack.c.l.b16 %v908
        %v989 = vunpack.c.l.b16 %v909
        %v990 = vunpack.c.l.b16 %v910
        %v991 = vunpack.c.l.b16 %v911
        %v992 = vunpack.c.l.b16 %v912
        %v993 = vunpack.c.l.b16 %v913
        %v994 = vunpack.c.l.b16 %v914
        %v995 = vunpack.c.l.b16 %v915
        %v996 = vunpack.c.l.b16 %v916
        %v997 = vunpack.c.l.b16 %v917
        %v998 = vunpack.c.l.b16 %v918
        %v999 = vunpack.c.l.b16 %v919
        %v1000 = vunpack.c.l.b16 %v920
        %v1001 = vunpack.c.l.b16 %v921
        %v1002 = vunpack.c.l.b16 %v922
        %v1003 = vpack.c.b16 %v980, %v979
        %v1004 = vpack.c.b16 %v982, %v981
        %v1005 = vpack.c.b16 %v984, %v983
        %v1006 = vpack.c.b16 %v986, %v985
        %v1007 = vpack.c.b16 %v988, %v987
        %v1008 = vpack.c.b16 %v990, %v989
        %v1009 = vpack.c.b16 %v992, %v991
        %v1010 = vpack.c.b16 %v994, %v993
        %v1011 = vpack.c.b16 %v996, %v995
        %v1012 = vpack.c.b16 %v998, %v997
        %v1013 = vpack.c.b16 %v1000, %v999
        %v1014 = vpack.c.b16 %v1002, %v1001
        %v1059 = vunpack.c.l.b16 %v923
        %v1060 = vunpack.c.h.b16 %v923
        %v1061 = vunpack.c.l.b16 %v924
        %v1062 = vunpack.c.l.b16 %v925
        %v1063 = vunpack.c.h.b16 %v925
        %v1064 = vunpack.c.l.b16 %v926
        %v1065 = vunpack.c.l.b16 %v927
        %v1066 = vunpack.c.h.b16 %v927
        %v1067 = vunpack.c.l.b16 %v928
        %v1068 = vunpack.c.l.b16 %v929
        %v1069 = vunpack.c.h.b16 %v929
        %v1070 = vunpack.c.l.b16 %v930
        %v1071 = vunpack.c.l.b16 %v931
        %v1072 = vunpack.c.h.b16 %v931
        %v1073 = vunpack.c.l.b16 %v932
        %v1074 = vunpack.c.l.b16 %v933
        %v1075 = vunpack.c.h.b16 %v933
        %v1076 = vunpack.c.l.b16 %v934
        %v1077 = vunpack.c.l.b16 %v935
        %v1078 = vunpack.c.h.b16 %v935
        %v1079 = vunpack.c.l.b16 %v936
        %v1080 = vunpack.c.l.b16 %v937
        %v1081 = vunpack.c.h.b16 %v937
        %v1082 = vunpack.c.l.b16 %v938
        %v1083 = vunpack.c.l.b16 %v939
        %v1084 = vunpack.c.h.b16 %v939
        %v1085 = vunpack.c.l.b16 %v940
        %v1086 = vunpack.c.l.b16 %v941
        %v1087 = vunpack.c.h.b16 %v941
        %v1088 = vunpack.c.l.b16 %v942
        %v1089 = vunpack.c.l.b16 %v943
        %v1090 = vunpack.c.h.b16 %v943
        %v1091 = vunpack.c.l.b16 %v944
        %v1092 = vunpack.c.l.b16 %v945
        %v1093 = vunpack.c.h.b16 %v945
        %v1094 = vunpack.c.l.b16 %v946
        %v1095 = vunpack.c.l.b16 %v947
        %v1096 = vunpack.c.h.b16 %v947
        %v1097 = vunpack.c.l.b16 %v948
        %v1098 = vunpack.c.l.b16 %v949
        %v1099 = vunpack.c.h.b16 %v949
        %v1100 = vunpack.c.l.b16 %v950
        %v1101 = vunpack.c.l.b16 %v951
        %v1102 = vunpack.c.h.b16 %v951
        %v1103 = vunpack.c.l.b16 %v952
        %v1104 = vunpack.c.l.b16 %v953
        %v1105 = vunpack.c.h.b16 %v953
        %v1106 = vunpack.c.l.b16 %v954
        %v1107 = vpack.c.b16 %v1062, %v1059
        %v1108 = vpack.c.b16 %v1063, %v1060
        %v1109 = vpack.c.b16 %v1064, %v1061
        %v1110 = vpack.c.b16 %v1068, %v1065
        %v1111 = vpack.c.b16 %v1069, %v1066
        %v1112 = vpack.c.b16 %v1070, %v1067
        %v1113 = vpack.c.b16 %v1074, %v1071
        %v1114 = vpack.c.b16 %v1075, %v1072
        %v1115 = vpack.c.b16 %v1076, %v1073
        %v1116 = vpack.c.b16 %v1080, %v1077
        %v1117 = vpack.c.b16 %v1081, %v1078
        %v1118 = vpack.c.b16 %v1082, %v1079
        %v1119 = vpack.c.b16 %v1086, %v1083
        %v1120 = vpack.c.b16 %v1087, %v1084
        %v1121 = vpack.c.b16 %v1088, %v1085
        %v1122 = vpack.c.b16 %v1092, %v1089
        %v1123 = vpack.c.b16 %v1093, %v1090
        %v1124 = vpack.c.b16 %v1094, %v1091
        %v1125 = vpack.c.b16 %v1098, %v1095
        %v1126 = vpack.c.b16 %v1099, %v1096
        %v1127 = vpack.c.b16 %v1100, %v1097
        %v1128 = vpack.c.b16 %v1104, %v1101
        %v1129 = vpack.c.b16 %v1105, %v1102
        %v1130 = vpack.c.b16 %v1106, %v1103
        %1155 = vmatprep.subr.bf16.mxu0 %v1108
        %1156 = vmatpush1.bf16.msra.mxu0 %v1107
        %1157 = vmatprep.subr.bf16.mxu0 %v1111
        %1158 = vmatpush1.bf16.msra.mxu0 %v1110
        %1159 = vmatprep.subr.bf16.mxu0 %v1114
        %1160 = vmatpush1.bf16.msra.mxu0 %v1113
        %1161 = vmatprep.subr.bf16.mxu0 %v1117
        %1162 = vmatpush1.bf16.msra.mxu0 %v1116
        %1163 = vmatprep.subr.bf16.mxu0 %v1120
        %1164 = vmatpush1.bf16.msra.mxu0 %v1119
        %1165 = vmatprep.subr.bf16.mxu0 %v1123
        %1166 = vmatpush1.bf16.msra.mxu0 %v1122
        %1167 = vmatprep.subr.bf16.mxu0 %v1126
        %1168 = vmatpush1.bf16.msra.mxu0 %v1125
        %1169 = vmatprep.subr.bf16.mxu0 %v1129
        %1170 = vmatpush1.bf16.msra.mxu0 %v1128
        %1171 = vmatprep.subr.bf16.mxu0 0
        %1172 = vmatpush1.bf16.msra.mxu0 0
        %1173 = vmatprep.subr.bf16.mxu0 0
        %1174 = vmatpush1.bf16.msra.mxu0 0
        %1175 = vmatprep.subr.bf16.mxu0 0
        %1176 = vmatpush1.bf16.msra.mxu0 0
        %1177 = vmatprep.subr.bf16.mxu0 0
        %1178 = vmatpush1.bf16.msra.mxu0 0
        %1179 = vmatprep.subr.bf16.mxu0 0
        %1180 = vmatpush1.bf16.msra.mxu0 0
        %1181 = vmatprep.subr.bf16.mxu0 0
        %1182 = vmatpush1.bf16.msra.mxu0 0
        %1183 = vmatprep.subr.bf16.mxu0 0
        %1184 = vmatpush1.bf16.msra.mxu0 0
        %1185 = vmatprep.subr.bf16.mxu0 0
        %1186 = vmatpush1.bf16.msra.mxu0 0
        %1187 = vmatprep.mubr.bf16.mxu0 0
        %1188 = vmatmul.mubr.bf16.gmra.mrb[0].mxu0 %v1003
        %v1189 = vpop.f32.mrb[0].mxu0
        %v1190 = vadd.f32 0.0, %v1189
        %v1191 = vpop.f32.mrb[0].mxu0
        %v1192 = vadd.f32 0.0, %v1191
        %v1193 = vpop.f32.mrb[0].mxu0
        %v1194 = vadd.f32 0.0, %v1193
        %v1195 = vpop.f32.mrb[0].mxu0
        %v1196 = vadd.f32 0.0, %v1195
        %1197 = vmatprep.mubr.bf16.mxu0 0
        %1198 = vmatmul.mubr.bf16.gmra.mrb[0].mxu0 %v1004
        %v1199 = vpop.f32.mrb[0].mxu0
        %v1200 = vadd.f32 0.0, %v1199
        %v1201 = vpop.f32.mrb[0].mxu0
        %v1202 = vadd.f32 0.0, %v1201
        %v1203 = vpop.f32.mrb[0].mxu0
        %v1204 = vadd.f32 0.0, %v1203
        %v1205 = vpop.f32.mrb[0].mxu0
        %v1206 = vadd.f32 0.0, %v1205
        %1207 = vmatprep.mubr.bf16.mxu0 0
        %1208 = vmatmul.mubr.bf16.gmra.mrb[0].mxu0 %v1005
        %v1209 = vpop.f32.mrb[0].mxu0
        %v1210 = vadd.f32 0.0, %v1209
        %v1211 = vpop.f32.mrb[0].mxu0
        %v1212 = vadd.f32 0.0, %v1211
        %v1213 = vpop.f32.mrb[0].mxu0
        %v1214 = vadd.f32 0.0, %v1213
        %v1215 = vpop.f32.mrb[0].mxu0
        %v1216 = vadd.f32 0.0, %v1215
        %1217 = vmatprep.mubr.bf16.mxu0 0
        %1218 = vmatmul.mubr.bf16.gmra.mrb[0].mxu0 %v1006
        %v1219 = vpop.f32.mrb[0].mxu0
        %v1220 = vadd.f32 0.0, %v1219
        %v1221 = vpop.f32.mrb[0].mxu0
        %v1222 = vadd.f32 0.0, %v1221
        %v1223 = vpop.f32.mrb[0].mxu0
        %v1224 = vadd.f32 0.0, %v1223
        %v1225 = vpop.f32.mrb[0].mxu0
        %v1226 = vadd.f32 0.0, %v1225
        %1227 = vmatprep.mubr.bf16.mxu0 0
        %1228 = vmatmul.mubr.bf16.gmra.mrb[0].mxu0 %v1007
        %v1229 = vpop.f32.mrb[0].mxu0
        %v1230 = vadd.f32 0.0, %v1229
        %v1231 = vpop.f32.mrb[0].mxu0
        %v1232 = vadd.f32 0.0, %v1231
        %v1233 = vpop.f32.mrb[0].mxu0
        %v1234 = vadd.f32 0.0, %v1233
        %v1235 = vpop.f32.mrb[0].mxu0
        %v1236 = vadd.f32 0.0, %v1235
        %1237 = vmatprep.mubr.bf16.mxu0 0
        %1238 = vmatmul.mubr.bf16.gmra.mrb[0].mxu0 %v1008
        %v1239 = vpop.f32.mrb[0].mxu0
        %v1240 = vadd.f32 0.0, %v1239
        %v1241 = vpop.f32.mrb[0].mxu0
        %v1242 = vadd.f32 0.0, %v1241
        %v1243 = vpop.f32.mrb[0].mxu0
        %v1244 = vadd.f32 0.0, %v1243
        %v1245 = vpop.f32.mrb[0].mxu0
        %v1246 = vadd.f32 0.0, %v1245
        %1247 = vmatprep.mubr.bf16.mxu0 0
        %1248 = vmatmul.mubr.bf16.gmra.mrb[0].mxu0 %v1009
        %v1249 = vpop.f32.mrb[0].mxu0
        %v1250 = vadd.f32 0.0, %v1249
        %v1251 = vpop.f32.mrb[0].mxu0
        %v1252 = vadd.f32 0.0, %v1251
        %v1253 = vpop.f32.mrb[0].mxu0
        %v1254 = vadd.f32 0.0, %v1253
        %v1255 = vpop.f32.mrb[0].mxu0
        %v1256 = vadd.f32 0.0, %v1255
        %1257 = vmatprep.mubr.bf16.mxu0 0
        %1258 = vmatmul.mubr.bf16.gmra.mrb[0].mxu0 %v1010
        %v1259 = vpop.f32.mrb[0].mxu0
        %v1260 = vadd.f32 0.0, %v1259
        %v1261 = vpop.f32.mrb[0].mxu0
        %v1262 = vadd.f32 0.0, %v1261
        %v1263 = vpop.f32.mrb[0].mxu0
        %v1264 = vadd.f32 0.0, %v1263
        %v1265 = vpop.f32.mrb[0].mxu0
        %v1266 = vadd.f32 0.0, %v1265
        %1267 = vmatprep.mubr.bf16.mxu0 0
        %1268 = vmatmul.mubr.bf16.gmra.mrb[0].mxu0 %v1011
        %v1269 = vpop.f32.mrb[0].mxu0
        %v1270 = vadd.f32 0.0, %v1269
        %v1271 = vpop.f32.mrb[0].mxu0
        %v1272 = vadd.f32 0.0, %v1271
        %v1273 = vpop.f32.mrb[0].mxu0
        %v1274 = vadd.f32 0.0, %v1273
        %v1275 = vpop.f32.mrb[0].mxu0
        %v1276 = vadd.f32 0.0, %v1275
        %1277 = vmatprep.mubr.bf16.mxu0 0
        %1278 = vmatmul.mubr.bf16.gmra.mrb[0].mxu0 %v1012
        %v1279 = vpop.f32.mrb[0].mxu0
        %v1280 = vadd.f32 0.0, %v1279
        %v1281 = vpop.f32.mrb[0].mxu0
        %v1282 = vadd.f32 0.0, %v1281
        %v1283 = vpop.f32.mrb[0].mxu0
        %v1284 = vadd.f32 0.0, %v1283
        %v1285 = vpop.f32.mrb[0].mxu0
        %v1286 = vadd.f32 0.0, %v1285
        %1287 = vmatprep.mubr.bf16.mxu0 0
        %1288 = vmatmul.mubr.bf16.gmra.mrb[0].mxu0 %v1013
        %v1289 = vpop.f32.mrb[0].mxu0
        %v1290 = vadd.f32 0.0, %v1289
        %v1291 = vpop.f32.mrb[0].mxu0
        %v1292 = vadd.f32 0.0, %v1291
        %v1293 = vpop.f32.mrb[0].mxu0
        %v1294 = vadd.f32 0.0, %v1293
        %v1295 = vpop.f32.mrb[0].mxu0
        %v1296 = vadd.f32 0.0, %v1295
        %1297 = vmatprep.mubr.bf16.mxu0 0
        %1298 = vmatmul.mubr.bf16.gmra.mrb[0].mxu0 %v1014
        %v1299 = vpop.f32.mrb[0].mxu0
        %v1300 = vadd.f32 0.0, %v1299
        %v1301 = vpop.f32.mrb[0].mxu0
        %v1302 = vadd.f32 0.0, %v1301
        %v1303 = vpop.f32.mrb[0].mxu0
        %v1304 = vadd.f32 0.0, %v1303
        %v1305 = vpop.f32.mrb[0].mxu0
        %v1306 = vadd.f32 0.0, %v1305
        %1307 = vdwg.mxu0
        %1308 = vmatprep.subr.bf16.mxu0 0
        %1309 = vmatpush1.bf16.msra.mxu0 %v1109
        %1310 = vmatprep.subr.bf16.mxu0 0
        %1311 = vmatpush1.bf16.msra.mxu0 %v1112
        %1312 = vmatprep.subr.bf16.mxu0 0
        %1313 = vmatpush1.bf16.msra.mxu0 %v1115
        %1314 = vmatprep.subr.bf16.mxu0 0
        %1315 = vmatpush1.bf16.msra.mxu0 %v1118
        %1316 = vmatprep.subr.bf16.mxu0 0
        %1317 = vmatpush1.bf16.msra.mxu0 %v1121
        %1318 = vmatprep.subr.bf16.mxu0 0
        %1319 = vmatpush1.bf16.msra.mxu0 %v1124
        %1320 = vmatprep.subr.bf16.mxu0 0
        %1321 = vmatpush1.bf16.msra.mxu0 %v1127
        %1322 = vmatprep.subr.bf16.mxu0 0
        %1323 = vmatpush1.bf16.msra.mxu0 %v1130
        %1324 = vmatprep.subr.bf16.mxu0 0
        %1325 = vmatpush1.bf16.msra.mxu0 0
        %1326 = vmatprep.subr.bf16.mxu0 0
        %1327 = vmatpush1.bf16.msra.mxu0 0
        %1328 = vmatprep.subr.bf16.mxu0 0
        %1329 = vmatpush1.bf16.msra.mxu0 0
        %1330 = vmatprep.subr.bf16.mxu0 0
        %1331 = vmatpush1.bf16.msra.mxu0 0
        %1332 = vmatprep.subr.bf16.mxu0 0
        %1333 = vmatpush1.bf16.msra.mxu0 0
        %1334 = vmatprep.subr.bf16.mxu0 0
        %1335 = vmatpush1.bf16.msra.mxu0 0
        %1336 = vmatprep.subr.bf16.mxu0 0
        %1337 = vmatpush1.bf16.msra.mxu0 0
        %1338 = vmatprep.subr.bf16.mxu0 0
        %1339 = vmatpush1.bf16.msra.mxu0 0
        %1340 = vmatprep.mubr.bf16.mxu0 0
        %1341 = vmatmul.mubr.bf16.gmra.mrb[0].mxu0 %v1003
        %v1342 = vpop.f32.mrb[0].mxu0
        %v1343 = vadd.f32 0.0, %v1342
        %v1344 = vpop.f32.mrb[0].mxu0
        %v1345 = vpop.f32.mrb[0].mxu0
        %v1346 = vadd.f32 0.0, %v1345
        %v1347 = vpop.f32.mrb[0].mxu0
        %1348 = vmatprep.mubr.bf16.mxu0 0
        %1349 = vmatmul.mubr.bf16.gmra.mrb[0].mxu0 %v1004
        %v1350 = vpop.f32.mrb[0].mxu0
        %v1351 = vadd.f32 0.0, %v1350
        %v1352 = vpop.f32.mrb[0].mxu0
        %v1353 = vpop.f32.mrb[0].mxu0
        %v1354 = vadd.f32 0.0, %v1353
        %v1355 = vpop.f32.mrb[0].mxu0
        %1356 = vmatprep.mubr.bf16.mxu0 0
        %1357 = vmatmul.mubr.bf16.gmra.mrb[0].mxu0 %v1005
        %v1358 = vpop.f32.mrb[0].mxu0
        %v1359 = vadd.f32 0.0, %v1358
        %v1360 = vpop.f32.mrb[0].mxu0
        %v1361 = vpop.f32.mrb[0].mxu0
        %v1362 = vadd.f32 0.0, %v1361
        %v1363 = vpop.f32.mrb[0].mxu0
        %1364 = vmatprep.mubr.bf16.mxu0 0
        %1365 = vmatmul.mubr.bf16.gmra.mrb[0].mxu0 %v1006
        %v1366 = vpop.f32.mrb[0].mxu0
        %v1367 = vadd.f32 0.0, %v1366
        %v1368 = vpop.f32.mrb[0].mxu0
        %v1369 = vpop.f32.mrb[0].mxu0
        %v1370 = vadd.f32 0.0, %v1369
        %v1371 = vpop.f32.mrb[0].mxu0
        %1372 = vmatprep.mubr.bf16.mxu0 0
        %1373 = vmatmul.mubr.bf16.gmra.mrb[0].mxu0 %v1007
        %v1374 = vpop.f32.mrb[0].mxu0
        %v1375 = vadd.f32 0.0, %v1374
        %v1376 = vpop.f32.mrb[0].mxu0
        %v1377 = vpop.f32.mrb[0].mxu0
        %v1378 = vadd.f32 0.0, %v1377
        %v1379 = vpop.f32.mrb[0].mxu0
        %1380 = vmatprep.mubr.bf16.mxu0 0
        %1381 = vmatmul.mubr.bf16.gmra.mrb[0].mxu0 %v1008
        %v1382 = vpop.f32.mrb[0].mxu0
        %v1383 = vadd.f32 0.0, %v1382
        %v1384 = vpop.f32.mrb[0].mxu0
        %v1385 = vpop.f32.mrb[0].mxu0
        %v1386 = vadd.f32 0.0, %v1385
        %v1387 = vpop.f32.mrb[0].mxu0
        %1388 = vmatprep.mubr.bf16.mxu0 0
        %1389 = vmatmul.mubr.bf16.gmra.mrb[0].mxu0 %v1009
        %v1390 = vpop.f32.mrb[0].mxu0
        %v1391 = vadd.f32 0.0, %v1390
        %v1392 = vpop.f32.mrb[0].mxu0
        %v1393 = vpop.f32.mrb[0].mxu0
        %v1394 = vadd.f32 0.0, %v1393
        %v1395 = vpop.f32.mrb[0].mxu0
        %1396 = vmatprep.mubr.bf16.mxu0 0
        %1397 = vmatmul.mubr.bf16.gmra.mrb[0].mxu0 %v1010
        %v1398 = vpop.f32.mrb[0].mxu0
        %v1399 = vadd.f32 0.0, %v1398
        %v1400 = vpop.f32.mrb[0].mxu0
        %v1401 = vpop.f32.mrb[0].mxu0
        %v1402 = vadd.f32 0.0, %v1401
        %v1403 = vpop.f32.mrb[0].mxu0
        %1404 = vmatprep.mubr.bf16.mxu0 0
        %1405 = vmatmul.mubr.bf16.gmra.mrb[0].mxu0 %v1011
        %v1406 = vpop.f32.mrb[0].mxu0
        %v1407 = vadd.f32 0.0, %v1406
        %v1408 = vpop.f32.mrb[0].mxu0
        %v1409 = vpop.f32.mrb[0].mxu0
        %v1410 = vadd.f32 0.0, %v1409
        %v1411 = vpop.f32.mrb[0].mxu0
        %1412 = vmatprep.mubr.bf16.mxu0 0
        %1413 = vmatmul.mubr.bf16.gmra.mrb[0].mxu0 %v1012
        %v1414 = vpop.f32.mrb[0].mxu0
        %v1415 = vadd.f32 0.0, %v1414
        %v1416 = vpop.f32.mrb[0].mxu0
        %v1417 = vpop.f32.mrb[0].mxu0
        %v1418 = vadd.f32 0.0, %v1417
        %v1419 = vpop.f32.mrb[0].mxu0
        %1420 = vmatprep.mubr.bf16.mxu0 0
        %1421 = vmatmul.mubr.bf16.gmra.mrb[0].mxu0 %v1013
        %v1422 = vpop.f32.mrb[0].mxu0
        %v1423 = vadd.f32 0.0, %v1422
        %v1424 = vpop.f32.mrb[0].mxu0
        %v1425 = vpop.f32.mrb[0].mxu0
        %v1426 = vadd.f32 0.0, %v1425
        %v1427 = vpop.f32.mrb[0].mxu0
        %1428 = vmatprep.mubr.bf16.mxu0 0
        %1429 = vmatmul.mubr.bf16.gmra.mrb[0].mxu0 %v1014
        %v1430 = vpop.f32.mrb[0].mxu0
        %v1431 = vadd.f32 0.0, %v1430
        %v1432 = vpop.f32.mrb[0].mxu0
        %v1433 = vpop.f32.mrb[0].mxu0
        %v1434 = vadd.f32 0.0, %v1433
        %v1435 = vpop.f32.mrb[0].mxu0
        %1436 = vdwg.mxu0
        %v1461 = vrot.slane %v1192, 1
        %v1462 = vrot.slane %v1196, 1
        %v1463 = vsel %vm643, %v1461, %v1462
        %v1464 = vrot.slane %v1202, 1
        %v1465 = vsel %vm643, %v1462, %v1464
        %v1466 = vrot.slane %v1206, 1
        %v1467 = vrot.slane %v1212, 1
        %v1468 = vsel %vm643, %v1466, %v1467
        %v1469 = vrot.slane %v1216, 1
        %v1470 = vsel %vm643, %v1467, %v1469
        %v1471 = vrot.slane %v1222, 1
        %v1472 = vrot.slane %v1226, 1
        %v1473 = vsel %vm643, %v1471, %v1472
        %v1474 = vrot.slane %v1232, 1
        %v1475 = vsel %vm643, %v1472, %v1474
        %v1476 = vrot.slane %v1236, 1
        %v1477 = vrot.slane %v1242, 1
        %v1478 = vsel %vm643, %v1476, %v1477
        %v1479 = vrot.slane %v1246, 1
        %v1480 = vsel %vm643, %v1477, %v1479
        %v1481 = vrot.slane %v1252, 1
        %v1482 = vrot.slane %v1256, 1
        %v1483 = vsel %vm643, %v1481, %v1482
        %v1484 = vrot.slane %v1262, 1
        %v1485 = vsel %vm643, %v1482, %v1484
        %v1486 = vrot.slane %v1266, 1
        %v1487 = vrot.slane %v1272, 1
        %v1488 = vsel %vm643, %v1486, %v1487
        %v1489 = vrot.slane %v1276, 1
        %v1490 = vsel %vm643, %v1487, %v1489
        %v1491 = vrot.slane %v1282, 1
        %v1492 = vrot.slane %v1286, 1
        %v1493 = vsel %vm643, %v1491, %v1492
        %v1494 = vrot.slane %v1292, 1
        %v1495 = vsel %vm643, %v1492, %v1494
        %v1496 = vrot.slane %v1296, 1
        %v1497 = vrot.slane %v1302, 1
        %v1498 = vsel %vm643, %v1496, %v1497
        %v1499 = vrot.slane %v1306, 1
        %v1500 = vsel %vm643, %v1497, %v1499
        %v1525 = vadd.f32 %v1190, %v1463
        %v1526 = vadd.f32 %v1194, %v1465
        %v1527 = vadd.f32 %v1200, %v1464
        %v1528 = vadd.f32 %v1204, %v1468
        %v1529 = vadd.f32 %v1210, %v1470
        %v1530 = vadd.f32 %v1214, %v1469
        %v1531 = vadd.f32 %v1220, %v1473
        %v1532 = vadd.f32 %v1224, %v1475
        %v1533 = vadd.f32 %v1230, %v1474
        %v1534 = vadd.f32 %v1234, %v1478
        %v1535 = vadd.f32 %v1240, %v1480
        %v1536 = vadd.f32 %v1244, %v1479
        %v1537 = vadd.f32 %v1250, %v1483
        %v1538 = vadd.f32 %v1254, %v1485
        %v1539 = vadd.f32 %v1260, %v1484
        %v1540 = vadd.f32 %v1264, %v1488
        %v1541 = vadd.f32 %v1270, %v1490
        %v1542 = vadd.f32 %v1274, %v1489
        %v1543 = vadd.f32 %v1280, %v1493
        %v1544 = vadd.f32 %v1284, %v1495
        %v1545 = vadd.f32 %v1290, %v1494
        %v1546 = vadd.f32 %v1294, %v1498
        %v1547 = vadd.f32 %v1300, %v1500
        %v1548 = vadd.f32 %v1304, %v1499
        %vm1573 = vcmask 1045504
        %v1574 = vrot.slane %v1343, 2
        %v1575 = vrot.slane %v1346, 2
        %v1576 = vsel %vm1573, %v1574, %v1575
        %v1577 = vrot.slane %v1351, 2
        %v1578 = vsel %vm1573, %v1575, %v1577
        %v1579 = vrot.slane %v1354, 2
        %v1580 = vrot.slane %v1359, 2
        %v1581 = vsel %vm1573, %v1579, %v1580
        %v1582 = vrot.slane %v1362, 2
        %v1583 = vsel %vm1573, %v1580, %v1582
        %v1584 = vrot.slane %v1367, 2
        %v1585 = vrot.slane %v1370, 2
        %v1586 = vsel %vm1573, %v1584, %v1585
        %v1587 = vrot.slane %v1375, 2
        %v1588 = vsel %vm1573, %v1585, %v1587
        %v1589 = vrot.slane %v1378, 2
        %v1590 = vrot.slane %v1383, 2
        %v1591 = vsel %vm1573, %v1589, %v1590
        %v1592 = vrot.slane %v1386, 2
        %v1593 = vsel %vm1573, %v1590, %v1592
        %v1594 = vrot.slane %v1391, 2
        %v1595 = vrot.slane %v1394, 2
        %v1596 = vsel %vm1573, %v1594, %v1595
        %v1597 = vrot.slane %v1399, 2
        %v1598 = vsel %vm1573, %v1595, %v1597
        %v1599 = vrot.slane %v1402, 2
        %v1600 = vrot.slane %v1407, 2
        %v1601 = vsel %vm1573, %v1599, %v1600
        %v1602 = vrot.slane %v1410, 2
        %v1603 = vsel %vm1573, %v1600, %v1602
        %v1604 = vrot.slane %v1415, 2
        %v1605 = vrot.slane %v1418, 2
        %v1606 = vsel %vm1573, %v1604, %v1605
        %v1607 = vrot.slane %v1423, 2
        %v1608 = vsel %vm1573, %v1605, %v1607
        %v1609 = vrot.slane %v1426, 2
        %v1610 = vrot.slane %v1431, 2
        %v1611 = vsel %vm1573, %v1609, %v1610
        %v1612 = vrot.slane %v1434, 2
        %v1613 = vsel %vm1573, %v1610, %v1612
        %v1638 = vadd.f32 %v1525, %v1576
        %v1639 = vadd.f32 %v1526, %v1578
        %v1640 = vadd.f32 %v1527, %v1577
        %v1641 = vadd.f32 %v1528, %v1581
        %v1642 = vadd.f32 %v1529, %v1583
        %v1643 = vadd.f32 %v1530, %v1582
        %v1644 = vadd.f32 %v1531, %v1586
        %v1645 = vadd.f32 %v1532, %v1588
        %v1646 = vadd.f32 %v1533, %v1587
        %v1647 = vadd.f32 %v1534, %v1591
        %v1648 = vadd.f32 %v1535, %v1593
        %v1649 = vadd.f32 %v1536, %v1592
        %v1650 = vadd.f32 %v1537, %v1596
        %v1651 = vadd.f32 %v1538, %v1598
        %v1652 = vadd.f32 %v1539, %v1597
        %v1653 = vadd.f32 %v1540, %v1601
        %v1654 = vadd.f32 %v1541, %v1603
        %v1655 = vadd.f32 %v1542, %v1602
        %v1656 = vadd.f32 %v1543, %v1606
        %v1657 = vadd.f32 %v1544, %v1608
        %v1658 = vadd.f32 %v1545, %v1607
        %v1659 = vadd.f32 %v1546, %v1611
        %v1660 = vadd.f32 %v1547, %v1613
        %v1661 = vadd.f32 %v1548, %v1612
        %vm1662 = vcmask 1047554
        %v1663 = vsel %vm1662, %v1638, -inf
        %v1664 = vmax.f32 %v1663, %v1639
        %v1665 = vsel %vm735, %v1640, -inf
        %v1666 = vmax.f32 %v1664, %v1665
        %v1667 = vrot.slane %v1666, 4
        %v1668 = vmax.f32 %v1666, %v1667
        %v1669 = vrot.slane %v1668, 2
        %v1670 = vmax.f32 %v1668, %v1669
        %v1671 = vrot.slane %v1670, 1
        %v1672 = vmax.f32 %v1670, %v1671
        %v1673 = vsel %vm1662, %v1641, -inf
        %v1674 = vmax.f32 %v1673, %v1642
        %v1675 = vsel %vm735, %v1643, -inf
        %v1676 = vmax.f32 %v1674, %v1675
        %v1677 = vrot.slane %v1676, 4
        %v1678 = vmax.f32 %v1676, %v1677
        %v1679 = vrot.slane %v1678, 2
        %v1680 = vmax.f32 %v1678, %v1679
        %v1681 = vrot.slane %v1680, 1
        %v1682 = vmax.f32 %v1680, %v1681
        %v1683 = vsel %vm1662, %v1644, -inf
        %v1684 = vmax.f32 %v1683, %v1645
        %v1685 = vsel %vm735, %v1646, -inf
        %v1686 = vmax.f32 %v1684, %v1685
        %v1687 = vrot.slane %v1686, 4
        %v1688 = vmax.f32 %v1686, %v1687
        %v1689 = vrot.slane %v1688, 2
        %v1690 = vmax.f32 %v1688, %v1689
        %v1691 = vrot.slane %v1690, 1
        %v1692 = vmax.f32 %v1690, %v1691
        %v1693 = vsel %vm1662, %v1647, -inf
        %v1694 = vmax.f32 %v1693, %v1648
        %v1695 = vsel %vm735, %v1649, -inf
        %v1696 = vmax.f32 %v1694, %v1695
        %v1697 = vrot.slane %v1696, 4
        %v1698 = vmax.f32 %v1696, %v1697
        %v1699 = vrot.slane %v1698, 2
        %v1700 = vmax.f32 %v1698, %v1699
        %v1701 = vrot.slane %v1700, 1
        %v1702 = vmax.f32 %v1700, %v1701
        %v1703 = vsel %vm1662, %v1650, -inf
        %v1704 = vmax.f32 %v1703, %v1651
        %v1705 = vsel %vm735, %v1652, -inf
        %v1706 = vmax.f32 %v1704, %v1705
        %v1707 = vrot.slane %v1706, 4
        %v1708 = vmax.f32 %v1706, %v1707
        %v1709 = vrot.slane %v1708, 2
        %v1710 = vmax.f32 %v1708, %v1709
        %v1711 = vrot.slane %v1710, 1
        %v1712 = vmax.f32 %v1710, %v1711
        %v1713 = vsel %vm1662, %v1653, -inf
        %v1714 = vmax.f32 %v1713, %v1654
        %v1715 = vsel %vm735, %v1655, -inf
        %v1716 = vmax.f32 %v1714, %v1715
        %v1717 = vrot.slane %v1716, 4
        %v1718 = vmax.f32 %v1716, %v1717
        %v1719 = vrot.slane %v1718, 2
        %v1720 = vmax.f32 %v1718, %v1719
        %v1721 = vrot.slane %v1720, 1
        %v1722 = vmax.f32 %v1720, %v1721
        %v1723 = vsel %vm1662, %v1656, -inf
        %v1724 = vmax.f32 %v1723, %v1657
        %v1725 = vsel %vm735, %v1658, -inf
        %v1726 = vmax.f32 %v1724, %v1725
        %v1727 = vrot.slane %v1726, 4
        %v1728 = vmax.f32 %v1726, %v1727
        %v1729 = vrot.slane %v1728, 2
        %v1730 = vmax.f32 %v1728, %v1729
        %v1731 = vrot.slane %v1730, 1
        %v1732 = vmax.f32 %v1730, %v1731
        %v1733 = vsel %vm1662, %v1659, -inf
        %v1734 = vmax.f32 %v1733, %v1660
        %v1735 = vsel %vm735, %v1661, -inf
        %v1736 = vmax.f32 %v1734, %v1735
        %v1737 = vrot.slane %v1736, 4
        %v1738 = vmax.f32 %v1736, %v1737
        %v1739 = vrot.slane %v1738, 2
        %v1740 = vmax.f32 %v1738, %v1739
        %v1741 = vrot.slane %v1740, 1
        %v1742 = vmax.f32 %v1740, %v1741
        %v1743 = vld [vmem:[%s2 + $0x1] sm:$0x1]
        %v1744 = vlaneseq
        %v1745 = vshrl.u32 %v1744, 7
        %v1746 = vsub.s32 0, %v1745
        %v1747 = vrot.slane %v1743, %v1746
        %v1748 = vadd.f32 %v1672, %v1747
        %v1749 = vadd.f32 %v1682, %v1747
        %v1750 = vadd.f32 %v1692, %v1747
        %v1751 = vadd.f32 %v1702, %v1747
        %v1752 = vadd.f32 %v1712, %v1747
        %v1753 = vadd.f32 %v1722, %v1747
        %v1754 = vadd.f32 %v1732, %v1747
        %v1755 = vadd.f32 %v1742, %v1747
        %v1756 = vmax.f32 %v1748, 0.0
        %v1757 = vmax.f32 %v1749, 0.0
        %v1758 = vmax.f32 %v1750, 0.0
        %v1759 = vmax.f32 %v1751, 0.0
        %v1760 = vmax.f32 %v1752, 0.0
        %v1761 = vmax.f32 %v1753, 0.0
        %v1762 = vmax.f32 %v1754, 0.0
        %v1763 = vmax.f32 %v1755, 0.0
        %v1764 = vpack.c.bf16 %v1756, %v1756
        %v1765 = vpack.c.bf16 %v1757, %v1757
        %v1766 = vpack.c.bf16 %v1758, %v1758
        %v1767 = vpack.c.bf16 %v1759, %v1759
        %v1768 = vpack.c.bf16 %v1760, %v1760
        %v1769 = vpack.c.bf16 %v1761, %v1761
        %v1770 = vpack.c.bf16 %v1762, %v1762
        %v1771 = vpack.c.bf16 %v1763, %v1763
        %v1780 = vunpack.c.l.b16 %v1764
        %v1781 = vunpack.c.l.b16 %v1765
        %v1782 = vunpack.c.l.b16 %v1766
        %v1783 = vunpack.c.l.b16 %v1767
        %v1784 = vunpack.c.l.b16 %v1768
        %v1785 = vunpack.c.l.b16 %v1769
        %v1786 = vunpack.c.l.b16 %v1770
        %v1787 = vunpack.c.l.b16 %v1771
        %v1788 = vpack.c.b16 %v1780, %v1780
        %v1789 = vpack.c.b16 %v1781, %v1781
        %v1790 = vpack.c.b16 %v1782, %v1782
        %v1791 = vpack.c.b16 %v1783, %v1783
        %v1792 = vpack.c.b16 %v1784, %v1784
        %v1793 = vpack.c.b16 %v1785, %v1785
        %v1794 = vpack.c.b16 %v1786, %v1786
        %v1795 = vpack.c.b16 %v1787, %v1787
        %v1796 = vunpack.c.l.b16 %v1788
        %v1797 = vunpack.c.l.b16 %v1789
        %v1798 = vunpack.c.l.b16 %v1790
        %v1799 = vunpack.c.l.b16 %v1791
        %v1800 = vunpack.c.l.b16 %v1792
        %v1801 = vunpack.c.l.b16 %v1793
        %v1802 = vunpack.c.l.b16 %v1794
        %v1803 = vunpack.c.l.b16 %v1795
        %v1804 = vrot.slane %v1797, 7
        %v1805 = vsel %vm876, %v1804, %v1796
        %v1806 = vrot.slane %v1798, 6
        %v1807 = vsel %vm879, %v1806, %v1805
        %v1808 = vrot.slane %v1799, 5
        %v1809 = vsel %vm882, %v1808, %v1807
        %v1810 = vrot.slane %v1800, 4
        %v1811 = vsel %vm885, %v1810, %v1809
        %v1812 = vrot.slane %v1801, 3
        %v1813 = vsel %vm888, %v1812, %v1811
        %v1814 = vrot.slane %v1802, 2
        %v1815 = vsel %vm891, %v1814, %v1813
        %v1816 = vrot.slane %v1803, 1
        %v1817 = vsel %vm894, %v1816, %v1815
        %v1818 = vpack.c.b16 %v1817, %v1817
        %1820 = vst [vmem:[#allocation2 + $0x4] sm:$0xf] %v1818
        %v1821 = vld [vmem:[%s237] sm:$0xf]
        %v1822 = vld [vmem:[%s237 + $0x4] sm:$0xf]
        %v1823 = vld [vmem:[%s237 + $0x8] sm:$0xf]
        %v1824 = vld [vmem:[%s237 + $0xc] sm:$0xf]
        %v1825 = vld [vmem:[%s237 + $0x10] sm:$0xf]
        %v1826 = vld [vmem:[%s237 + $0x14] sm:$0xf]
        %v1827 = vld [vmem:[%s237 + $0x18] sm:$0xf]
        %v1828 = vld [vmem:[%s237 + $0x1c] sm:$0xf]
        %v1829 = vld [vmem:[%s237 + $0x20] sm:$0xf]
        %v1830 = vld [vmem:[%s237 + $0x24] sm:$0xf]
        %v1831 = vld [vmem:[%s237 + $0x28] sm:$0xf]
        %v1832 = vld [vmem:[%s237 + $0x2c] sm:$0xf]
        %v1833 = vld [vmem:[%s237 + $0x30] sm:$0xf]
        %v1834 = vld [vmem:[%s237 + $0x34] sm:$0xf]
        %v1835 = vld [vmem:[%s237 + $0x38] sm:$0xf]
        %v1836 = vld [vmem:[%s237 + $0x3c] sm:$0xf]
        %v1837 = vld [vmem:[%s237 + $0x40] sm:$0xf]
        %v1838 = vld [vmem:[%s237 + $0x44] sm:$0xf]
        %v1839 = vld [vmem:[%s237 + $0x48] sm:$0xf]
        %v1840 = vld [vmem:[%s237 + $0x4c] sm:$0xf]
        %v1841 = vld [vmem:[%s237 + $0x50] sm:$0xf]
        %v1842 = vld [vmem:[%s237 + $0x54] sm:$0xf]
        %v1843 = vld [vmem:[%s237 + $0x58] sm:$0xf]
        %v1844 = vld [vmem:[%s237 + $0x5c] sm:$0xf]
        %v1845 = vld [vmem:[#allocation6 + $0x14] sm:$0xff]
        %v1846 = vld [vmem:[#allocation6 + $0x1c] sm:$0xff]
        %v1847 = vld [vmem:[#allocation6 + $0x4c] sm:$0xff]
        %v1848 = vld [vmem:[#allocation6 + $0x54] sm:$0xff]
        %v1849 = vld [vmem:[#allocation6 + $0x84] sm:$0xff]
        %v1850 = vld [vmem:[#allocation6 + $0x8c] sm:$0xff]
        %v1851 = vld [vmem:[#allocation6 + $0xbc] sm:$0xff]
        %v1852 = vld [vmem:[#allocation6 + $0xc4] sm:$0xff]
        %v1853 = vld [vmem:[#allocation6 + $0xf4] sm:$0xff]
        %v1854 = vld [vmem:[#allocation6 + $0xfc] sm:$0xff]
        %v1855 = vld [vmem:[#allocation6 + $0x12c] sm:$0xff]
        %v1856 = vld [vmem:[#allocation6 + $0x134] sm:$0xff]
        %v1857 = vld [vmem:[#allocation6 + $0x164] sm:$0xff]
        %v1858 = vld [vmem:[#allocation6 + $0x16c] sm:$0xff]
        %v1859 = vld [vmem:[#allocation6 + $0x19c] sm:$0xff]
        %v1860 = vld [vmem:[#allocation6 + $0x1a4] sm:$0xff]
        %v1861 = vld [vmem:[#allocation6 + $0x1d4] sm:$0xff]
        %v1862 = vld [vmem:[#allocation6 + $0x1dc] sm:$0xff]
        %v1863 = vld [vmem:[#allocation6 + $0x20c] sm:$0xff]
        %v1864 = vld [vmem:[#allocation6 + $0x214] sm:$0xff]
        %v1865 = vld [vmem:[#allocation6 + $0x244] sm:$0xff]
        %v1866 = vld [vmem:[#allocation6 + $0x24c] sm:$0xff]
        %v1867 = vld [vmem:[#allocation6 + $0x27c] sm:$0xff]
        %v1868 = vld [vmem:[#allocation6 + $0x284] sm:$0xff]
        %v1869 = vld [vmem:[#allocation6 + $0x2b4] sm:$0xff]
        %v1870 = vld [vmem:[#allocation6 + $0x2bc] sm:$0xff]
        %v1871 = vld [vmem:[#allocation6 + $0x2ec] sm:$0xff]
        %v1872 = vld [vmem:[#allocation6 + $0x2f4] sm:$0xff]
        %v1873 = vld [vmem:[#allocation6 + $0x324] sm:$0xff]
        %v1874 = vld [vmem:[#allocation6 + $0x32c] sm:$0xff]
        %v1875 = vld [vmem:[#allocation6 + $0x35c] sm:$0xff]
        %v1876 = vld [vmem:[#allocation6 + $0x364] sm:$0xff]
        %v1901 = vunpack.c.l.b16 %v1821
        %v1902 = vunpack.c.l.b16 %v1822
        %v1903 = vunpack.c.l.b16 %v1823
        %v1904 = vunpack.c.l.b16 %v1824
        %v1905 = vunpack.c.l.b16 %v1825
        %v1906 = vunpack.c.l.b16 %v1826
        %v1907 = vunpack.c.l.b16 %v1827
        %v1908 = vunpack.c.l.b16 %v1828
        %v1909 = vunpack.c.l.b16 %v1829
        %v1910 = vunpack.c.l.b16 %v1830
        %v1911 = vunpack.c.l.b16 %v1831
        %v1912 = vunpack.c.l.b16 %v1832
        %v1913 = vunpack.c.l.b16 %v1833
        %v1914 = vunpack.c.l.b16 %v1834
        %v1915 = vunpack.c.l.b16 %v1835
        %v1916 = vunpack.c.l.b16 %v1836
        %v1917 = vunpack.c.l.b16 %v1837
        %v1918 = vunpack.c.l.b16 %v1838
        %v1919 = vunpack.c.l.b16 %v1839
        %v1920 = vunpack.c.l.b16 %v1840
        %v1921 = vunpack.c.l.b16 %v1841
        %v1922 = vunpack.c.l.b16 %v1842
        %v1923 = vunpack.c.l.b16 %v1843
        %v1924 = vunpack.c.l.b16 %v1844
        %v1925 = vpack.c.b16 %v1902, %v1901
        %v1926 = vpack.c.b16 %v1904, %v1903
        %v1927 = vpack.c.b16 %v1906, %v1905
        %v1928 = vpack.c.b16 %v1908, %v1907
        %v1929 = vpack.c.b16 %v1910, %v1909
        %v1930 = vpack.c.b16 %v1912, %v1911
        %v1931 = vpack.c.b16 %v1914, %v1913
        %v1932 = vpack.c.b16 %v1916, %v1915
        %v1933 = vpack.c.b16 %v1918, %v1917
        %v1934 = vpack.c.b16 %v1920, %v1919
        %v1935 = vpack.c.b16 %v1922, %v1921
        %v1936 = vpack.c.b16 %v1924, %v1923
        %v1981 = vunpack.c.l.b16 %v1845
        %v1982 = vunpack.c.h.b16 %v1845
        %v1983 = vunpack.c.l.b16 %v1846
        %v1984 = vunpack.c.h.b16 %v1846
        %v1985 = vunpack.c.l.b16 %v1847
        %v1986 = vunpack.c.h.b16 %v1847
        %v1987 = vunpack.c.l.b16 %v1848
        %v1988 = vunpack.c.h.b16 %v1848
        %v1989 = vunpack.c.l.b16 %v1849
        %v1990 = vunpack.c.h.b16 %v1849
        %v1991 = vunpack.c.l.b16 %v1850
        %v1992 = vunpack.c.h.b16 %v1850
        %v1993 = vunpack.c.l.b16 %v1851
        %v1994 = vunpack.c.h.b16 %v1851
        %v1995 = vunpack.c.l.b16 %v1852
        %v1996 = vunpack.c.h.b16 %v1852
        %v1997 = vunpack.c.l.b16 %v1853
        %v1998 = vunpack.c.h.b16 %v1853
        %v1999 = vunpack.c.l.b16 %v1854
        %v2000 = vunpack.c.h.b16 %v1854
        %v2001 = vunpack.c.l.b16 %v1855
        %v2002 = vunpack.c.h.b16 %v1855
        %v2003 = vunpack.c.l.b16 %v1856
        %v2004 = vunpack.c.h.b16 %v1856
        %v2005 = vunpack.c.l.b16 %v1857
        %v2006 = vunpack.c.h.b16 %v1857
        %v2007 = vunpack.c.l.b16 %v1858
        %v2008 = vunpack.c.h.b16 %v1858
        %v2009 = vunpack.c.l.b16 %v1859
        %v2010 = vunpack.c.h.b16 %v1859
        %v2011 = vunpack.c.l.b16 %v1860
        %v2012 = vunpack.c.h.b16 %v1860
        %v2013 = vunpack.c.l.b16 %v1861
        %v2014 = vunpack.c.h.b16 %v1861
        %v2015 = vunpack.c.l.b16 %v1862
        %v2016 = vunpack.c.h.b16 %v1862
        %v2017 = vunpack.c.l.b16 %v1863
        %v2018 = vunpack.c.h.b16 %v1863
        %v2019 = vunpack.c.l.b16 %v1864
        %v2020 = vunpack.c.h.b16 %v1864
        %v2021 = vunpack.c.l.b16 %v1865
        %v2022 = vunpack.c.h.b16 %v1865
        %v2023 = vunpack.c.l.b16 %v1866
        %v2024 = vunpack.c.h.b16 %v1866
        %v2025 = vunpack.c.l.b16 %v1867
        %v2026 = vunpack.c.h.b16 %v1867
        %v2027 = vunpack.c.l.b16 %v1868
        %v2028 = vunpack.c.h.b16 %v1868
        %v2029 = vunpack.c.l.b16 %v1869
        %v2030 = vunpack.c.h.b16 %v1869
        %v2031 = vunpack.c.l.b16 %v1870
        %v2032 = vunpack.c.h.b16 %v1870
        %v2033 = vunpack.c.l.b16 %v1871
        %v2034 = vunpack.c.h.b16 %v1871
        %v2035 = vunpack.c.l.b16 %v1872
        %v2036 = vunpack.c.h.b16 %v1872
        %v2037 = vunpack.c.l.b16 %v1873
        %v2038 = vunpack.c.h.b16 %v1873
        %v2039 = vunpack.c.l.b16 %v1874
        %v2040 = vunpack.c.h.b16 %v1874
        %v2041 = vunpack.c.l.b16 %v1875
        %v2042 = vunpack.c.h.b16 %v1875
        %v2043 = vunpack.c.l.b16 %v1876
        %v2044 = vunpack.c.h.b16 %v1876
        %v2045 = vpack.c.b16 %v1985, %v1981
        %v2046 = vpack.c.b16 %v1986, %v1982
        %v2047 = vpack.c.b16 %v1987, %v1983
        %v2048 = vpack.c.b16 %v1988, %v1984
        %v2049 = vpack.c.b16 %v1993, %v1989
        %v2050 = vpack.c.b16 %v1994, %v1990
        %v2051 = vpack.c.b16 %v1995, %v1991
        %v2052 = vpack.c.b16 %v1996, %v1992
        %v2053 = vpack.c.b16 %v2001, %v1997
        %v2054 = vpack.c.b16 %v2002, %v1998
        %v2055 = vpack.c.b16 %v2003, %v1999
        %v2056 = vpack.c.b16 %v2004, %v2000
        %v2057 = vpack.c.b16 %v2009, %v2005
        %v2058 = vpack.c.b16 %v2010, %v2006
        %v2059 = vpack.c.b16 %v2011, %v2007
        %v2060 = vpack.c.b16 %v2012, %v2008
        %v2061 = vpack.c.b16 %v2017, %v2013
        %v2062 = vpack.c.b16 %v2018, %v2014
        %v2063 = vpack.c.b16 %v2019, %v2015
        %v2064 = vpack.c.b16 %v2020, %v2016
        %v2065 = vpack.c.b16 %v2025, %v2021
        %v2066 = vpack.c.b16 %v2026, %v2022
        %v2067 = vpack.c.b16 %v2027, %v2023
        %v2068 = vpack.c.b16 %v2028, %v2024
        %v2069 = vpack.c.b16 %v2033, %v2029
        %v2070 = vpack.c.b16 %v2034, %v2030
        %v2071 = vpack.c.b16 %v2035, %v2031
        %v2072 = vpack.c.b16 %v2036, %v2032
        %v2073 = vpack.c.b16 %v2041, %v2037
        %v2074 = vpack.c.b16 %v2042, %v2038
        %v2075 = vpack.c.b16 %v2043, %v2039
        %v2076 = vpack.c.b16 %v2044, %v2040
        %2109 = vmatprep.subr.bf16.mxu0 %v2046
        %2110 = vmatpush1.bf16.msra.mxu0 %v2045
        %2111 = vmatprep.subr.bf16.mxu0 %v2050
        %2112 = vmatpush1.bf16.msra.mxu0 %v2049
        %2113 = vmatprep.subr.bf16.mxu0 %v2054
        %2114 = vmatpush1.bf16.msra.mxu0 %v2053
        %2115 = vmatprep.subr.bf16.mxu0 %v2058
        %2116 = vmatpush1.bf16.msra.mxu0 %v2057
        %2117 = vmatprep.subr.bf16.mxu0 %v2062
        %2118 = vmatpush1.bf16.msra.mxu0 %v2061
        %2119 = vmatprep.subr.bf16.mxu0 %v2066
        %2120 = vmatpush1.bf16.msra.mxu0 %v2065
        %2121 = vmatprep.subr.bf16.mxu0 %v2070
        %2122 = vmatpush1.bf16.msra.mxu0 %v2069
        %2123 = vmatprep.subr.bf16.mxu0 %v2074
        %2124 = vmatpush1.bf16.msra.mxu0 %v2073
        %2125 = vmatprep.subr.bf16.mxu0 0
        %2126 = vmatpush1.bf16.msra.mxu0 0
        %2127 = vmatprep.subr.bf16.mxu0 0
        %2128 = vmatpush1.bf16.msra.mxu0 0
        %2129 = vmatprep.subr.bf16.mxu0 0
        %2130 = vmatpush1.bf16.msra.mxu0 0
        %2131 = vmatprep.subr.bf16.mxu0 0
        %2132 = vmatpush1.bf16.msra.mxu0 0
        %2133 = vmatprep.subr.bf16.mxu0 0
        %2134 = vmatpush1.bf16.msra.mxu0 0
        %2135 = vmatprep.subr.bf16.mxu0 0
        %2136 = vmatpush1.bf16.msra.mxu0 0
        %2137 = vmatprep.subr.bf16.mxu0 0
        %2138 = vmatpush1.bf16.msra.mxu0 0
        %2139 = vmatprep.subr.bf16.mxu0 0
        %2140 = vmatpush1.bf16.msra.mxu0 0
        %2141 = vmatprep.mubr.bf16.mxu0 0
        %2142 = vmatmul.mubr.bf16.gmra.mrb[0].mxu0 %v1925
        %v2143 = vpop.f32.mrb[0].mxu0
        %v2144 = vadd.f32 0.0, %v2143
        %v2145 = vpop.f32.mrb[0].mxu0
        %v2146 = vadd.f32 0.0, %v2145
        %v2147 = vpop.f32.mrb[0].mxu0
        %v2148 = vadd.f32 0.0, %v2147
        %v2149 = vpop.f32.mrb[0].mxu0
        %v2150 = vadd.f32 0.0, %v2149
        %2151 = vmatprep.mubr.bf16.mxu0 0
        %2152 = vmatmul.mubr.bf16.gmra.mrb[0].mxu0 %v1926
        %v2153 = vpop.f32.mrb[0].mxu0
        %v2154 = vadd.f32 0.0, %v2153
        %v2155 = vpop.f32.mrb[0].mxu0
        %v2156 = vadd.f32 0.0, %v2155
        %v2157 = vpop.f32.mrb[0].mxu0
        %v2158 = vadd.f32 0.0, %v2157
        %v2159 = vpop.f32.mrb[0].mxu0
        %v2160 = vadd.f32 0.0, %v2159
        %2161 = vmatprep.mubr.bf16.mxu0 0
        %2162 = vmatmul.mubr.bf16.gmra.mrb[0].mxu0 %v1927
        %v2163 = vpop.f32.mrb[0].mxu0
        %v2164 = vadd.f32 0.0, %v2163
        %v2165 = vpop.f32.mrb[0].mxu0
        %v2166 = vadd.f32 0.0, %v2165
        %v2167 = vpop.f32.mrb[0].mxu0
        %v2168 = vadd.f32 0.0, %v2167
        %v2169 = vpop.f32.mrb[0].mxu0
        %v2170 = vadd.f32 0.0, %v2169
        %2171 = vmatprep.mubr.bf16.mxu0 0
        %2172 = vmatmul.mubr.bf16.gmra.mrb[0].mxu0 %v1928
        %v2173 = vpop.f32.mrb[0].mxu0
        %v2174 = vadd.f32 0.0, %v2173
        %v2175 = vpop.f32.mrb[0].mxu0
        %v2176 = vadd.f32 0.0, %v2175
        %v2177 = vpop.f32.mrb[0].mxu0
        %v2178 = vadd.f32 0.0, %v2177
        %v2179 = vpop.f32.mrb[0].mxu0
        %v2180 = vadd.f32 0.0, %v2179
        %2181 = vmatprep.mubr.bf16.mxu0 0
        %2182 = vmatmul.mubr.bf16.gmra.mrb[0].mxu0 %v1929
        %v2183 = vpop.f32.mrb[0].mxu0
        %v2184 = vadd.f32 0.0, %v2183
        %v2185 = vpop.f32.mrb[0].mxu0
        %v2186 = vadd.f32 0.0, %v2185
        %v2187 = vpop.f32.mrb[0].mxu0
        %v2188 = vadd.f32 0.0, %v2187
        %v2189 = vpop.f32.mrb[0].mxu0
        %v2190 = vadd.f32 0.0, %v2189
        %2191 = vmatprep.mubr.bf16.mxu0 0
        %2192 = vmatmul.mubr.bf16.gmra.mrb[0].mxu0 %v1930
        %v2193 = vpop.f32.mrb[0].mxu0
        %v2194 = vadd.f32 0.0, %v2193
        %v2195 = vpop.f32.mrb[0].mxu0
        %v2196 = vadd.f32 0.0, %v2195
        %v2197 = vpop.f32.mrb[0].mxu0
        %v2198 = vadd.f32 0.0, %v2197
        %v2199 = vpop.f32.mrb[0].mxu0
        %v2200 = vadd.f32 0.0, %v2199
        %2201 = vmatprep.mubr.bf16.mxu0 0
        %2202 = vmatmul.mubr.bf16.gmra.mrb[0].mxu0 %v1931
        %v2203 = vpop.f32.mrb[0].mxu0
        %v2204 = vadd.f32 0.0, %v2203
        %v2205 = vpop.f32.mrb[0].mxu0
        %v2206 = vadd.f32 0.0, %v2205
        %v2207 = vpop.f32.mrb[0].mxu0
        %v2208 = vadd.f32 0.0, %v2207
        %v2209 = vpop.f32.mrb[0].mxu0
        %v2210 = vadd.f32 0.0, %v2209
        %2211 = vmatprep.mubr.bf16.mxu0 0
        %2212 = vmatmul.mubr.bf16.gmra.mrb[0].mxu0 %v1932
        %v2213 = vpop.f32.mrb[0].mxu0
        %v2214 = vadd.f32 0.0, %v2213
        %v2215 = vpop.f32.mrb[0].mxu0
        %v2216 = vadd.f32 0.0, %v2215
        %v2217 = vpop.f32.mrb[0].mxu0
        %v2218 = vadd.f32 0.0, %v2217
        %v2219 = vpop.f32.mrb[0].mxu0
        %v2220 = vadd.f32 0.0, %v2219
        %2221 = vmatprep.mubr.bf16.mxu0 0
        %2222 = vmatmul.mubr.bf16.gmra.mrb[0].mxu0 %v1933
        %v2223 = vpop.f32.mrb[0].mxu0
        %v2224 = vadd.f32 0.0, %v2223
        %v2225 = vpop.f32.mrb[0].mxu0
        %v2226 = vadd.f32 0.0, %v2225
        %v2227 = vpop.f32.mrb[0].mxu0
        %v2228 = vadd.f32 0.0, %v2227
        %v2229 = vpop.f32.mrb[0].mxu0
        %v2230 = vadd.f32 0.0, %v2229
        %2231 = vmatprep.mubr.bf16.mxu0 0
        %2232 = vmatmul.mubr.bf16.gmra.mrb[0].mxu0 %v1934
        %v2233 = vpop.f32.mrb[0].mxu0
        %v2234 = vadd.f32 0.0, %v2233
        %v2235 = vpop.f32.mrb[0].mxu0
        %v2236 = vadd.f32 0.0, %v2235
        %v2237 = vpop.f32.mrb[0].mxu0
        %v2238 = vadd.f32 0.0, %v2237
        %v2239 = vpop.f32.mrb[0].mxu0
        %v2240 = vadd.f32 0.0, %v2239
        %2241 = vmatprep.mubr.bf16.mxu0 0
        %2242 = vmatmul.mubr.bf16.gmra.mrb[0].mxu0 %v1935
        %v2243 = vpop.f32.mrb[0].mxu0
        %v2244 = vadd.f32 0.0, %v2243
        %v2245 = vpop.f32.mrb[0].mxu0
        %v2246 = vadd.f32 0.0, %v2245
        %v2247 = vpop.f32.mrb[0].mxu0
        %v2248 = vadd.f32 0.0, %v2247
        %v2249 = vpop.f32.mrb[0].mxu0
        %v2250 = vadd.f32 0.0, %v2249
        %2251 = vmatprep.mubr.bf16.mxu0 0
        %2252 = vmatmul.mubr.bf16.gmra.mrb[0].mxu0 %v1936
        %v2253 = vpop.f32.mrb[0].mxu0
        %v2254 = vadd.f32 0.0, %v2253
        %v2255 = vpop.f32.mrb[0].mxu0
        %v2256 = vadd.f32 0.0, %v2255
        %v2257 = vpop.f32.mrb[0].mxu0
        %v2258 = vadd.f32 0.0, %v2257
        %v2259 = vpop.f32.mrb[0].mxu0
        %v2260 = vadd.f32 0.0, %v2259
        %2261 = vdwg.mxu0
        %2262 = vmatprep.subr.bf16.mxu0 %v2048
        %2263 = vmatpush1.bf16.msra.mxu0 %v2047
        %2264 = vmatprep.subr.bf16.mxu0 %v2052
        %2265 = vmatpush1.bf16.msra.mxu0 %v2051
        %2266 = vmatprep.subr.bf16.mxu0 %v2056
        %2267 = vmatpush1.bf16.msra.mxu0 %v2055
        %2268 = vmatprep.subr.bf16.mxu0 %v2060
        %2269 = vmatpush1.bf16.msra.mxu0 %v2059
        %2270 = vmatprep.subr.bf16.mxu0 %v2064
        %2271 = vmatpush1.bf16.msra.mxu0 %v2063
        %2272 = vmatprep.subr.bf16.mxu0 %v2068
        %2273 = vmatpush1.bf16.msra.mxu0 %v2067
        %2274 = vmatprep.subr.bf16.mxu0 %v2072
        %2275 = vmatpush1.bf16.msra.mxu0 %v2071
        %2276 = vmatprep.subr.bf16.mxu0 %v2076
        %2277 = vmatpush1.bf16.msra.mxu0 %v2075
        %2278 = vmatprep.subr.bf16.mxu0 0
        %2279 = vmatpush1.bf16.msra.mxu0 0
        %2280 = vmatprep.subr.bf16.mxu0 0
        %2281 = vmatpush1.bf16.msra.mxu0 0
        %2282 = vmatprep.subr.bf16.mxu0 0
        %2283 = vmatpush1.bf16.msra.mxu0 0
        %2284 = vmatprep.subr.bf16.mxu0 0
        %2285 = vmatpush1.bf16.msra.mxu0 0
        %2286 = vmatprep.subr.bf16.mxu0 0
        %2287 = vmatpush1.bf16.msra.mxu0 0
        %2288 = vmatprep.subr.bf16.mxu0 0
        %2289 = vmatpush1.bf16.msra.mxu0 0
        %2290 = vmatprep.subr.bf16.mxu0 0
        %2291 = vmatpush1.bf16.msra.mxu0 0
        %2292 = vmatprep.subr.bf16.mxu0 0
        %2293 = vmatpush1.bf16.msra.mxu0 0
        %2294 = vmatprep.mubr.bf16.mxu0 0
        %2295 = vmatmul.mubr.bf16.gmra.mrb[0].mxu0 %v1925
        %v2296 = vpop.f32.mrb[0].mxu0
        %v2297 = vadd.f32 0.0, %v2296
        %v2298 = vpop.f32.mrb[0].mxu0
        %v2299 = vadd.f32 0.0, %v2298
        %v2300 = vpop.f32.mrb[0].mxu0
        %v2301 = vadd.f32 0.0, %v2300
        %v2302 = vpop.f32.mrb[0].mxu0
        %v2303 = vadd.f32 0.0, %v2302
        %2304 = vmatprep.mubr.bf16.mxu0 0
        %2305 = vmatmul.mubr.bf16.gmra.mrb[0].mxu0 %v1926
        %v2306 = vpop.f32.mrb[0].mxu0
        %v2307 = vadd.f32 0.0, %v2306
        %v2308 = vpop.f32.mrb[0].mxu0
        %v2309 = vadd.f32 0.0, %v2308
        %v2310 = vpop.f32.mrb[0].mxu0
        %v2311 = vadd.f32 0.0, %v2310
        %v2312 = vpop.f32.mrb[0].mxu0
        %v2313 = vadd.f32 0.0, %v2312
        %2314 = vmatprep.mubr.bf16.mxu0 0
        %2315 = vmatmul.mubr.bf16.gmra.mrb[0].mxu0 %v1927
        %v2316 = vpop.f32.mrb[0].mxu0
        %v2317 = vadd.f32 0.0, %v2316
        %v2318 = vpop.f32.mrb[0].mxu0
        %v2319 = vadd.f32 0.0, %v2318
        %v2320 = vpop.f32.mrb[0].mxu0
        %v2321 = vadd.f32 0.0, %v2320
        %v2322 = vpop.f32.mrb[0].mxu0
        %v2323 = vadd.f32 0.0, %v2322
        %2324 = vmatprep.mubr.bf16.mxu0 0
        %2325 = vmatmul.mubr.bf16.gmra.mrb[0].mxu0 %v1928
        %v2326 = vpop.f32.mrb[0].mxu0
        %v2327 = vadd.f32 0.0, %v2326
        %v2328 = vpop.f32.mrb[0].mxu0
        %v2329 = vadd.f32 0.0, %v2328
        %v2330 = vpop.f32.mrb[0].mxu0
        %v2331 = vadd.f32 0.0, %v2330
        %v2332 = vpop.f32.mrb[0].mxu0
        %v2333 = vadd.f32 0.0, %v2332
        %2334 = vmatprep.mubr.bf16.mxu0 0
        %2335 = vmatmul.mubr.bf16.gmra.mrb[0].mxu0 %v1929
        %v2336 = vpop.f32.mrb[0].mxu0
        %v2337 = vadd.f32 0.0, %v2336
        %v2338 = vpop.f32.mrb[0].mxu0
        %v2339 = vadd.f32 0.0, %v2338
        %v2340 = vpop.f32.mrb[0].mxu0
        %v2341 = vadd.f32 0.0, %v2340
        %v2342 = vpop.f32.mrb[0].mxu0
        %v2343 = vadd.f32 0.0, %v2342
        %2344 = vmatprep.mubr.bf16.mxu0 0
        %2345 = vmatmul.mubr.bf16.gmra.mrb[0].mxu0 %v1930
        %v2346 = vpop.f32.mrb[0].mxu0
        %v2347 = vadd.f32 0.0, %v2346
        %v2348 = vpop.f32.mrb[0].mxu0
        %v2349 = vadd.f32 0.0, %v2348
        %v2350 = vpop.f32.mrb[0].mxu0
        %v2351 = vadd.f32 0.0, %v2350
        %v2352 = vpop.f32.mrb[0].mxu0
        %v2353 = vadd.f32 0.0, %v2352
        %2354 = vmatprep.mubr.bf16.mxu0 0
        %2355 = vmatmul.mubr.bf16.gmra.mrb[0].mxu0 %v1931
        %v2356 = vpop.f32.mrb[0].mxu0
        %v2357 = vadd.f32 0.0, %v2356
        %v2358 = vpop.f32.mrb[0].mxu0
        %v2359 = vadd.f32 0.0, %v2358
        %v2360 = vpop.f32.mrb[0].mxu0
        %v2361 = vadd.f32 0.0, %v2360
        %v2362 = vpop.f32.mrb[0].mxu0
        %v2363 = vadd.f32 0.0, %v2362
        %2364 = vmatprep.mubr.bf16.mxu0 0
        %2365 = vmatmul.mubr.bf16.gmra.mrb[0].mxu0 %v1932
        %v2366 = vpop.f32.mrb[0].mxu0
        %v2367 = vadd.f32 0.0, %v2366
        %v2368 = vpop.f32.mrb[0].mxu0
        %v2369 = vadd.f32 0.0, %v2368
        %v2370 = vpop.f32.mrb[0].mxu0
        %v2371 = vadd.f32 0.0, %v2370
        %v2372 = vpop.f32.mrb[0].mxu0
        %v2373 = vadd.f32 0.0, %v2372
        %2374 = vmatprep.mubr.bf16.mxu0 0
        %2375 = vmatmul.mubr.bf16.gmra.mrb[0].mxu0 %v1933
        %v2376 = vpop.f32.mrb[0].mxu0
        %v2377 = vadd.f32 0.0, %v2376
        %v2378 = vpop.f32.mrb[0].mxu0
        %v2379 = vadd.f32 0.0, %v2378
        %v2380 = vpop.f32.mrb[0].mxu0
        %v2381 = vadd.f32 0.0, %v2380
        %v2382 = vpop.f32.mrb[0].mxu0
        %v2383 = vadd.f32 0.0, %v2382
        %2384 = vmatprep.mubr.bf16.mxu0 0
        %2385 = vmatmul.mubr.bf16.gmra.mrb[0].mxu0 %v1934
        %v2386 = vpop.f32.mrb[0].mxu0
        %v2387 = vadd.f32 0.0, %v2386
        %v2388 = vpop.f32.mrb[0].mxu0
        %v2389 = vadd.f32 0.0, %v2388
        %v2390 = vpop.f32.mrb[0].mxu0
        %v2391 = vadd.f32 0.0, %v2390
        %v2392 = vpop.f32.mrb[0].mxu0
        %v2393 = vadd.f32 0.0, %v2392
        %2394 = vmatprep.mubr.bf16.mxu0 0
        %2395 = vmatmul.mubr.bf16.gmra.mrb[0].mxu0 %v1935
        %v2396 = vpop.f32.mrb[0].mxu0
        %v2397 = vadd.f32 0.0, %v2396
        %v2398 = vpop.f32.mrb[0].mxu0
        %v2399 = vadd.f32 0.0, %v2398
        %v2400 = vpop.f32.mrb[0].mxu0
        %v2401 = vadd.f32 0.0, %v2400
        %v2402 = vpop.f32.mrb[0].mxu0
        %v2403 = vadd.f32 0.0, %v2402
        %2404 = vmatprep.mubr.bf16.mxu0 0
        %2405 = vmatmul.mubr.bf16.gmra.mrb[0].mxu0 %v1936
        %v2406 = vpop.f32.mrb[0].mxu0
        %v2407 = vadd.f32 0.0, %v2406
        %v2408 = vpop.f32.mrb[0].mxu0
        %v2409 = vadd.f32 0.0, %v2408
        %v2410 = vpop.f32.mrb[0].mxu0
        %v2411 = vadd.f32 0.0, %v2410
        %v2412 = vpop.f32.mrb[0].mxu0
        %v2413 = vadd.f32 0.0, %v2412
        %2414 = vdwg.mxu0
        %v2439 = vrot.slane %v2146, 1
        %v2440 = vrot.slane %v2150, 1
        %v2441 = vsel %vm643, %v2439, %v2440
        %v2442 = vrot.slane %v2156, 1
        %v2443 = vsel %vm643, %v2440, %v2442
        %v2444 = vrot.slane %v2160, 1
        %v2445 = vrot.slane %v2166, 1
        %v2446 = vsel %vm643, %v2444, %v2445
        %v2447 = vrot.slane %v2170, 1
        %v2448 = vsel %vm643, %v2445, %v2447
        %v2449 = vrot.slane %v2176, 1
        %v2450 = vrot.slane %v2180, 1
        %v2451 = vsel %vm643, %v2449, %v2450
        %v2452 = vrot.slane %v2186, 1
        %v2453 = vsel %vm643, %v2450, %v2452
        %v2454 = vrot.slane %v2190, 1
        %v2455 = vrot.slane %v2196, 1
        %v2456 = vsel %vm643, %v2454, %v2455
        %v2457 = vrot.slane %v2200, 1
        %v2458 = vsel %vm643, %v2455, %v2457
        %v2459 = vrot.slane %v2206, 1
        %v2460 = vrot.slane %v2210, 1
        %v2461 = vsel %vm643, %v2459, %v2460
        %v2462 = vrot.slane %v2216, 1
        %v2463 = vsel %vm643, %v2460, %v2462
        %v2464 = vrot.slane %v2220, 1
        %v2465 = vrot.slane %v2226, 1
        %v2466 = vsel %vm643, %v2464, %v2465
        %v2467 = vrot.slane %v2230, 1
        %v2468 = vsel %vm643, %v2465, %v2467
        %v2469 = vrot.slane %v2236, 1
        %v2470 = vrot.slane %v2240, 1
        %v2471 = vsel %vm643, %v2469, %v2470
        %v2472 = vrot.slane %v2246, 1
        %v2473 = vsel %vm643, %v2470, %v2472
        %v2474 = vrot.slane %v2250, 1
        %v2475 = vrot.slane %v2256, 1
        %v2476 = vsel %vm643, %v2474, %v2475
        %v2477 = vrot.slane %v2260, 1
        %v2478 = vsel %vm643, %v2475, %v2477
        %v2503 = vadd.f32 %v2144, %v2441
        %v2504 = vadd.f32 %v2148, %v2443
        %v2505 = vadd.f32 %v2154, %v2442
        %v2506 = vadd.f32 %v2158, %v2446
        %v2507 = vadd.f32 %v2164, %v2448
        %v2508 = vadd.f32 %v2168, %v2447
        %v2509 = vadd.f32 %v2174, %v2451
        %v2510 = vadd.f32 %v2178, %v2453
        %v2511 = vadd.f32 %v2184, %v2452
        %v2512 = vadd.f32 %v2188, %v2456
        %v2513 = vadd.f32 %v2194, %v2458
        %v2514 = vadd.f32 %v2198, %v2457
        %v2515 = vadd.f32 %v2204, %v2461
        %v2516 = vadd.f32 %v2208, %v2463
        %v2517 = vadd.f32 %v2214, %v2462
        %v2518 = vadd.f32 %v2218, %v2466
        %v2519 = vadd.f32 %v2224, %v2468
        %v2520 = vadd.f32 %v2228, %v2467
        %v2521 = vadd.f32 %v2234, %v2471
        %v2522 = vadd.f32 %v2238, %v2473
        %v2523 = vadd.f32 %v2244, %v2472
        %v2524 = vadd.f32 %v2248, %v2476
        %v2525 = vadd.f32 %v2254, %v2478
        %v2526 = vadd.f32 %v2258, %v2477
        %v2551 = vrot.slane %v2297, 2
        %v2552 = vrot.slane %v2301, 2
        %v2553 = vsel %vm1573, %v2551, %v2552
        %v2554 = vrot.slane %v2307, 2
        %v2555 = vsel %vm1573, %v2552, %v2554
        %v2556 = vrot.slane %v2311, 2
        %v2557 = vrot.slane %v2317, 2
        %v2558 = vsel %vm1573, %v2556, %v2557
        %v2559 = vrot.slane %v2321, 2
        %v2560 = vsel %vm1573, %v2557, %v2559
        %v2561 = vrot.slane %v2327, 2
        %v2562 = vrot.slane %v2331, 2
        %v2563 = vsel %vm1573, %v2561, %v2562
        %v2564 = vrot.slane %v2337, 2
        %v2565 = vsel %vm1573, %v2562, %v2564
        %v2566 = vrot.slane %v2341, 2
        %v2567 = vrot.slane %v2347, 2
        %v2568 = vsel %vm1573, %v2566, %v2567
        %v2569 = vrot.slane %v2351, 2
        %v2570 = vsel %vm1573, %v2567, %v2569
        %v2571 = vrot.slane %v2357, 2
        %v2572 = vrot.slane %v2361, 2
        %v2573 = vsel %vm1573, %v2571, %v2572
        %v2574 = vrot.slane %v2367, 2
        %v2575 = vsel %vm1573, %v2572, %v2574
        %v2576 = vrot.slane %v2371, 2
        %v2577 = vrot.slane %v2377, 2
        %v2578 = vsel %vm1573, %v2576, %v2577
        %v2579 = vrot.slane %v2381, 2
        %v2580 = vsel %vm1573, %v2577, %v2579
        %v2581 = vrot.slane %v2387, 2
        %v2582 = vrot.slane %v2391, 2
        %v2583 = vsel %vm1573, %v2581, %v2582
        %v2584 = vrot.slane %v2397, 2
        %v2585 = vsel %vm1573, %v2582, %v2584
        %v2586 = vrot.slane %v2401, 2
        %v2587 = vrot.slane %v2407, 2
        %v2588 = vsel %vm1573, %v2586, %v2587
        %v2589 = vrot.slane %v2411, 2
        %v2590 = vsel %vm1573, %v2587, %v2589
        %v2615 = vadd.f32 %v2503, %v2553
        %v2616 = vadd.f32 %v2504, %v2555
        %v2617 = vadd.f32 %v2505, %v2554
        %v2618 = vadd.f32 %v2506, %v2558
        %v2619 = vadd.f32 %v2507, %v2560
        %v2620 = vadd.f32 %v2508, %v2559
        %v2621 = vadd.f32 %v2509, %v2563
        %v2622 = vadd.f32 %v2510, %v2565
        %v2623 = vadd.f32 %v2511, %v2564
        %v2624 = vadd.f32 %v2512, %v2568
        %v2625 = vadd.f32 %v2513, %v2570
        %v2626 = vadd.f32 %v2514, %v2569
        %v2627 = vadd.f32 %v2515, %v2573
        %v2628 = vadd.f32 %v2516, %v2575
        %v2629 = vadd.f32 %v2517, %v2574
        %v2630 = vadd.f32 %v2518, %v2578
        %v2631 = vadd.f32 %v2519, %v2580
        %v2632 = vadd.f32 %v2520, %v2579
        %v2633 = vadd.f32 %v2521, %v2583
        %v2634 = vadd.f32 %v2522, %v2585
        %v2635 = vadd.f32 %v2523, %v2584
        %v2636 = vadd.f32 %v2524, %v2588
        %v2637 = vadd.f32 %v2525, %v2590
        %v2638 = vadd.f32 %v2526, %v2589
        %vm2663 = vcmask 1044480
        %v2664 = vrot.slane %v2299, 3
        %v2665 = vrot.slane %v2303, 3
        %v2666 = vsel %vm2663, %v2664, %v2665
        %v2667 = vrot.slane %v2309, 3
        %v2668 = vsel %vm2663, %v2665, %v2667
        %v2669 = vrot.slane %v2313, 3
        %v2670 = vrot.slane %v2319, 3
        %v2671 = vsel %vm2663, %v2669, %v2670
        %v2672 = vrot.slane %v2323, 3
        %v2673 = vsel %vm2663, %v2670, %v2672
        %v2674 = vrot.slane %v2329, 3
        %v2675 = vrot.slane %v2333, 3
        %v2676 = vsel %vm2663, %v2674, %v2675
        %v2677 = vrot.slane %v2339, 3
        %v2678 = vsel %vm2663, %v2675, %v2677
        %v2679 = vrot.slane %v2343, 3
        %v2680 = vrot.slane %v2349, 3
        %v2681 = vsel %vm2663, %v2679, %v2680
        %v2682 = vrot.slane %v2353, 3
        %v2683 = vsel %vm2663, %v2680, %v2682
        %v2684 = vrot.slane %v2359, 3
        %v2685 = vrot.slane %v2363, 3
        %v2686 = vsel %vm2663, %v2684, %v2685
        %v2687 = vrot.slane %v2369, 3
        %v2688 = vsel %vm2663, %v2685, %v2687
        %v2689 = vrot.slane %v2373, 3
        %v2690 = vrot.slane %v2379, 3
        %v2691 = vsel %vm2663, %v2689, %v2690
        %v2692 = vrot.slane %v2383, 3
        %v2693 = vsel %vm2663, %v2690, %v2692
        %v2694 = vrot.slane %v2389, 3
        %v2695 = vrot.slane %v2393, 3
        %v2696 = vsel %vm2663, %v2694, %v2695
        %v2697 = vrot.slane %v2399, 3
        %v2698 = vsel %vm2663, %v2695, %v2697
        %v2699 = vrot.slane %v2403, 3
        %v2700 = vrot.slane %v2409, 3
        %v2701 = vsel %vm2663, %v2699, %v2700
        %v2702 = vrot.slane %v2413, 3
        %v2703 = vsel %vm2663, %v2700, %v2702
        %v2728 = vadd.f32 %v2615, %v2666
        %v2729 = vadd.f32 %v2616, %v2668
        %v2730 = vadd.f32 %v2617, %v2667
        %v2731 = vadd.f32 %v2618, %v2671
        %v2732 = vadd.f32 %v2619, %v2673
        %v2733 = vadd.f32 %v2620, %v2672
        %v2734 = vadd.f32 %v2621, %v2676
        %v2735 = vadd.f32 %v2622, %v2678
        %v2736 = vadd.f32 %v2623, %v2677
        %v2737 = vadd.f32 %v2624, %v2681
        %v2738 = vadd.f32 %v2625, %v2683
        %v2739 = vadd.f32 %v2626, %v2682
        %v2740 = vadd.f32 %v2627, %v2686
        %v2741 = vadd.f32 %v2628, %v2688
        %v2742 = vadd.f32 %v2629, %v2687
        %v2743 = vadd.f32 %v2630, %v2691
        %v2744 = vadd.f32 %v2631, %v2693
        %v2745 = vadd.f32 %v2632, %v2692
        %v2746 = vadd.f32 %v2633, %v2696
        %v2747 = vadd.f32 %v2634, %v2698
        %v2748 = vadd.f32 %v2635, %v2697
        %v2749 = vadd.f32 %v2636, %v2701
        %v2750 = vadd.f32 %v2637, %v2703
        %v2751 = vadd.f32 %v2638, %v2702
        %vm2752 = vcmask 1047553
        %v2753 = vsel %vm2752, %v2728, -inf
        %v2754 = vmax.f32 %v2753, %v2729
        %v2755 = vsel %vm735, %v2730, -inf
        %v2756 = vmax.f32 %v2754, %v2755
        %v2757 = vrot.slane %v2756, 4
        %v2758 = vmax.f32 %v2756, %v2757
        %v2759 = vrot.slane %v2758, 2
        %v2760 = vmax.f32 %v2758, %v2759
        %v2761 = vrot.slane %v2760, 1
        %v2762 = vmax.f32 %v2760, %v2761
        %v2763 = vsel %vm2752, %v2731, -inf
        %v2764 = vmax.f32 %v2763, %v2732
        %v2765 = vsel %vm735, %v2733, -inf
        %v2766 = vmax.f32 %v2764, %v2765
        %v2767 = vrot.slane %v2766, 4
        %v2768 = vmax.f32 %v2766, %v2767
        %v2769 = vrot.slane %v2768, 2
        %v2770 = vmax.f32 %v2768, %v2769
        %v2771 = vrot.slane %v2770, 1
        %v2772 = vmax.f32 %v2770, %v2771
        %v2773 = vsel %vm2752, %v2734, -inf
        %v2774 = vmax.f32 %v2773, %v2735
        %v2775 = vsel %vm735, %v2736, -inf
        %v2776 = vmax.f32 %v2774, %v2775
        %v2777 = vrot.slane %v2776, 4
        %v2778 = vmax.f32 %v2776, %v2777
        %v2779 = vrot.slane %v2778, 2
        %v2780 = vmax.f32 %v2778, %v2779
        %v2781 = vrot.slane %v2780, 1
        %v2782 = vmax.f32 %v2780, %v2781
        %v2783 = vsel %vm2752, %v2737, -inf
        %v2784 = vmax.f32 %v2783, %v2738
        %v2785 = vsel %vm735, %v2739, -inf
        %v2786 = vmax.f32 %v2784, %v2785
        %v2787 = vrot.slane %v2786, 4
        %v2788 = vmax.f32 %v2786, %v2787
        %v2789 = vrot.slane %v2788, 2
        %v2790 = vmax.f32 %v2788, %v2789
        %v2791 = vrot.slane %v2790, 1
        %v2792 = vmax.f32 %v2790, %v2791
        %v2793 = vsel %vm2752, %v2740, -inf
        %v2794 = vmax.f32 %v2793, %v2741
        %v2795 = vsel %vm735, %v2742, -inf
        %v2796 = vmax.f32 %v2794, %v2795
        %v2797 = vrot.slane %v2796, 4
        %v2798 = vmax.f32 %v2796, %v2797
        %v2799 = vrot.slane %v2798, 2
        %v2800 = vmax.f32 %v2798, %v2799
        %v2801 = vrot.slane %v2800, 1
        %v2802 = vmax.f32 %v2800, %v2801
        %v2803 = vsel %vm2752, %v2743, -inf
        %v2804 = vmax.f32 %v2803, %v2744
        %v2805 = vsel %vm735, %v2745, -inf
        %v2806 = vmax.f32 %v2804, %v2805
        %v2807 = vrot.slane %v2806, 4
        %v2808 = vmax.f32 %v2806, %v2807
        %v2809 = vrot.slane %v2808, 2
        %v2810 = vmax.f32 %v2808, %v2809
        %v2811 = vrot.slane %v2810, 1
        %v2812 = vmax.f32 %v2810, %v2811
        %v2813 = vsel %vm2752, %v2746, -inf
        %v2814 = vmax.f32 %v2813, %v2747
        %v2815 = vsel %vm735, %v2748, -inf
        %v2816 = vmax.f32 %v2814, %v2815
        %v2817 = vrot.slane %v2816, 4
        %v2818 = vmax.f32 %v2816, %v2817
        %v2819 = vrot.slane %v2818, 2
        %v2820 = vmax.f32 %v2818, %v2819
        %v2821 = vrot.slane %v2820, 1
        %v2822 = vmax.f32 %v2820, %v2821
        %v2823 = vsel %vm2752, %v2749, -inf
        %v2824 = vmax.f32 %v2823, %v2750
        %v2825 = vsel %vm735, %v2751, -inf
        %v2826 = vmax.f32 %v2824, %v2825
        %v2827 = vrot.slane %v2826, 4
        %v2828 = vmax.f32 %v2826, %v2827
        %v2829 = vrot.slane %v2828, 2
        %v2830 = vmax.f32 %v2828, %v2829
        %v2831 = vrot.slane %v2830, 1
        %v2832 = vmax.f32 %v2830, %v2831
        %v2833 = vld [vmem:[%s2 + $0x2] sm:$0x1]
        %v2834 = vlaneseq
        %v2835 = vshrl.u32 %v2834, 7
        %v2836 = vsub.s32 0, %v2835
        %v2837 = vrot.slane %v2833, %v2836
        %v2838 = vadd.f32 %v2762, %v2837
        %v2839 = vadd.f32 %v2772, %v2837
        %v2840 = vadd.f32 %v2782, %v2837
        %v2841 = vadd.f32 %v2792, %v2837
        %v2842 = vadd.f32 %v2802, %v2837
        %v2843 = vadd.f32 %v2812, %v2837
        %v2844 = vadd.f32 %v2822, %v2837
        %v2845 = vadd.f32 %v2832, %v2837
        %v2846 = vmax.f32 %v2838, 0.0
        %v2847 = vmax.f32 %v2839, 0.0
        %v2848 = vmax.f32 %v2840, 0.0
        %v2849 = vmax.f32 %v2841, 0.0
        %v2850 = vmax.f32 %v2842, 0.0
        %v2851 = vmax.f32 %v2843, 0.0
        %v2852 = vmax.f32 %v2844, 0.0
        %v2853 = vmax.f32 %v2845, 0.0
        %v2854 = vpack.c.bf16 %v2846, %v2846
        %v2855 = vpack.c.bf16 %v2847, %v2847
        %v2856 = vpack.c.bf16 %v2848, %v2848
        %v2857 = vpack.c.bf16 %v2849, %v2849
        %v2858 = vpack.c.bf16 %v2850, %v2850
        %v2859 = vpack.c.bf16 %v2851, %v2851
        %v2860 = vpack.c.bf16 %v2852, %v2852
        %v2861 = vpack.c.bf16 %v2853, %v2853
        %v2870 = vunpack.c.l.b16 %v2854
        %v2871 = vunpack.c.l.b16 %v2855
        %v2872 = vunpack.c.l.b16 %v2856
        %v2873 = vunpack.c.l.b16 %v2857
        %v2874 = vunpack.c.l.b16 %v2858
        %v2875 = vunpack.c.l.b16 %v2859
        %v2876 = vunpack.c.l.b16 %v2860
        %v2877 = vunpack.c.l.b16 %v2861
        %v2878 = vpack.c.b16 %v2870, %v2870
        %v2879 = vpack.c.b16 %v2871, %v2871
        %v2880 = vpack.c.b16 %v2872, %v2872
        %v2881 = vpack.c.b16 %v2873, %v2873
        %v2882 = vpack.c.b16 %v2874, %v2874
        %v2883 = vpack.c.b16 %v2875, %v2875
        %v2884 = vpack.c.b16 %v2876, %v2876
        %v2885 = vpack.c.b16 %v2877, %v2877
        %v2886 = vunpack.c.l.b16 %v2878
        %v2887 = vunpack.c.l.b16 %v2879
        %v2888 = vunpack.c.l.b16 %v2880
        %v2889 = vunpack.c.l.b16 %v2881
        %v2890 = vunpack.c.l.b16 %v2882
        %v2891 = vunpack.c.l.b16 %v2883
        %v2892 = vunpack.c.l.b16 %v2884
        %v2893 = vunpack.c.l.b16 %v2885
        %v2894 = vrot.slane %v2887, 7
        %v2895 = vsel %vm876, %v2894, %v2886
        %v2896 = vrot.slane %v2888, 6
        %v2897 = vsel %vm879, %v2896, %v2895
        %v2898 = vrot.slane %v2889, 5
        %v2899 = vsel %vm882, %v2898, %v2897
        %v2900 = vrot.slane %v2890, 4
        %v2901 = vsel %vm885, %v2900, %v2899
        %v2902 = vrot.slane %v2891, 3
        %v2903 = vsel %vm888, %v2902, %v2901
        %v2904 = vrot.slane %v2892, 2
        %v2905 = vsel %vm891, %v2904, %v2903
        %v2906 = vrot.slane %v2893, 1
        %v2907 = vsel %vm894, %v2906, %v2905
        %v2908 = vpack.c.b16 %v2907, %v2907
        %2910 = vst [vmem:[#allocation2 + $0x8] sm:$0xf] %v2908
        %v2911 = vld [vmem:[%s237] sm:$0xf]
        %v2912 = vld [vmem:[%s237 + $0x4] sm:$0xf]
        %v2913 = vld [vmem:[%s237 + $0x8] sm:$0xf]
        %v2914 = vld [vmem:[%s237 + $0xc] sm:$0xf]
        %v2915 = vld [vmem:[%s237 + $0x10] sm:$0xf]
        %v2916 = vld [vmem:[%s237 + $0x14] sm:$0xf]
        %v2917 = vld [vmem:[%s237 + $0x18] sm:$0xf]
        %v2918 = vld [vmem:[%s237 + $0x1c] sm:$0xf]
        %v2919 = vld [vmem:[%s237 + $0x20] sm:$0xf]
        %v2920 = vld [vmem:[%s237 + $0x24] sm:$0xf]
        %v2921 = vld [vmem:[%s237 + $0x28] sm:$0xf]
        %v2922 = vld [vmem:[%s237 + $0x2c] sm:$0xf]
        %v2923 = vld [vmem:[%s237 + $0x30] sm:$0xf]
        %v2924 = vld [vmem:[%s237 + $0x34] sm:$0xf]
        %v2925 = vld [vmem:[%s237 + $0x38] sm:$0xf]
        %v2926 = vld [vmem:[%s237 + $0x3c] sm:$0xf]
        %v2927 = vld [vmem:[%s237 + $0x40] sm:$0xf]
        %v2928 = vld [vmem:[%s237 + $0x44] sm:$0xf]
        %v2929 = vld [vmem:[%s237 + $0x48] sm:$0xf]
        %v2930 = vld [vmem:[%s237 + $0x4c] sm:$0xf]
        %v2931 = vld [vmem:[%s237 + $0x50] sm:$0xf]
        %v2932 = vld [vmem:[%s237 + $0x54] sm:$0xf]
        %v2933 = vld [vmem:[%s237 + $0x58] sm:$0xf]
        %v2934 = vld [vmem:[%s237 + $0x5c] sm:$0xf]
        %v2935 = vld [vmem:[#allocation6 + $0x24] sm:$0xff]
        %v2936 = vld [vmem:[#allocation6 + $0x2c] sm:$0xff]
        %v2937 = vld [vmem:[#allocation6 + $0x34] sm:$0xf]
        %v2938 = vld [vmem:[#allocation6 + $0x5c] sm:$0xff]
        %v2939 = vld [vmem:[#allocation6 + $0x64] sm:$0xff]
        %v2940 = vld [vmem:[#allocation6 + $0x6c] sm:$0xf]
        %v2941 = vld [vmem:[#allocation6 + $0x94] sm:$0xff]
        %v2942 = vld [vmem:[#allocation6 + $0x9c] sm:$0xff]
        %v2943 = vld [vmem:[#allocation6 + $0xa4] sm:$0xf]
        %v2944 = vld [vmem:[#allocation6 + $0xcc] sm:$0xff]
        %v2945 = vld [vmem:[#allocation6 + $0xd4] sm:$0xff]
        %v2946 = vld [vmem:[#allocation6 + $0xdc] sm:$0xf]
        %v2947 = vld [vmem:[#allocation6 + $0x104] sm:$0xff]
        %v2948 = vld [vmem:[#allocation6 + $0x10c] sm:$0xff]
        %v2949 = vld [vmem:[#allocation6 + $0x114] sm:$0xf]
        %v2950 = vld [vmem:[#allocation6 + $0x13c] sm:$0xff]
        %v2951 = vld [vmem:[#allocation6 + $0x144] sm:$0xff]
        %v2952 = vld [vmem:[#allocation6 + $0x14c] sm:$0xf]
        %v2953 = vld [vmem:[#allocation6 + $0x174] sm:$0xff]
        %v2954 = vld [vmem:[#allocation6 + $0x17c] sm:$0xff]
        %v2955 = vld [vmem:[#allocation6 + $0x184] sm:$0xf]
        %v2956 = vld [vmem:[#allocation6 + $0x1ac] sm:$0xff]
        %v2957 = vld [vmem:[#allocation6 + $0x1b4] sm:$0xff]
        %v2958 = vld [vmem:[#allocation6 + $0x1bc] sm:$0xf]
        %v2959 = vld [vmem:[#allocation6 + $0x1e4] sm:$0xff]
        %v2960 = vld [vmem:[#allocation6 + $0x1ec] sm:$0xff]
        %v2961 = vld [vmem:[#allocation6 + $0x1f4] sm:$0xf]
        %v2962 = vld [vmem:[#allocation6 + $0x21c] sm:$0xff]
        %v2963 = vld [vmem:[#allocation6 + $0x224] sm:$0xff]
        %v2964 = vld [vmem:[#allocation6 + $0x22c] sm:$0xf]
        %v2965 = vld [vmem:[#allocation6 + $0x254] sm:$0xff]
        %v2966 = vld [vmem:[#allocation6 + $0x25c] sm:$0xff]
        %v2967 = vld [vmem:[#allocation6 + $0x264] sm:$0xf]
        %v2968 = vld [vmem:[#allocation6 + $0x28c] sm:$0xff]
        %v2969 = vld [vmem:[#allocation6 + $0x294] sm:$0xff]
        %v2970 = vld [vmem:[#allocation6 + $0x29c] sm:$0xf]
        %v2971 = vld [vmem:[#allocation6 + $0x2c4] sm:$0xff]
        %v2972 = vld [vmem:[#allocation6 + $0x2cc] sm:$0xff]
        %v2973 = vld [vmem:[#allocation6 + $0x2d4] sm:$0xf]
        %v2974 = vld [vmem:[#allocation6 + $0x2fc] sm:$0xff]
        %v2975 = vld [vmem:[#allocation6 + $0x304] sm:$0xff]
        %v2976 = vld [vmem:[#allocation6 + $0x30c] sm:$0xf]
        %v2977 = vld [vmem:[#allocation6 + $0x334] sm:$0xff]
        %v2978 = vld [vmem:[#allocation6 + $0x33c] sm:$0xff]
        %v2979 = vld [vmem:[#allocation6 + $0x344] sm:$0xf]
        %v2980 = vld [vmem:[#allocation6 + $0x36c] sm:$0xff]
        %v2981 = vld [vmem:[#allocation6 + $0x374] sm:$0xff]
        %v2982 = vld [vmem:[#allocation6 + $0x37c] sm:$0xf]
        %v3007 = vunpack.c.l.b16 %v2911
        %v3008 = vunpack.c.l.b16 %v2912
        %v3009 = vunpack.c.l.b16 %v2913
        %v3010 = vunpack.c.l.b16 %v2914
        %v3011 = vunpack.c.l.b16 %v2915
        %v3012 = vunpack.c.l.b16 %v2916
        %v3013 = vunpack.c.l.b16 %v2917
        %v3014 = vunpack.c.l.b16 %v2918
        %v3015 = vunpack.c.l.b16 %v2919
        %v3016 = vunpack.c.l.b16 %v2920
        %v3017 = vunpack.c.l.b16 %v2921
        %v3018 = vunpack.c.l.b16 %v2922
        %v3019 = vunpack.c.l.b16 %v2923
        %v3020 = vunpack.c.l.b16 %v2924
        %v3021 = vunpack.c.l.b16 %v2925
        %v3022 = vunpack.c.l.b16 %v2926
        %v3023 = vunpack.c.l.b16 %v2927
        %v3024 = vunpack.c.l.b16 %v2928
        %v3025 = vunpack.c.l.b16 %v2929
        %v3026 = vunpack.c.l.b16 %v2930
        %v3027 = vunpack.c.l.b16 %v2931
        %v3028 = vunpack.c.l.b16 %v2932
        %v3029 = vunpack.c.l.b16 %v2933
        %v3030 = vunpack.c.l.b16 %v2934
        %v3031 = vpack.c.b16 %v3008, %v3007
        %v3032 = vpack.c.b16 %v3010, %v3009
        %v3033 = vpack.c.b16 %v3012, %v3011
        %v3034 = vpack.c.b16 %v3014, %v3013
        %v3035 = vpack.c.b16 %v3016, %v3015
        %v3036 = vpack.c.b16 %v3018, %v3017
        %v3037 = vpack.c.b16 %v3020, %v3019
        %v3038 = vpack.c.b16 %v3022, %v3021
        %v3039 = vpack.c.b16 %v3024, %v3023
        %v3040 = vpack.c.b16 %v3026, %v3025
        %v3041 = vpack.c.b16 %v3028, %v3027
        %v3042 = vpack.c.b16 %v3030, %v3029
        %v3103 = vunpack.c.l.b16 %v2935
        %v3104 = vunpack.c.h.b16 %v2935
        %v3105 = vunpack.c.l.b16 %v2936
        %v3106 = vunpack.c.h.b16 %v2936
        %v3107 = vunpack.c.l.b16 %v2937
        %v3108 = vunpack.c.l.b16 %v2938
        %v3109 = vunpack.c.h.b16 %v2938
        %v3110 = vunpack.c.l.b16 %v2939
        %v3111 = vunpack.c.h.b16 %v2939
        %v3112 = vunpack.c.l.b16 %v2940
        %v3113 = vunpack.c.l.b16 %v2941
        %v3114 = vunpack.c.h.b16 %v2941
        %v3115 = vunpack.c.l.b16 %v2942
        %v3116 = vunpack.c.h.b16 %v2942
        %v3117 = vunpack.c.l.b16 %v2943
        %v3118 = vunpack.c.l.b16 %v2944
        %v3119 = vunpack.c.h.b16 %v2944
        %v3120 = vunpack.c.l.b16 %v2945
        %v3121 = vunpack.c.h.b16 %v2945
        %v3122 = vunpack.c.l.b16 %v2946
        %v3123 = vunpack.c.l.b16 %v2947
        %v3124 = vunpack.c.h.b16 %v2947
        %v3125 = vunpack.c.l.b16 %v2948
        %v3126 = vunpack.c.h.b16 %v2948
        %v3127 = vunpack.c.l.b16 %v2949
        %v3128 = vunpack.c.l.b16 %v2950
        %v3129 = vunpack.c.h.b16 %v2950
        %v3130 = vunpack.c.l.b16 %v2951
        %v3131 = vunpack.c.h.b16 %v2951
        %v3132 = vunpack.c.l.b16 %v2952
        %v3133 = vunpack.c.l.b16 %v2953
        %v3134 = vunpack.c.h.b16 %v2953
        %v3135 = vunpack.c.l.b16 %v2954
        %v3136 = vunpack.c.h.b16 %v2954
        %v3137 = vunpack.c.l.b16 %v2955
        %v3138 = vunpack.c.l.b16 %v2956
        %v3139 = vunpack.c.h.b16 %v2956
        %v3140 = vunpack.c.l.b16 %v2957
        %v3141 = vunpack.c.h.b16 %v2957
        %v3142 = vunpack.c.l.b16 %v2958
        %v3143 = vunpack.c.l.b16 %v2959
        %v3144 = vunpack.c.h.b16 %v2959
        %v3145 = vunpack.c.l.b16 %v2960
        %v3146 = vunpack.c.h.b16 %v2960
        %v3147 = vunpack.c.l.b16 %v2961
        %v3148 = vunpack.c.l.b16 %v2962
        %v3149 = vunpack.c.h.b16 %v2962
        %v3150 = vunpack.c.l.b16 %v2963
        %v3151 = vunpack.c.h.b16 %v2963
        %v3152 = vunpack.c.l.b16 %v2964
        %v3153 = vunpack.c.l.b16 %v2965
        %v3154 = vunpack.c.h.b16 %v2965
        %v3155 = vunpack.c.l.b16 %v2966
        %v3156 = vunpack.c.h.b16 %v2966
        %v3157 = vunpack.c.l.b16 %v2967
        %v3158 = vunpack.c.l.b16 %v2968
        %v3159 = vunpack.c.h.b16 %v2968
        %v3160 = vunpack.c.l.b16 %v2969
        %v3161 = vunpack.c.h.b16 %v2969
        %v3162 = vunpack.c.l.b16 %v2970
        %v3163 = vunpack.c.l.b16 %v2971
        %v3164 = vunpack.c.h.b16 %v2971
        %v3165 = vunpack.c.l.b16 %v2972
        %v3166 = vunpack.c.h.b16 %v2972
        %v3167 = vunpack.c.l.b16 %v2973
        %v3168 = vunpack.c.l.b16 %v2974
        %v3169 = vunpack.c.h.b16 %v2974
        %v3170 = vunpack.c.l.b16 %v2975
        %v3171 = vunpack.c.h.b16 %v2975
        %v3172 = vunpack.c.l.b16 %v2976
        %v3173 = vunpack.c.l.b16 %v2977
        %v3174 = vunpack.c.h.b16 %v2977
        %v3175 = vunpack.c.l.b16 %v2978
        %v3176 = vunpack.c.h.b16 %v2978
        %v3177 = vunpack.c.l.b16 %v2979
        %v3178 = vunpack.c.l.b16 %v2980
        %v3179 = vunpack.c.h.b16 %v2980
        %v3180 = vunpack.c.l.b16 %v2981
        %v3181 = vunpack.c.h.b16 %v2981
        %v3182 = vunpack.c.l.b16 %v2982
        %v3183 = vpack.c.b16 %v3108, %v3103
        %v3184 = vpack.c.b16 %v3109, %v3104
        %v3185 = vpack.c.b16 %v3110, %v3105
        %v3186 = vpack.c.b16 %v3111, %v3106
        %v3187 = vpack.c.b16 %v3112, %v3107
        %v3188 = vpack.c.b16 %v3118, %v3113
        %v3189 = vpack.c.b16 %v3119, %v3114
        %v3190 = vpack.c.b16 %v3120, %v3115
        %v3191 = vpack.c.b16 %v3121, %v3116
        %v3192 = vpack.c.b16 %v3122, %v3117
        %v3193 = vpack.c.b16 %v3128, %v3123
        %v3194 = vpack.c.b16 %v3129, %v3124
        %v3195 = vpack.c.b16 %v3130, %v3125
        %v3196 = vpack.c.b16 %v3131, %v3126
        %v3197 = vpack.c.b16 %v3132, %v3127
        %v3198 = vpack.c.b16 %v3138, %v3133
        %v3199 = vpack.c.b16 %v3139, %v3134
        %v3200 = vpack.c.b16 %v3140, %v3135
        %v3201 = vpack.c.b16 %v3141, %v3136
        %v3202 = vpack.c.b16 %v3142, %v3137
        %v3203 = vpack.c.b16 %v3148, %v3143
        %v3204 = vpack.c.b16 %v3149, %v3144
        %v3205 = vpack.c.b16 %v3150, %v3145
        %v3206 = vpack.c.b16 %v3151, %v3146
        %v3207 = vpack.c.b16 %v3152, %v3147
        %v3208 = vpack.c.b16 %v3158, %v3153
        %v3209 = vpack.c.b16 %v3159, %v3154
        %v3210 = vpack.c.b16 %v3160, %v3155
        %v3211 = vpack.c.b16 %v3161, %v3156
        %v3212 = vpack.c.b16 %v3162, %v3157
        %v3213 = vpack.c.b16 %v3168, %v3163
        %v3214 = vpack.c.b16 %v3169, %v3164
        %v3215 = vpack.c.b16 %v3170, %v3165
        %v3216 = vpack.c.b16 %v3171, %v3166
        %v3217 = vpack.c.b16 %v3172, %v3167
        %v3218 = vpack.c.b16 %v3178, %v3173
        %v3219 = vpack.c.b16 %v3179, %v3174
        %v3220 = vpack.c.b16 %v3180, %v3175
        %v3221 = vpack.c.b16 %v3181, %v3176
        %v3222 = vpack.c.b16 %v3182, %v3177
        %3263 = vmatprep.subr.bf16.mxu0 %v3184
        %3264 = vmatpush1.bf16.msra.mxu0 %v3183
        %3265 = vmatprep.subr.bf16.mxu0 %v3189
        %3266 = vmatpush1.bf16.msra.mxu0 %v3188
        %3267 = vmatprep.subr.bf16.mxu0 %v3194
        %3268 = vmatpush1.bf16.msra.mxu0 %v3193
        %3269 = vmatprep.subr.bf16.mxu0 %v3199
        %3270 = vmatpush1.bf16.msra.mxu0 %v3198
        %3271 = vmatprep.subr.bf16.mxu0 %v3204
        %3272 = vmatpush1.bf16.msra.mxu0 %v3203
        %3273 = vmatprep.subr.bf16.mxu0 %v3209
        %3274 = vmatpush1.bf16.msra.mxu0 %v3208
        %3275 = vmatprep.subr.bf16.mxu0 %v3214
        %3276 = vmatpush1.bf16.msra.mxu0 %v3213
        %3277 = vmatprep.subr.bf16.mxu0 %v3219
        %3278 = vmatpush1.bf16.msra.mxu0 %v3218
        %3279 = vmatprep.subr.bf16.mxu0 0
        %3280 = vmatpush1.bf16.msra.mxu0 0
        %3281 = vmatprep.subr.bf16.mxu0 0
        %3282 = vmatpush1.bf16.msra.mxu0 0
        %3283 = vmatprep.subr.bf16.mxu0 0
        %3284 = vmatpush1.bf16.msra.mxu0 0
        %3285 = vmatprep.subr.bf16.mxu0 0
        %3286 = vmatpush1.bf16.msra.mxu0 0
        %3287 = vmatprep.subr.bf16.mxu0 0
        %3288 = vmatpush1.bf16.msra.mxu0 0
        %3289 = vmatprep.subr.bf16.mxu0 0
        %3290 = vmatpush1.bf16.msra.mxu0 0
        %3291 = vmatprep.subr.bf16.mxu0 0
        %3292 = vmatpush1.bf16.msra.mxu0 0
        %3293 = vmatprep.subr.bf16.mxu0 0
        %3294 = vmatpush1.bf16.msra.mxu0 0
        %3295 = vmatprep.mubr.bf16.mxu0 0
        %3296 = vmatmul.mubr.bf16.gmra.mrb[0].mxu0 %v3031
        %v3297 = vpop.f32.mrb[0].mxu0
        %v3298 = vadd.f32 0.0, %v3297
        %v3299 = vpop.f32.mrb[0].mxu0
        %v3300 = vadd.f32 0.0, %v3299
        %v3301 = vpop.f32.mrb[0].mxu0
        %v3302 = vadd.f32 0.0, %v3301
        %v3303 = vpop.f32.mrb[0].mxu0
        %v3304 = vadd.f32 0.0, %v3303
        %3305 = vmatprep.mubr.bf16.mxu0 0
        %3306 = vmatmul.mubr.bf16.gmra.mrb[0].mxu0 %v3032
        %v3307 = vpop.f32.mrb[0].mxu0
        %v3308 = vadd.f32 0.0, %v3307
        %v3309 = vpop.f32.mrb[0].mxu0
        %v3310 = vadd.f32 0.0, %v3309
        %v3311 = vpop.f32.mrb[0].mxu0
        %v3312 = vadd.f32 0.0, %v3311
        %v3313 = vpop.f32.mrb[0].mxu0
        %v3314 = vadd.f32 0.0, %v3313
        %3315 = vmatprep.mubr.bf16.mxu0 0
        %3316 = vmatmul.mubr.bf16.gmra.mrb[0].mxu0 %v3033
        %v3317 = vpop.f32.mrb[0].mxu0
        %v3318 = vadd.f32 0.0, %v3317
        %v3319 = vpop.f32.mrb[0].mxu0
        %v3320 = vadd.f32 0.0, %v3319
        %v3321 = vpop.f32.mrb[0].mxu0
        %v3322 = vadd.f32 0.0, %v3321
        %v3323 = vpop.f32.mrb[0].mxu0
        %v3324 = vadd.f32 0.0, %v3323
        %3325 = vmatprep.mubr.bf16.mxu0 0
        %3326 = vmatmul.mubr.bf16.gmra.mrb[0].mxu0 %v3034
        %v3327 = vpop.f32.mrb[0].mxu0
        %v3328 = vadd.f32 0.0, %v3327
        %v3329 = vpop.f32.mrb[0].mxu0
        %v3330 = vadd.f32 0.0, %v3329
        %v3331 = vpop.f32.mrb[0].mxu0
        %v3332 = vadd.f32 0.0, %v3331
        %v3333 = vpop.f32.mrb[0].mxu0
        %v3334 = vadd.f32 0.0, %v3333
        %3335 = vmatprep.mubr.bf16.mxu0 0
        %3336 = vmatmul.mubr.bf16.gmra.mrb[0].mxu0 %v3035
        %v3337 = vpop.f32.mrb[0].mxu0
        %v3338 = vadd.f32 0.0, %v3337
        %v3339 = vpop.f32.mrb[0].mxu0
        %v3340 = vadd.f32 0.0, %v3339
        %v3341 = vpop.f32.mrb[0].mxu0
        %v3342 = vadd.f32 0.0, %v3341
        %v3343 = vpop.f32.mrb[0].mxu0
        %v3344 = vadd.f32 0.0, %v3343
        %3345 = vmatprep.mubr.bf16.mxu0 0
        %3346 = vmatmul.mubr.bf16.gmra.mrb[0].mxu0 %v3036
        %v3347 = vpop.f32.mrb[0].mxu0
        %v3348 = vadd.f32 0.0, %v3347
        %v3349 = vpop.f32.mrb[0].mxu0
        %v3350 = vadd.f32 0.0, %v3349
        %v3351 = vpop.f32.mrb[0].mxu0
        %v3352 = vadd.f32 0.0, %v3351
        %v3353 = vpop.f32.mrb[0].mxu0
        %v3354 = vadd.f32 0.0, %v3353
        %3355 = vmatprep.mubr.bf16.mxu0 0
        %3356 = vmatmul.mubr.bf16.gmra.mrb[0].mxu0 %v3037
        %v3357 = vpop.f32.mrb[0].mxu0
        %v3358 = vadd.f32 0.0, %v3357
        %v3359 = vpop.f32.mrb[0].mxu0
        %v3360 = vadd.f32 0.0, %v3359
        %v3361 = vpop.f32.mrb[0].mxu0
        %v3362 = vadd.f32 0.0, %v3361
        %v3363 = vpop.f32.mrb[0].mxu0
        %v3364 = vadd.f32 0.0, %v3363
        %3365 = vmatprep.mubr.bf16.mxu0 0
        %3366 = vmatmul.mubr.bf16.gmra.mrb[0].mxu0 %v3038
        %v3367 = vpop.f32.mrb[0].mxu0
        %v3368 = vadd.f32 0.0, %v3367
        %v3369 = vpop.f32.mrb[0].mxu0
        %v3370 = vadd.f32 0.0, %v3369
        %v3371 = vpop.f32.mrb[0].mxu0
        %v3372 = vadd.f32 0.0, %v3371
        %v3373 = vpop.f32.mrb[0].mxu0
        %v3374 = vadd.f32 0.0, %v3373
        %3375 = vmatprep.mubr.bf16.mxu0 0
        %3376 = vmatmul.mubr.bf16.gmra.mrb[0].mxu0 %v3039
        %v3377 = vpop.f32.mrb[0].mxu0
        %v3378 = vadd.f32 0.0, %v3377
        %v3379 = vpop.f32.mrb[0].mxu0
        %v3380 = vadd.f32 0.0, %v3379
        %v3381 = vpop.f32.mrb[0].mxu0
        %v3382 = vadd.f32 0.0, %v3381
        %v3383 = vpop.f32.mrb[0].mxu0
        %v3384 = vadd.f32 0.0, %v3383
        %3385 = vmatprep.mubr.bf16.mxu0 0
        %3386 = vmatmul.mubr.bf16.gmra.mrb[0].mxu0 %v3040
        %v3387 = vpop.f32.mrb[0].mxu0
        %v3388 = vadd.f32 0.0, %v3387
        %v3389 = vpop.f32.mrb[0].mxu0
        %v3390 = vadd.f32 0.0, %v3389
        %v3391 = vpop.f32.mrb[0].mxu0
        %v3392 = vadd.f32 0.0, %v3391
        %v3393 = vpop.f32.mrb[0].mxu0
        %v3394 = vadd.f32 0.0, %v3393
        %3395 = vmatprep.mubr.bf16.mxu0 0
        %3396 = vmatmul.mubr.bf16.gmra.mrb[0].mxu0 %v3041
        %v3397 = vpop.f32.mrb[0].mxu0
        %v3398 = vadd.f32 0.0, %v3397
        %v3399 = vpop.f32.mrb[0].mxu0
        %v3400 = vadd.f32 0.0, %v3399
        %v3401 = vpop.f32.mrb[0].mxu0
        %v3402 = vadd.f32 0.0, %v3401
        %v3403 = vpop.f32.mrb[0].mxu0
        %v3404 = vadd.f32 0.0, %v3403
        %3405 = vmatprep.mubr.bf16.mxu0 0
        %3406 = vmatmul.mubr.bf16.gmra.mrb[0].mxu0 %v3042
        %v3407 = vpop.f32.mrb[0].mxu0
        %v3408 = vadd.f32 0.0, %v3407
        %v3409 = vpop.f32.mrb[0].mxu0
        %v3410 = vadd.f32 0.0, %v3409
        %v3411 = vpop.f32.mrb[0].mxu0
        %v3412 = vadd.f32 0.0, %v3411
        %v3413 = vpop.f32.mrb[0].mxu0
        %v3414 = vadd.f32 0.0, %v3413
        %3415 = vdwg.mxu0
        %3416 = vmatprep.subr.bf16.mxu0 %v3186
        %3417 = vmatpush1.bf16.msra.mxu0 %v3185
        %3418 = vmatprep.subr.bf16.mxu0 %v3191
        %3419 = vmatpush1.bf16.msra.mxu0 %v3190
        %3420 = vmatprep.subr.bf16.mxu0 %v3196
        %3421 = vmatpush1.bf16.msra.mxu0 %v3195
        %3422 = vmatprep.subr.bf16.mxu0 %v3201
        %3423 = vmatpush1.bf16.msra.mxu0 %v3200
        %3424 = vmatprep.subr.bf16.mxu0 %v3206
        %3425 = vmatpush1.bf16.msra.mxu0 %v3205
        %3426 = vmatprep.subr.bf16.mxu0 %v3211
        %3427 = vmatpush1.bf16.msra.mxu0 %v3210
        %3428 = vmatprep.subr.bf16.mxu0 %v3216
        %3429 = vmatpush1.bf16.msra.mxu0 %v3215
        %3430 = vmatprep.subr.bf16.mxu0 %v3221
        %3431 = vmatpush1.bf16.msra.mxu0 %v3220
        %3432 = vmatprep.subr.bf16.mxu0 0
        %3433 = vmatpush1.bf16.msra.mxu0 0
        %3434 = vmatprep.subr.bf16.mxu0 0
        %3435 = vmatpush1.bf16.msra.mxu0 0
        %3436 = vmatprep.subr.bf16.mxu0 0
        %3437 = vmatpush1.bf16.msra.mxu0 0
        %3438 = vmatprep.subr.bf16.mxu0 0
        %3439 = vmatpush1.bf16.msra.mxu0 0
        %3440 = vmatprep.subr.bf16.mxu0 0
        %3441 = vmatpush1.bf16.msra.mxu0 0
        %3442 = vmatprep.subr.bf16.mxu0 0
        %3443 = vmatpush1.bf16.msra.mxu0 0
        %3444 = vmatprep.subr.bf16.mxu0 0
        %3445 = vmatpush1.bf16.msra.mxu0 0
        %3446 = vmatprep.subr.bf16.mxu0 0
        %3447 = vmatpush1.bf16.msra.mxu0 0
        %3448 = vmatprep.mubr.bf16.mxu0 0
        %3449 = vmatmul.mubr.bf16.gmra.mrb[0].mxu0 %v3031
        %v3450 = vpop.f32.mrb[0].mxu0
        %v3451 = vadd.f32 0.0, %v3450
        %v3452 = vpop.f32.mrb[0].mxu0
        %v3453 = vadd.f32 0.0, %v3452
        %v3454 = vpop.f32.mrb[0].mxu0
        %v3455 = vadd.f32 0.0, %v3454
        %v3456 = vpop.f32.mrb[0].mxu0
        %v3457 = vadd.f32 0.0, %v3456
        %3458 = vmatprep.mubr.bf16.mxu0 0
        %3459 = vmatmul.mubr.bf16.gmra.mrb[0].mxu0 %v3032
        %v3460 = vpop.f32.mrb[0].mxu0
        %v3461 = vadd.f32 0.0, %v3460
        %v3462 = vpop.f32.mrb[0].mxu0
        %v3463 = vadd.f32 0.0, %v3462
        %v3464 = vpop.f32.mrb[0].mxu0
        %v3465 = vadd.f32 0.0, %v3464
        %v3466 = vpop.f32.mrb[0].mxu0
        %v3467 = vadd.f32 0.0, %v3466
        %3468 = vmatprep.mubr.bf16.mxu0 0
        %3469 = vmatmul.mubr.bf16.gmra.mrb[0].mxu0 %v3033
        %v3470 = vpop.f32.mrb[0].mxu0
        %v3471 = vadd.f32 0.0, %v3470
        %v3472 = vpop.f32.mrb[0].mxu0
        %v3473 = vadd.f32 0.0, %v3472
        %v3474 = vpop.f32.mrb[0].mxu0
        %v3475 = vadd.f32 0.0, %v3474
        %v3476 = vpop.f32.mrb[0].mxu0
        %v3477 = vadd.f32 0.0, %v3476
        %3478 = vmatprep.mubr.bf16.mxu0 0
        %3479 = vmatmul.mubr.bf16.gmra.mrb[0].mxu0 %v3034
        %v3480 = vpop.f32.mrb[0].mxu0
        %v3481 = vadd.f32 0.0, %v3480
        %v3482 = vpop.f32.mrb[0].mxu0
        %v3483 = vadd.f32 0.0, %v3482
        %v3484 = vpop.f32.mrb[0].mxu0
        %v3485 = vadd.f32 0.0, %v3484
        %v3486 = vpop.f32.mrb[0].mxu0
        %v3487 = vadd.f32 0.0, %v3486
        %3488 = vmatprep.mubr.bf16.mxu0 0
        %3489 = vmatmul.mubr.bf16.gmra.mrb[0].mxu0 %v3035
        %v3490 = vpop.f32.mrb[0].mxu0
        %v3491 = vadd.f32 0.0, %v3490
        %v3492 = vpop.f32.mrb[0].mxu0
        %v3493 = vadd.f32 0.0, %v3492
        %v3494 = vpop.f32.mrb[0].mxu0
        %v3495 = vadd.f32 0.0, %v3494
        %v3496 = vpop.f32.mrb[0].mxu0
        %v3497 = vadd.f32 0.0, %v3496
        %3498 = vmatprep.mubr.bf16.mxu0 0
        %3499 = vmatmul.mubr.bf16.gmra.mrb[0].mxu0 %v3036
        %v3500 = vpop.f32.mrb[0].mxu0
        %v3501 = vadd.f32 0.0, %v3500
        %v3502 = vpop.f32.mrb[0].mxu0
        %v3503 = vadd.f32 0.0, %v3502
        %v3504 = vpop.f32.mrb[0].mxu0
        %v3505 = vadd.f32 0.0, %v3504
        %v3506 = vpop.f32.mrb[0].mxu0
        %v3507 = vadd.f32 0.0, %v3506
        %3508 = vmatprep.mubr.bf16.mxu0 0
        %3509 = vmatmul.mubr.bf16.gmra.mrb[0].mxu0 %v3037
        %v3510 = vpop.f32.mrb[0].mxu0
        %v3511 = vadd.f32 0.0, %v3510
        %v3512 = vpop.f32.mrb[0].mxu0
        %v3513 = vadd.f32 0.0, %v3512
        %v3514 = vpop.f32.mrb[0].mxu0
        %v3515 = vadd.f32 0.0, %v3514
        %v3516 = vpop.f32.mrb[0].mxu0
        %v3517 = vadd.f32 0.0, %v3516
        %3518 = vmatprep.mubr.bf16.mxu0 0
        %3519 = vmatmul.mubr.bf16.gmra.mrb[0].mxu0 %v3038
        %v3520 = vpop.f32.mrb[0].mxu0
        %v3521 = vadd.f32 0.0, %v3520
        %v3522 = vpop.f32.mrb[0].mxu0
        %v3523 = vadd.f32 0.0, %v3522
        %v3524 = vpop.f32.mrb[0].mxu0
        %v3525 = vadd.f32 0.0, %v3524
        %v3526 = vpop.f32.mrb[0].mxu0
        %v3527 = vadd.f32 0.0, %v3526
        %3528 = vmatprep.mubr.bf16.mxu0 0
        %3529 = vmatmul.mubr.bf16.gmra.mrb[0].mxu0 %v3039
        %v3530 = vpop.f32.mrb[0].mxu0
        %v3531 = vadd.f32 0.0, %v3530
        %v3532 = vpop.f32.mrb[0].mxu0
        %v3533 = vadd.f32 0.0, %v3532
        %v3534 = vpop.f32.mrb[0].mxu0
        %v3535 = vadd.f32 0.0, %v3534
        %v3536 = vpop.f32.mrb[0].mxu0
        %v3537 = vadd.f32 0.0, %v3536
        %3538 = vmatprep.mubr.bf16.mxu0 0
        %3539 = vmatmul.mubr.bf16.gmra.mrb[0].mxu0 %v3040
        %v3540 = vpop.f32.mrb[0].mxu0
        %v3541 = vadd.f32 0.0, %v3540
        %v3542 = vpop.f32.mrb[0].mxu0
        %v3543 = vadd.f32 0.0, %v3542
        %v3544 = vpop.f32.mrb[0].mxu0
        %v3545 = vadd.f32 0.0, %v3544
        %v3546 = vpop.f32.mrb[0].mxu0
        %v3547 = vadd.f32 0.0, %v3546
        %3548 = vmatprep.mubr.bf16.mxu0 0
        %3549 = vmatmul.mubr.bf16.gmra.mrb[0].mxu0 %v3041
        %v3550 = vpop.f32.mrb[0].mxu0
        %v3551 = vadd.f32 0.0, %v3550
        %v3552 = vpop.f32.mrb[0].mxu0
        %v3553 = vadd.f32 0.0, %v3552
        %v3554 = vpop.f32.mrb[0].mxu0
        %v3555 = vadd.f32 0.0, %v3554
        %v3556 = vpop.f32.mrb[0].mxu0
        %v3557 = vadd.f32 0.0, %v3556
        %3558 = vmatprep.mubr.bf16.mxu0 0
        %3559 = vmatmul.mubr.bf16.gmra.mrb[0].mxu0 %v3042
        %v3560 = vpop.f32.mrb[0].mxu0
        %v3561 = vadd.f32 0.0, %v3560
        %v3562 = vpop.f32.mrb[0].mxu0
        %v3563 = vadd.f32 0.0, %v3562
        %v3564 = vpop.f32.mrb[0].mxu0
        %v3565 = vadd.f32 0.0, %v3564
        %v3566 = vpop.f32.mrb[0].mxu0
        %v3567 = vadd.f32 0.0, %v3566
        %3568 = vdwg.mxu0
        %3569 = vmatprep.subr.bf16.mxu0 0
        %3570 = vmatpush1.bf16.msra.mxu0 %v3187
        %3571 = vmatprep.subr.bf16.mxu0 0
        %3572 = vmatpush1.bf16.msra.mxu0 %v3192
        %3573 = vmatprep.subr.bf16.mxu0 0
        %3574 = vmatpush1.bf16.msra.mxu0 %v3197
        %3575 = vmatprep.subr.bf16.mxu0 0
        %3576 = vmatpush1.bf16.msra.mxu0 %v3202
        %3577 = vmatprep.subr.bf16.mxu0 0
        %3578 = vmatpush1.bf16.msra.mxu0 %v3207
        %3579 = vmatprep.subr.bf16.mxu0 0
        %3580 = vmatpush1.bf16.msra.mxu0 %v3212
        %3581 = vmatprep.subr.bf16.mxu0 0
        %3582 = vmatpush1.bf16.msra.mxu0 %v3217
        %3583 = vmatprep.subr.bf16.mxu0 0
        %3584 = vmatpush1.bf16.msra.mxu0 %v3222
        %3585 = vmatprep.subr.bf16.mxu0 0
        %3586 = vmatpush1.bf16.msra.mxu0 0
        %3587 = vmatprep.subr.bf16.mxu0 0
        %3588 = vmatpush1.bf16.msra.mxu0 0
        %3589 = vmatprep.subr.bf16.mxu0 0
        %3590 = vmatpush1.bf16.msra.mxu0 0
        %3591 = vmatprep.subr.bf16.mxu0 0
        %3592 = vmatpush1.bf16.msra.mxu0 0
        %3593 = vmatprep.subr.bf16.mxu0 0
        %3594 = vmatpush1.bf16.msra.mxu0 0
        %3595 = vmatprep.subr.bf16.mxu0 0
        %3596 = vmatpush1.bf16.msra.mxu0 0
        %3597 = vmatprep.subr.bf16.mxu0 0
        %3598 = vmatpush1.bf16.msra.mxu0 0
        %3599 = vmatprep.subr.bf16.mxu0 0
        %3600 = vmatpush1.bf16.msra.mxu0 0
        %3601 = vmatprep.mubr.bf16.mxu0 0
        %3602 = vmatmul.mubr.bf16.gmra.mrb[0].mxu0 %v3031
        %v3603 = vpop.f32.mrb[0].mxu0
        %v3604 = vadd.f32 0.0, %v3603
        %v3605 = vpop.f32.mrb[0].mxu0
        %v3606 = vpop.f32.mrb[0].mxu0
        %v3607 = vadd.f32 0.0, %v3606
        %v3608 = vpop.f32.mrb[0].mxu0
        %3609 = vmatprep.mubr.bf16.mxu0 0
        %3610 = vmatmul.mubr.bf16.gmra.mrb[0].mxu0 %v3032
        %v3611 = vpop.f32.mrb[0].mxu0
        %v3612 = vadd.f32 0.0, %v3611
        %v3613 = vpop.f32.mrb[0].mxu0
        %v3614 = vpop.f32.mrb[0].mxu0
        %v3615 = vadd.f32 0.0, %v3614
        %v3616 = vpop.f32.mrb[0].mxu0
        %3617 = vmatprep.mubr.bf16.mxu0 0
        %3618 = vmatmul.mubr.bf16.gmra.mrb[0].mxu0 %v3033
        %v3619 = vpop.f32.mrb[0].mxu0
        %v3620 = vadd.f32 0.0, %v3619
        %v3621 = vpop.f32.mrb[0].mxu0
        %v3622 = vpop.f32.mrb[0].mxu0
        %v3623 = vadd.f32 0.0, %v3622
        %v3624 = vpop.f32.mrb[0].mxu0
        %3625 = vmatprep.mubr.bf16.mxu0 0
        %3626 = vmatmul.mubr.bf16.gmra.mrb[0].mxu0 %v3034
        %v3627 = vpop.f32.mrb[0].mxu0
        %v3628 = vadd.f32 0.0, %v3627
        %v3629 = vpop.f32.mrb[0].mxu0
        %v3630 = vpop.f32.mrb[0].mxu0
        %v3631 = vadd.f32 0.0, %v3630
        %v3632 = vpop.f32.mrb[0].mxu0
        %3633 = vmatprep.mubr.bf16.mxu0 0
        %3634 = vmatmul.mubr.bf16.gmra.mrb[0].mxu0 %v3035
        %v3635 = vpop.f32.mrb[0].mxu0
        %v3636 = vadd.f32 0.0, %v3635
        %v3637 = vpop.f32.mrb[0].mxu0
        %v3638 = vpop.f32.mrb[0].mxu0
        %v3639 = vadd.f32 0.0, %v3638
        %v3640 = vpop.f32.mrb[0].mxu0
        %3641 = vmatprep.mubr.bf16.mxu0 0
        %3642 = vmatmul.mubr.bf16.gmra.mrb[0].mxu0 %v3036
        %v3643 = vpop.f32.mrb[0].mxu0
        %v3644 = vadd.f32 0.0, %v3643
        %v3645 = vpop.f32.mrb[0].mxu0
        %v3646 = vpop.f32.mrb[0].mxu0
        %v3647 = vadd.f32 0.0, %v3646
        %v3648 = vpop.f32.mrb[0].mxu0
        %3649 = vmatprep.mubr.bf16.mxu0 0
        %3650 = vmatmul.mubr.bf16.gmra.mrb[0].mxu0 %v3037
        %v3651 = vpop.f32.mrb[0].mxu0
        %v3652 = vadd.f32 0.0, %v3651
        %v3653 = vpop.f32.mrb[0].mxu0
        %v3654 = vpop.f32.mrb[0].mxu0
        %v3655 = vadd.f32 0.0, %v3654
        %v3656 = vpop.f32.mrb[0].mxu0
        %3657 = vmatprep.mubr.bf16.mxu0 0
        %3658 = vmatmul.mubr.bf16.gmra.mrb[0].mxu0 %v3038
        %v3659 = vpop.f32.mrb[0].mxu0
        %v3660 = vadd.f32 0.0, %v3659
        %v3661 = vpop.f32.mrb[0].mxu0
        %v3662 = vpop.f32.mrb[0].mxu0
        %v3663 = vadd.f32 0.0, %v3662
        %v3664 = vpop.f32.mrb[0].mxu0
        %3665 = vmatprep.mubr.bf16.mxu0 0
        %3666 = vmatmul.mubr.bf16.gmra.mrb[0].mxu0 %v3039
        %v3667 = vpop.f32.mrb[0].mxu0
        %v3668 = vadd.f32 0.0, %v3667
        %v3669 = vpop.f32.mrb[0].mxu0
        %v3670 = vpop.f32.mrb[0].mxu0
        %v3671 = vadd.f32 0.0, %v3670
        %v3672 = vpop.f32.mrb[0].mxu0
        %3673 = vmatprep.mubr.bf16.mxu0 0
        %3674 = vmatmul.mubr.bf16.gmra.mrb[0].mxu0 %v3040
        %v3675 = vpop.f32.mrb[0].mxu0
        %v3676 = vadd.f32 0.0, %v3675
        %v3677 = vpop.f32.mrb[0].mxu0
        %v3678 = vpop.f32.mrb[0].mxu0
        %v3679 = vadd.f32 0.0, %v3678
        %v3680 = vpop.f32.mrb[0].mxu0
        %3681 = vmatprep.mubr.bf16.mxu0 0
        %3682 = vmatmul.mubr.bf16.gmra.mrb[0].mxu0 %v3041
        %v3683 = vpop.f32.mrb[0].mxu0
        %v3684 = vadd.f32 0.0, %v3683
        %v3685 = vpop.f32.mrb[0].mxu0
        %v3686 = vpop.f32.mrb[0].mxu0
        %v3687 = vadd.f32 0.0, %v3686
        %v3688 = vpop.f32.mrb[0].mxu0
        %3689 = vmatprep.mubr.bf16.mxu0 0
        %3690 = vmatmul.mubr.bf16.gmra.mrb[0].mxu0 %v3042
        %v3691 = vpop.f32.mrb[0].mxu0
        %v3692 = vadd.f32 0.0, %v3691
        %v3693 = vpop.f32.mrb[0].mxu0
        %v3694 = vpop.f32.mrb[0].mxu0
        %v3695 = vadd.f32 0.0, %v3694
        %v3696 = vpop.f32.mrb[0].mxu0
        %3697 = vdwg.mxu0
        %v3722 = vrot.slane %v3300, 1
        %v3723 = vrot.slane %v3304, 1
        %v3724 = vsel %vm643, %v3722, %v3723
        %v3725 = vrot.slane %v3310, 1
        %v3726 = vsel %vm643, %v3723, %v3725
        %v3727 = vrot.slane %v3314, 1
        %v3728 = vrot.slane %v3320, 1
        %v3729 = vsel %vm643, %v3727, %v3728
        %v3730 = vrot.slane %v3324, 1
        %v3731 = vsel %vm643, %v3728, %v3730
        %v3732 = vrot.slane %v3330, 1
        %v3733 = vrot.slane %v3334, 1
        %v3734 = vsel %vm643, %v3732, %v3733
        %v3735 = vrot.slane %v3340, 1
        %v3736 = vsel %vm643, %v3733, %v3735
        %v3737 = vrot.slane %v3344, 1
        %v3738 = vrot.slane %v3350, 1
        %v3739 = vsel %vm643, %v3737, %v3738
        %v3740 = vrot.slane %v3354, 1
        %v3741 = vsel %vm643, %v3738, %v3740
        %v3742 = vrot.slane %v3360, 1
        %v3743 = vrot.slane %v3364, 1
        %v3744 = vsel %vm643, %v3742, %v3743
        %v3745 = vrot.slane %v3370, 1
        %v3746 = vsel %vm643, %v3743, %v3745
        %v3747 = vrot.slane %v3374, 1
        %v3748 = vrot.slane %v3380, 1
        %v3749 = vsel %vm643, %v3747, %v3748
        %v3750 = vrot.slane %v3384, 1
        %v3751 = vsel %vm643, %v3748, %v3750
        %v3752 = vrot.slane %v3390, 1
        %v3753 = vrot.slane %v3394, 1
        %v3754 = vsel %vm643, %v3752, %v3753
        %v3755 = vrot.slane %v3400, 1
        %v3756 = vsel %vm643, %v3753, %v3755
        %v3757 = vrot.slane %v3404, 1
        %v3758 = vrot.slane %v3410, 1
        %v3759 = vsel %vm643, %v3757, %v3758
        %v3760 = vrot.slane %v3414, 1
        %v3761 = vsel %vm643, %v3758, %v3760
        %v3786 = vadd.f32 %v3298, %v3724
        %v3787 = vadd.f32 %v3302, %v3726
        %v3788 = vadd.f32 %v3308, %v3725
        %v3789 = vadd.f32 %v3312, %v3729
        %v3790 = vadd.f32 %v3318, %v3731
        %v3791 = vadd.f32 %v3322, %v3730
        %v3792 = vadd.f32 %v3328, %v3734
        %v3793 = vadd.f32 %v3332, %v3736
        %v3794 = vadd.f32 %v3338, %v3735
        %v3795 = vadd.f32 %v3342, %v3739
        %v3796 = vadd.f32 %v3348, %v3741
        %v3797 = vadd.f32 %v3352, %v3740
        %v3798 = vadd.f32 %v3358, %v3744
        %v3799 = vadd.f32 %v3362, %v3746
        %v3800 = vadd.f32 %v3368, %v3745
        %v3801 = vadd.f32 %v3372, %v3749
        %v3802 = vadd.f32 %v3378, %v3751
        %v3803 = vadd.f32 %v3382, %v3750
        %v3804 = vadd.f32 %v3388, %v3754
        %v3805 = vadd.f32 %v3392, %v3756
        %v3806 = vadd.f32 %v3398, %v3755
        %v3807 = vadd.f32 %v3402, %v3759
        %v3808 = vadd.f32 %v3408, %v3761
        %v3809 = vadd.f32 %v3412, %v3760
        %v3834 = vrot.slane %v3451, 2
        %v3835 = vrot.slane %v3455, 2
        %v3836 = vsel %vm1573, %v3834, %v3835
        %v3837 = vrot.slane %v3461, 2
        %v3838 = vsel %vm1573, %v3835, %v3837
        %v3839 = vrot.slane %v3465, 2
        %v3840 = vrot.slane %v3471, 2
        %v3841 = vsel %vm1573, %v3839, %v3840
        %v3842 = vrot.slane %v3475, 2
        %v3843 = vsel %vm1573, %v3840, %v3842
        %v3844 = vrot.slane %v3481, 2
        %v3845 = vrot.slane %v3485, 2
        %v3846 = vsel %vm1573, %v3844, %v3845
        %v3847 = vrot.slane %v3491, 2
        %v3848 = vsel %vm1573, %v3845, %v3847
        %v3849 = vrot.slane %v3495, 2
        %v3850 = vrot.slane %v3501, 2
        %v3851 = vsel %vm1573, %v3849, %v3850
        %v3852 = vrot.slane %v3505, 2
        %v3853 = vsel %vm1573, %v3850, %v3852
        %v3854 = vrot.slane %v3511, 2
        %v3855 = vrot.slane %v3515, 2
        %v3856 = vsel %vm1573, %v3854, %v3855
        %v3857 = vrot.slane %v3521, 2
        %v3858 = vsel %vm1573, %v3855, %v3857
        %v3859 = vrot.slane %v3525, 2
        %v3860 = vrot.slane %v3531, 2
        %v3861 = vsel %vm1573, %v3859, %v3860
        %v3862 = vrot.slane %v3535, 2
        %v3863 = vsel %vm1573, %v3860, %v3862
        %v3864 = vrot.slane %v3541, 2
        %v3865 = vrot.slane %v3545, 2
        %v3866 = vsel %vm1573, %v3864, %v3865
        %v3867 = vrot.slane %v3551, 2
        %v3868 = vsel %vm1573, %v3865, %v3867
        %v3869 = vrot.slane %v3555, 2
        %v3870 = vrot.slane %v3561, 2
        %v3871 = vsel %vm1573, %v3869, %v3870
        %v3872 = vrot.slane %v3565, 2
        %v3873 = vsel %vm1573, %v3870, %v3872
        %v3898 = vadd.f32 %v3786, %v3836
        %v3899 = vadd.f32 %v3787, %v3838
        %v3900 = vadd.f32 %v3788, %v3837
        %v3901 = vadd.f32 %v3789, %v3841
        %v3902 = vadd.f32 %v3790, %v3843
        %v3903 = vadd.f32 %v3791, %v3842
        %v3904 = vadd.f32 %v3792, %v3846
        %v3905 = vadd.f32 %v3793, %v3848
        %v3906 = vadd.f32 %v3794, %v3847
        %v3907 = vadd.f32 %v3795, %v3851
        %v3908 = vadd.f32 %v3796, %v3853
        %v3909 = vadd.f32 %v3797, %v3852
        %v3910 = vadd.f32 %v3798, %v3856
        %v3911 = vadd.f32 %v3799, %v3858
        %v3912 = vadd.f32 %v3800, %v3857
        %v3913 = vadd.f32 %v3801, %v3861
        %v3914 = vadd.f32 %v3802, %v3863
        %v3915 = vadd.f32 %v3803, %v3862
        %v3916 = vadd.f32 %v3804, %v3866
        %v3917 = vadd.f32 %v3805, %v3868
        %v3918 = vadd.f32 %v3806, %v3867
        %v3919 = vadd.f32 %v3807, %v3871
        %v3920 = vadd.f32 %v3808, %v3873
        %v3921 = vadd.f32 %v3809, %v3872
        %v3946 = vrot.slane %v3453, 3
        %v3947 = vrot.slane %v3457, 3
        %v3948 = vsel %vm2663, %v3946, %v3947
        %v3949 = vrot.slane %v3463, 3
        %v3950 = vsel %vm2663, %v3947, %v3949
        %v3951 = vrot.slane %v3467, 3
        %v3952 = vrot.slane %v3473, 3
        %v3953 = vsel %vm2663, %v3951, %v3952
        %v3954 = vrot.slane %v3477, 3
        %v3955 = vsel %vm2663, %v3952, %v3954
        %v3956 = vrot.slane %v3483, 3
        %v3957 = vrot.slane %v3487, 3
        %v3958 = vsel %vm2663, %v3956, %v3957
        %v3959 = vrot.slane %v3493, 3
        %v3960 = vsel %vm2663, %v3957, %v3959
        %v3961 = vrot.slane %v3497, 3
        %v3962 = vrot.slane %v3503, 3
        %v3963 = vsel %vm2663, %v3961, %v3962
        %v3964 = vrot.slane %v3507, 3
        %v3965 = vsel %vm2663, %v3962, %v3964
        %v3966 = vrot.slane %v3513, 3
        %v3967 = vrot.slane %v3517, 3
        %v3968 = vsel %vm2663, %v3966, %v3967
        %v3969 = vrot.slane %v3523, 3
        %v3970 = vsel %vm2663, %v3967, %v3969
        %v3971 = vrot.slane %v3527, 3
        %v3972 = vrot.slane %v3533, 3
        %v3973 = vsel %vm2663, %v3971, %v3972
        %v3974 = vrot.slane %v3537, 3
        %v3975 = vsel %vm2663, %v3972, %v3974
        %v3976 = vrot.slane %v3543, 3
        %v3977 = vrot.slane %v3547, 3
        %v3978 = vsel %vm2663, %v3976, %v3977
        %v3979 = vrot.slane %v3553, 3
        %v3980 = vsel %vm2663, %v3977, %v3979
        %v3981 = vrot.slane %v3557, 3
        %v3982 = vrot.slane %v3563, 3
        %v3983 = vsel %vm2663, %v3981, %v3982
        %v3984 = vrot.slane %v3567, 3
        %v3985 = vsel %vm2663, %v3982, %v3984
        %v4010 = vadd.f32 %v3898, %v3948
        %v4011 = vadd.f32 %v3899, %v3950
        %v4012 = vadd.f32 %v3900, %v3949
        %v4013 = vadd.f32 %v3901, %v3953
        %v4014 = vadd.f32 %v3902, %v3955
        %v4015 = vadd.f32 %v3903, %v3954
        %v4016 = vadd.f32 %v3904, %v3958
        %v4017 = vadd.f32 %v3905, %v3960
        %v4018 = vadd.f32 %v3906, %v3959
        %v4019 = vadd.f32 %v3907, %v3963
        %v4020 = vadd.f32 %v3908, %v3965
        %v4021 = vadd.f32 %v3909, %v3964
        %v4022 = vadd.f32 %v3910, %v3968
        %v4023 = vadd.f32 %v3911, %v3970
        %v4024 = vadd.f32 %v3912, %v3969
        %v4025 = vadd.f32 %v3913, %v3973
        %v4026 = vadd.f32 %v3914, %v3975
        %v4027 = vadd.f32 %v3915, %v3974
        %v4028 = vadd.f32 %v3916, %v3978
        %v4029 = vadd.f32 %v3917, %v3980
        %v4030 = vadd.f32 %v3918, %v3979
        %v4031 = vadd.f32 %v3919, %v3983
        %v4032 = vadd.f32 %v3920, %v3985
        %v4033 = vadd.f32 %v3921, %v3984
        %v4058 = vrot.slane %v3604, 4
        %v4059 = vrot.slane %v3607, 4
        %v4060 = vsel %vm735, %v4058, %v4059
        %v4061 = vrot.slane %v3612, 4
        %v4062 = vsel %vm735, %v4059, %v4061
        %v4063 = vrot.slane %v3615, 4
        %v4064 = vrot.slane %v3620, 4
        %v4065 = vsel %vm735, %v4063, %v4064
        %v4066 = vrot.slane %v3623, 4
        %v4067 = vsel %vm735, %v4064, %v4066
        %v4068 = vrot.slane %v3628, 4
        %v4069 = vrot.slane %v3631, 4
        %v4070 = vsel %vm735, %v4068, %v4069
        %v4071 = vrot.slane %v3636, 4
        %v4072 = vsel %vm735, %v4069, %v4071
        %v4073 = vrot.slane %v3639, 4
        %v4074 = vrot.slane %v3644, 4
        %v4075 = vsel %vm735, %v4073, %v4074
        %v4076 = vrot.slane %v3647, 4
        %v4077 = vsel %vm735, %v4074, %v4076
        %v4078 = vrot.slane %v3652, 4
        %v4079 = vrot.slane %v3655, 4
        %v4080 = vsel %vm735, %v4078, %v4079
        %v4081 = vrot.slane %v3660, 4
        %v4082 = vsel %vm735, %v4079, %v4081
        %v4083 = vrot.slane %v3663, 4
        %v4084 = vrot.slane %v3668, 4
        %v4085 = vsel %vm735, %v4083, %v4084
        %v4086 = vrot.slane %v3671, 4
        %v4087 = vsel %vm735, %v4084, %v4086
        %v4088 = vrot.slane %v3676, 4
        %v4089 = vrot.slane %v3679, 4
        %v4090 = vsel %vm735, %v4088, %v4089
        %v4091 = vrot.slane %v3684, 4
        %v4092 = vsel %vm735, %v4089, %v4091
        %v4093 = vrot.slane %v3687, 4
        %v4094 = vrot.slane %v3692, 4
        %v4095 = vsel %vm735, %v4093, %v4094
        %v4096 = vrot.slane %v3695, 4
        %v4097 = vsel %vm735, %v4094, %v4096
        %v4122 = vadd.f32 %v4010, %v4060
        %v4123 = vadd.f32 %v4011, %v4062
        %v4124 = vadd.f32 %v4012, %v4061
        %v4125 = vadd.f32 %v4013, %v4065
        %v4126 = vadd.f32 %v4014, %v4067
        %v4127 = vadd.f32 %v4015, %v4066
        %v4128 = vadd.f32 %v4016, %v4070
        %v4129 = vadd.f32 %v4017, %v4072
        %v4130 = vadd.f32 %v4018, %v4071
        %v4131 = vadd.f32 %v4019, %v4075
        %v4132 = vadd.f32 %v4020, %v4077
        %v4133 = vadd.f32 %v4021, %v4076
        %v4134 = vadd.f32 %v4022, %v4080
        %v4135 = vadd.f32 %v4023, %v4082
        %v4136 = vadd.f32 %v4024, %v4081
        %v4137 = vadd.f32 %v4025, %v4085
        %v4138 = vadd.f32 %v4026, %v4087
        %v4139 = vadd.f32 %v4027, %v4086
        %v4140 = vadd.f32 %v4028, %v4090
        %v4141 = vadd.f32 %v4029, %v4092
        %v4142 = vadd.f32 %v4030, %v4091
        %v4143 = vadd.f32 %v4031, %v4095
        %v4144 = vadd.f32 %v4032, %v4097
        %v4145 = vadd.f32 %v4033, %v4096
        %v4146 = vmax.f32 %v4122, %v4123
        %v4147 = vsel %vm735, %v4124, -inf
        %v4148 = vmax.f32 %v4146, %v4147
        %v4149 = vrot.slane %v4148, 4
        %v4150 = vmax.f32 %v4148, %v4149
        %v4151 = vrot.slane %v4150, 2
        %v4152 = vmax.f32 %v4150, %v4151
        %v4153 = vrot.slane %v4152, 1
        %v4154 = vmax.f32 %v4152, %v4153
        %v4155 = vmax.f32 %v4125, %v4126
        %v4156 = vsel %vm735, %v4127, -inf
        %v4157 = vmax.f32 %v4155, %v4156
        %v4158 = vrot.slane %v4157, 4
        %v4159 = vmax.f32 %v4157, %v4158
        %v4160 = vrot.slane %v4159, 2
        %v4161 = vmax.f32 %v4159, %v4160
        %v4162 = vrot.slane %v4161, 1
        %v4163 = vmax.f32 %v4161, %v4162
        %v4164 = vmax.f32 %v4128, %v4129
        %v4165 = vsel %vm735, %v4130, -inf
        %v4166 = vmax.f32 %v4164, %v4165
        %v4167 = vrot.slane %v4166, 4
        %v4168 = vmax.f32 %v4166, %v4167
        %v4169 = vrot.slane %v4168, 2
        %v4170 = vmax.f32 %v4168, %v4169
        %v4171 = vrot.slane %v4170, 1
        %v4172 = vmax.f32 %v4170, %v4171
        %v4173 = vmax.f32 %v4131, %v4132
        %v4174 = vsel %vm735, %v4133, -inf
        %v4175 = vmax.f32 %v4173, %v4174
        %v4176 = vrot.slane %v4175, 4
        %v4177 = vmax.f32 %v4175, %v4176
        %v4178 = vrot.slane %v4177, 2
        %v4179 = vmax.f32 %v4177, %v4178
        %v4180 = vrot.slane %v4179, 1
        %v4181 = vmax.f32 %v4179, %v4180
        %v4182 = vmax.f32 %v4134, %v4135
        %v4183 = vsel %vm735, %v4136, -inf
        %v4184 = vmax.f32 %v4182, %v4183
        %v4185 = vrot.slane %v4184, 4
        %v4186 = vmax.f32 %v4184, %v4185
        %v4187 = vrot.slane %v4186, 2
        %v4188 = vmax.f32 %v4186, %v4187
        %v4189 = vrot.slane %v4188, 1
        %v4190 = vmax.f32 %v4188, %v4189
        %v4191 = vmax.f32 %v4137, %v4138
        %v4192 = vsel %vm735, %v4139, -inf
        %v4193 = vmax.f32 %v4191, %v4192
        %v4194 = vrot.slane %v4193, 4
        %v4195 = vmax.f32 %v4193, %v4194
        %v4196 = vrot.slane %v4195, 2
        %v4197 = vmax.f32 %v4195, %v4196
        %v4198 = vrot.slane %v4197, 1
        %v4199 = vmax.f32 %v4197, %v4198
        %v4200 = vmax.f32 %v4140, %v4141
        %v4201 = vsel %vm735, %v4142, -inf
        %v4202 = vmax.f32 %v4200, %v4201
        %v4203 = vrot.slane %v4202, 4
        %v4204 = vmax.f32 %v4202, %v4203
        %v4205 = vrot.slane %v4204, 2
        %v4206 = vmax.f32 %v4204, %v4205
        %v4207 = vrot.slane %v4206, 1
        %v4208 = vmax.f32 %v4206, %v4207
        %v4209 = vmax.f32 %v4143, %v4144
        %v4210 = vsel %vm735, %v4145, -inf
        %v4211 = vmax.f32 %v4209, %v4210
        %v4212 = vrot.slane %v4211, 4
        %v4213 = vmax.f32 %v4211, %v4212
        %v4214 = vrot.slane %v4213, 2
        %v4215 = vmax.f32 %v4213, %v4214
        %v4216 = vrot.slane %v4215, 1
        %v4217 = vmax.f32 %v4215, %v4216
        %v4218 = vld [vmem:[%s2 + $0x3] sm:$0x1]
        %v4219 = vlaneseq
        %v4220 = vshrl.u32 %v4219, 7
        %v4221 = vsub.s32 0, %v4220
        %v4222 = vrot.slane %v4218, %v4221
        %v4223 = vadd.f32 %v4154, %v4222
        %v4224 = vadd.f32 %v4163, %v4222
        %v4225 = vadd.f32 %v4172, %v4222
        %v4226 = vadd.f32 %v4181, %v4222
        %v4227 = vadd.f32 %v4190, %v4222
        %v4228 = vadd.f32 %v4199, %v4222
        %v4229 = vadd.f32 %v4208, %v4222
        %v4230 = vadd.f32 %v4217, %v4222
        %v4231 = vmax.f32 %v4223, 0.0
        %v4232 = vmax.f32 %v4224, 0.0
        %v4233 = vmax.f32 %v4225, 0.0
        %v4234 = vmax.f32 %v4226, 0.0
        %v4235 = vmax.f32 %v4227, 0.0
        %v4236 = vmax.f32 %v4228, 0.0
        %v4237 = vmax.f32 %v4229, 0.0
        %v4238 = vmax.f32 %v4230, 0.0
        %v4239 = vpack.c.bf16 %v4231, %v4231
        %v4240 = vpack.c.bf16 %v4232, %v4232
        %v4241 = vpack.c.bf16 %v4233, %v4233
        %v4242 = vpack.c.bf16 %v4234, %v4234
        %v4243 = vpack.c.bf16 %v4235, %v4235
        %v4244 = vpack.c.bf16 %v4236, %v4236
        %v4245 = vpack.c.bf16 %v4237, %v4237
        %v4246 = vpack.c.bf16 %v4238, %v4238
        %v4255 = vunpack.c.l.b16 %v4239
        %v4256 = vunpack.c.l.b16 %v4240
        %v4257 = vunpack.c.l.b16 %v4241
        %v4258 = vunpack.c.l.b16 %v4242
        %v4259 = vunpack.c.l.b16 %v4243
        %v4260 = vunpack.c.l.b16 %v4244
        %v4261 = vunpack.c.l.b16 %v4245
        %v4262 = vunpack.c.l.b16 %v4246
        %v4263 = vpack.c.b16 %v4255, %v4255
        %v4264 = vpack.c.b16 %v4256, %v4256
        %v4265 = vpack.c.b16 %v4257, %v4257
        %v4266 = vpack.c.b16 %v4258, %v4258
        %v4267 = vpack.c.b16 %v4259, %v4259
        %v4268 = vpack.c.b16 %v4260, %v4260
        %v4269 = vpack.c.b16 %v4261, %v4261
        %v4270 = vpack.c.b16 %v4262, %v4262
        %v4271 = vunpack.c.l.b16 %v4263
        %v4272 = vunpack.c.l.b16 %v4264
        %v4273 = vunpack.c.l.b16 %v4265
        %v4274 = vunpack.c.l.b16 %v4266
        %v4275 = vunpack.c.l.b16 %v4267
        %v4276 = vunpack.c.l.b16 %v4268
        %v4277 = vunpack.c.l.b16 %v4269
        %v4278 = vunpack.c.l.b16 %v4270
        %v4279 = vrot.slane %v4272, 7
        %v4280 = vsel %vm876, %v4279, %v4271
        %v4281 = vrot.slane %v4273, 6
        %v4282 = vsel %vm879, %v4281, %v4280
        %v4283 = vrot.slane %v4274, 5
        %v4284 = vsel %vm882, %v4283, %v4282
        %v4285 = vrot.slane %v4275, 4
        %v4286 = vsel %vm885, %v4285, %v4284
        %v4287 = vrot.slane %v4276, 3
        %v4288 = vsel %vm888, %v4287, %v4286
        %v4289 = vrot.slane %v4277, 2
        %v4290 = vsel %vm891, %v4289, %v4288
        %v4291 = vrot.slane %v4278, 1
        %v4292 = vsel %vm894, %v4291, %v4290
        %v4293 = vpack.c.b16 %v4292, %v4292
        %4295 = vst [vmem:[#allocation2 + $0xc] sm:$0xf] %v4293
        %v4296 = vld [vmem:[#allocation2] sm:$0xff]
        %v4297 = vld [vmem:[#allocation2 + $0x8] sm:$0xff]
        %v4298 = vld [vmem:[#allocation8] sm:$0xf]
        %v4299 = vld [vmem:[#allocation8 + $0x4] sm:$0xf]
        %v4300 = vld [vmem:[#allocation8 + $0x8] sm:$0xf]
        %v4301 = vld [vmem:[#allocation8 + $0xc] sm:$0xf]
        %v4302 = vld [vmem:[#allocation8 + $0x10] sm:$0xf]
        %v4303 = vld [vmem:[#allocation8 + $0x14] sm:$0xf]
        %v4304 = vld [vmem:[#allocation8 + $0x18] sm:$0xf]
        %v4305 = vld [vmem:[#allocation8 + $0x1c] sm:$0xf]
        %v4306 = vld [vmem:[#allocation8 + $0x20] sm:$0xf]
        %v4307 = vld [vmem:[#allocation8 + $0x24] sm:$0xf]
        %v4308 = vld [vmem:[#allocation8 + $0x28] sm:$0xf]
        %v4309 = vld [vmem:[#allocation8 + $0x2c] sm:$0xf]
        %v4310 = vld [vmem:[#allocation8 + $0x30] sm:$0xf]
        %v4311 = vld [vmem:[#allocation8 + $0x34] sm:$0xf]
        %v4312 = vld [vmem:[#allocation8 + $0x38] sm:$0xf]
        %v4313 = vld [vmem:[#allocation8 + $0x3c] sm:$0xf]
        %v4314 = vld [vmem:[#allocation8 + $0x40] sm:$0xf]
        %v4315 = vld [vmem:[#allocation8 + $0x44] sm:$0xf]
        %v4316 = vld [vmem:[#allocation8 + $0x48] sm:$0xf]
        %v4317 = vld [vmem:[#allocation8 + $0x4c] sm:$0xf]
        %v4318 = vld [vmem:[#allocation8 + $0x50] sm:$0xf]
        %v4319 = vld [vmem:[#allocation8 + $0x54] sm:$0xf]
        %v4320 = vld [vmem:[#allocation8 + $0x58] sm:$0xf]
        %v4321 = vld [vmem:[#allocation8 + $0x5c] sm:$0xf]
        %v4322 = vld [vmem:[#allocation8 + $0x60] sm:$0xf]
        %v4323 = vld [vmem:[#allocation8 + $0x64] sm:$0xf]
        %v4324 = vld [vmem:[#allocation8 + $0x68] sm:$0xf]
        %v4325 = vld [vmem:[#allocation8 + $0x6c] sm:$0xf]
        %v4326 = vld [vmem:[#allocation8 + $0x70] sm:$0xf]
        %v4327 = vld [vmem:[#allocation8 + $0x74] sm:$0xf]
        %v4328 = vld [vmem:[#allocation8 + $0x78] sm:$0xf]
        %v4329 = vld [vmem:[#allocation8 + $0x7c] sm:$0xf]
        %v4330 = vld [vmem:[#allocation8 + $0x80] sm:$0xf]
        %v4331 = vld [vmem:[#allocation8 + $0x84] sm:$0xf]
        %v4332 = vld [vmem:[#allocation8 + $0x88] sm:$0xf]
        %v4333 = vld [vmem:[#allocation8 + $0x8c] sm:$0xf]
        %v4334 = vld [vmem:[#allocation8 + $0x90] sm:$0xf]
        %v4335 = vld [vmem:[#allocation8 + $0x94] sm:$0xf]
        %v4336 = vld [vmem:[#allocation8 + $0x98] sm:$0xf]
        %v4337 = vld [vmem:[#allocation8 + $0x9c] sm:$0xf]
        %v4338 = vld [vmem:[#allocation8 + $0xa0] sm:$0xf]
        %v4339 = vld [vmem:[#allocation8 + $0xa4] sm:$0xf]
        %v4340 = vld [vmem:[#allocation8 + $0xa8] sm:$0xf]
        %v4341 = vld [vmem:[#allocation8 + $0xac] sm:$0xf]
        %v4342 = vld [vmem:[#allocation8 + $0xb0] sm:$0xf]
        %v4343 = vld [vmem:[#allocation8 + $0xb4] sm:$0xf]
        %v4344 = vld [vmem:[#allocation8 + $0xb8] sm:$0xf]
        %v4345 = vld [vmem:[#allocation8 + $0xbc] sm:$0xf]
        %v4346 = vld [vmem:[#allocation8 + $0xc0] sm:$0xf]
        %v4347 = vld [vmem:[#allocation8 + $0xc4] sm:$0xf]
        %v4348 = vld [vmem:[#allocation8 + $0xc8] sm:$0xf]
        %v4349 = vld [vmem:[#allocation8 + $0xcc] sm:$0xf]
        %v4350 = vld [vmem:[#allocation8 + $0xd0] sm:$0xf]
        %v4351 = vld [vmem:[#allocation8 + $0xd4] sm:$0xf]
        %v4352 = vld [vmem:[#allocation8 + $0xd8] sm:$0xf]
        %v4353 = vld [vmem:[#allocation8 + $0xdc] sm:$0xf]
        %v4354 = vld [vmem:[#allocation8 + $0xe0] sm:$0xf]
        %v4355 = vld [vmem:[#allocation8 + $0xe4] sm:$0xf]
        %v4356 = vld [vmem:[#allocation8 + $0xe8] sm:$0xf]
        %v4357 = vld [vmem:[#allocation8 + $0xec] sm:$0xf]
        %v4358 = vld [vmem:[#allocation8 + $0xf0] sm:$0xf]
        %v4359 = vld [vmem:[#allocation8 + $0xf4] sm:$0xf]
        %v4360 = vld [vmem:[#allocation8 + $0xf8] sm:$0xf]
        %v4361 = vld [vmem:[#allocation8 + $0xfc] sm:$0xf]
        %v4362 = vld [vmem:[%s4] sm:$0x1]
        %v4364 = vlaneseq
        %v4365 = vshrl.u32 %v4364, 7
        %v4366 = vsub.s32 0, %v4365
        %v4367 = vrot.slane %v4362, %v4366
        %v4371 = vunpack.c.l.b16 %v4296
        %v4372 = vunpack.c.h.b16 %v4296
        %v4373 = vunpack.c.l.b16 %v4297
        %v4374 = vunpack.c.h.b16 %v4297
        %v4375 = vpack.c.b16 %v4371, %v4371
        %v4376 = vpack.c.b16 %v4372, %v4372
        %v4377 = vpack.c.b16 %v4373, %v4373
        %v4378 = vpack.c.b16 %v4374, %v4374
        %v4447 = vunpack.c.l.b16 %v4298
        %v4448 = vunpack.c.l.b16 %v4299
        %v4449 = vunpack.c.l.b16 %v4300
        %v4450 = vunpack.c.l.b16 %v4301
        %v4451 = vunpack.c.l.b16 %v4302
        %v4452 = vunpack.c.l.b16 %v4303
        %v4453 = vunpack.c.l.b16 %v4304
        %v4454 = vunpack.c.l.b16 %v4305
        %v4455 = vunpack.c.l.b16 %v4306
        %v4456 = vunpack.c.l.b16 %v4307
        %v4457 = vunpack.c.l.b16 %v4308
        %v4458 = vunpack.c.l.b16 %v4309
        %v4459 = vunpack.c.l.b16 %v4310
        %v4460 = vunpack.c.l.b16 %v4311
        %v4461 = vunpack.c.l.b16 %v4312
        %v4462 = vunpack.c.l.b16 %v4313
        %v4463 = vunpack.c.l.b16 %v4314
        %v4464 = vunpack.c.l.b16 %v4315
        %v4465 = vunpack.c.l.b16 %v4316
        %v4466 = vunpack.c.l.b16 %v4317
        %v4467 = vunpack.c.l.b16 %v4318
        %v4468 = vunpack.c.l.b16 %v4319
        %v4469 = vunpack.c.l.b16 %v4320
        %v4470 = vunpack.c.l.b16 %v4321
        %v4471 = vunpack.c.l.b16 %v4322
        %v4472 = vunpack.c.l.b16 %v4323
        %v4473 = vunpack.c.l.b16 %v4324
        %v4474 = vunpack.c.l.b16 %v4325
        %v4475 = vunpack.c.l.b16 %v4326
        %v4476 = vunpack.c.l.b16 %v4327
        %v4477 = vunpack.c.l.b16 %v4328
        %v4478 = vunpack.c.l.b16 %v4329
        %v4479 = vunpack.c.l.b16 %v4330
        %v4480 = vunpack.c.l.b16 %v4331
        %v4481 = vunpack.c.l.b16 %v4332
        %v4482 = vunpack.c.l.b16 %v4333
        %v4483 = vunpack.c.l.b16 %v4334
        %v4484 = vunpack.c.l.b16 %v4335
        %v4485 = vunpack.c.l.b16 %v4336
        %v4486 = vunpack.c.l.b16 %v4337
        %v4487 = vunpack.c.l.b16 %v4338
        %v4488 = vunpack.c.l.b16 %v4339
        %v4489 = vunpack.c.l.b16 %v4340
        %v4490 = vunpack.c.l.b16 %v4341
        %v4491 = vunpack.c.l.b16 %v4342
        %v4492 = vunpack.c.l.b16 %v4343
        %v4493 = vunpack.c.l.b16 %v4344
        %v4494 = vunpack.c.l.b16 %v4345
        %v4495 = vunpack.c.l.b16 %v4346
        %v4496 = vunpack.c.l.b16 %v4347
        %v4497 = vunpack.c.l.b16 %v4348
        %v4498 = vunpack.c.l.b16 %v4349
        %v4499 = vunpack.c.l.b16 %v4350
        %v4500 = vunpack.c.l.b16 %v4351
        %v4501 = vunpack.c.l.b16 %v4352
        %v4502 = vunpack.c.l.b16 %v4353
        %v4503 = vunpack.c.l.b16 %v4354
        %v4504 = vunpack.c.l.b16 %v4355
        %v4505 = vunpack.c.l.b16 %v4356
        %v4506 = vunpack.c.l.b16 %v4357
        %v4507 = vunpack.c.l.b16 %v4358
        %v4508 = vunpack.c.l.b16 %v4359
        %v4509 = vunpack.c.l.b16 %v4360
        %v4510 = vunpack.c.l.b16 %v4361
        %v4511 = vpack.c.b16 %v4448, %v4447
        %v4512 = vpack.c.b16 %v4450, %v4449
        %v4513 = vpack.c.b16 %v4452, %v4451
        %v4514 = vpack.c.b16 %v4454, %v4453
        %v4515 = vpack.c.b16 %v4456, %v4455
        %v4516 = vpack.c.b16 %v4458, %v4457
        %v4517 = vpack.c.b16 %v4460, %v4459
        %v4518 = vpack.c.b16 %v4462, %v4461
        %v4519 = vpack.c.b16 %v4464, %v4463
        %v4520 = vpack.c.b16 %v4466, %v4465
        %v4521 = vpack.c.b16 %v4468, %v4467
        %v4522 = vpack.c.b16 %v4470, %v4469
        %v4523 = vpack.c.b16 %v4472, %v4471
        %v4524 = vpack.c.b16 %v4474, %v4473
        %v4525 = vpack.c.b16 %v4476, %v4475
        %v4526 = vpack.c.b16 %v4478, %v4477
        %v4527 = vpack.c.b16 %v4480, %v4479
        %v4528 = vpack.c.b16 %v4482, %v4481
        %v4529 = vpack.c.b16 %v4484, %v4483
        %v4530 = vpack.c.b16 %v4486, %v4485
        %v4531 = vpack.c.b16 %v4488, %v4487
        %v4532 = vpack.c.b16 %v4490, %v4489
        %v4533 = vpack.c.b16 %v4492, %v4491
        %v4534 = vpack.c.b16 %v4494, %v4493
        %v4535 = vpack.c.b16 %v4496, %v4495
        %v4536 = vpack.c.b16 %v4498, %v4497
        %v4537 = vpack.c.b16 %v4500, %v4499
        %v4538 = vpack.c.b16 %v4502, %v4501
        %v4539 = vpack.c.b16 %v4504, %v4503
        %v4540 = vpack.c.b16 %v4506, %v4505
        %v4541 = vpack.c.b16 %v4508, %v4507
        %v4542 = vpack.c.b16 %v4510, %v4509
        %4575 = vmatprep.subr.bf16.mxu0 0
        %4576 = vmatpush1.bf16.msra.mxu0 %v4511
        %4577 = vmatprep.subr.bf16.mxu0 0
        %4578 = vmatpush1.bf16.msra.mxu0 %v4512
        %4579 = vmatprep.subr.bf16.mxu0 0
        %4580 = vmatpush1.bf16.msra.mxu0 %v4513
        %4581 = vmatprep.subr.bf16.mxu0 0
        %4582 = vmatpush1.bf16.msra.mxu0 %v4514
        %4583 = vmatprep.subr.bf16.mxu0 0
        %4584 = vmatpush1.bf16.msra.mxu0 %v4515
        %4585 = vmatprep.subr.bf16.mxu0 0
        %4586 = vmatpush1.bf16.msra.mxu0 %v4516
        %4587 = vmatprep.subr.bf16.mxu0 0
        %4588 = vmatpush1.bf16.msra.mxu0 %v4517
        %4589 = vmatprep.subr.bf16.mxu0 0
        %4590 = vmatpush1.bf16.msra.mxu0 %v4518
        %4591 = vmatprep.subr.bf16.mxu0 0
        %4592 = vmatpush1.bf16.msra.mxu0 %v4519
        %4593 = vmatprep.subr.bf16.mxu0 0
        %4594 = vmatpush1.bf16.msra.mxu0 %v4520
        %4595 = vmatprep.subr.bf16.mxu0 0
        %4596 = vmatpush1.bf16.msra.mxu0 %v4521
        %4597 = vmatprep.subr.bf16.mxu0 0
        %4598 = vmatpush1.bf16.msra.mxu0 %v4522
        %4599 = vmatprep.subr.bf16.mxu0 0
        %4600 = vmatpush1.bf16.msra.mxu0 %v4523
        %4601 = vmatprep.subr.bf16.mxu0 0
        %4602 = vmatpush1.bf16.msra.mxu0 %v4524
        %4603 = vmatprep.subr.bf16.mxu0 0
        %4604 = vmatpush1.bf16.msra.mxu0 %v4525
        %4605 = vmatprep.subr.bf16.mxu0 0
        %4606 = vmatpush1.bf16.msra.mxu0 %v4526
        %4607 = vmatprep.mubr.bf16.mxu0 %v4376
        %4608 = vmatmul.mubr.bf16.gmra.mrb[0].mxu0 %v4375
        %v4609 = vpop.f32.mrb[0].mxu0
        %v4610 = vadd.f32 %v4367, %v4609
        %v4611 = vpop.f32.mrb[0].mxu0
        %v4612 = vpop.f32.mrb[0].mxu0
        %v4613 = vpop.f32.mrb[0].mxu0
        %4614 = vdwg.mxu0
        %4615 = vmatprep.subr.bf16.mxu0 0
        %4616 = vmatpush1.bf16.msra.mxu0 %v4527
        %4617 = vmatprep.subr.bf16.mxu0 0
        %4618 = vmatpush1.bf16.msra.mxu0 %v4528
        %4619 = vmatprep.subr.bf16.mxu0 0
        %4620 = vmatpush1.bf16.msra.mxu0 %v4529
        %4621 = vmatprep.subr.bf16.mxu0 0
        %4622 = vmatpush1.bf16.msra.mxu0 %v4530
        %4623 = vmatprep.subr.bf16.mxu0 0
        %4624 = vmatpush1.bf16.msra.mxu0 %v4531
        %4625 = vmatprep.subr.bf16.mxu0 0
        %4626 = vmatpush1.bf16.msra.mxu0 %v4532
        %4627 = vmatprep.subr.bf16.mxu0 0
        %4628 = vmatpush1.bf16.msra.mxu0 %v4533
        %4629 = vmatprep.subr.bf16.mxu0 0
        %4630 = vmatpush1.bf16.msra.mxu0 %v4534
        %4631 = vmatprep.subr.bf16.mxu0 0
        %4632 = vmatpush1.bf16.msra.mxu0 %v4535
        %4633 = vmatprep.subr.bf16.mxu0 0
        %4634 = vmatpush1.bf16.msra.mxu0 %v4536
        %4635 = vmatprep.subr.bf16.mxu0 0
        %4636 = vmatpush1.bf16.msra.mxu0 %v4537
        %4637 = vmatprep.subr.bf16.mxu0 0
        %4638 = vmatpush1.bf16.msra.mxu0 %v4538
        %4639 = vmatprep.subr.bf16.mxu0 0
        %4640 = vmatpush1.bf16.msra.mxu0 %v4539
        %4641 = vmatprep.subr.bf16.mxu0 0
        %4642 = vmatpush1.bf16.msra.mxu0 %v4540
        %4643 = vmatprep.subr.bf16.mxu0 0
        %4644 = vmatpush1.bf16.msra.mxu0 %v4541
        %4645 = vmatprep.subr.bf16.mxu0 0
        %4646 = vmatpush1.bf16.msra.mxu0 %v4542
        %4647 = vmatprep.mubr.bf16.mxu0 %v4378
        %4648 = vmatmul.mubr.bf16.gmra.mrb[0].mxu0 %v4377
        %v4649 = vpop.f32.mrb[0].mxu0
        %v4650 = vadd.f32 %v4610, %v4649
        %v4651 = vpop.f32.mrb[0].mxu0
        %v4652 = vpop.f32.mrb[0].mxu0
        %v4653 = vpop.f32.mrb[0].mxu0
        %4654 = vdwg.mxu0
        %4655 = vst [vmem:[%s271] sm:$0xff] %v4650
        %s4656 = sand.u32 %s141, 1
        %s4657 = scalar_lea.sflag [#allocation5], %s4656
        %s4658 = sand.u32 %s141, 1
        %s4659 = smul.addr %s4658, 8
        %s4660 = scalar_lea.vmem [#allocation9], %s4659
        // Predicated region
        $region53: #{tpu_custom_call.1} parent=39 // pred_check
          %p4661 = pneg %p151
        $region54: #{tpu_custom_call.1} parent=39 // pred_check_branch
          %4663 = sbr.rel (%p4661) target = $region56
        $region55: #{tpu_custom_call.1} parent=39 // pred_region
          %s4665 = ssub.s32 128, 128
          %4666 = vsyncadd %s4657, %s4665
          %s4667 = smul.addr %s23, 128
          %s4668 = scalar_lea.hbm %s5, %s4667
          %s4670 = sshll.u32 %s4660, 4
          %s4671 = int_to_ptr.vmem [resolvable:$true] %s4670
          %4673 = dma.vmem_to_hbm [thread:$0]  %s4671, 128, %s4668, %s4657
        $region56: #{tpu_custom_call.1} parent=39 // pred_fallthru
          _
      $region40: #{tpu_custom_call.1} parent=5 // pred_fallthru
        _
      %p4674 = scmp.le.s32.totalorder 2, %s18
      // Predicated region
      $region57: #{tpu_custom_call.1} parent=5 // pred_check
        %p4675 = pneg %p4674
      $region58: #{tpu_custom_call.1} parent=5 // pred_check_branch
        %4677 = sbr.rel (%p4675) target = $region60
      $region59: #{tpu_custom_call.1} parent=5 // pred_region
        %s4678 = ssub.s32 %s18, 2
        // Predicated region
        $region61: #{tpu_custom_call.1} parent=59 // pred_check
          %p4679 = pneg %p157
        $region62: #{tpu_custom_call.1} parent=59 // pred_check_branch
          %4681 = sbr.rel (%p4679) target = $region64
        $region63: #{tpu_custom_call.1} parent=59 // pred_region
          %s4682 = sand.u32 %s142, 1
          %s4683 = scalar_lea.sflag [#allocation5], %s4682
          %s4684 = sand.u32 %s142, 1
          %s4685 = smul.addr %s4684, 8
          %s4686 = scalar_lea.vmem [#allocation9], %s4685
          %4687 = dma.done %s4683, 128
        $region64: #{tpu_custom_call.1} parent=59 // pred_fallthru
          _
      $region60: #{tpu_custom_call.1} parent=5 // pred_fallthru
        _
    $region6: #{tpu_custom_call.1} parent=1 // loop_footer
      %s22 = sadd.s32 1, %s18
    $region7: #{tpu_custom_call.1} parent=1 // loop_footer_branch
      %17 = sbr.rel target = $region3
    $region8: #{tpu_custom_call.1} parent=1 // loop_exit
      _
    %4688 = vsyncpa [#allocation4], 1
    %s4689 = scalar_lea.sflag [#allocation4], 1
    %4690 = vsyncpa %s4689, 1
    %4691 = vsyncpa [#allocation7], 1
    %4692 = vsyncpa [#allocation5], 1
    %s4693 = scalar_lea.sflag [#allocation5], 1
    %4694 = vsyncpa %s4693, 1

</llo_original>
